<compile_context>
chip_gen: v7x
topology: tpu7x:2x2x1
jax: 0.10.0
libtpu: 0.0.40
codegen_flags: <defaults>
</compile_context>

<pallas_src>
import jax
import jax.numpy as jnp
import numpy as np
from jax.experimental import pallas as pl
from jax.experimental.pallas import tpu as pltpu

# ----------------------------- small-shape config -----------------------------
B = 2                                # batch
IMG_C, IMG_H, IMG_W = 3, 32, 32
C0, C1, C2 = 32, 64, 64              # stand-ins for ldm_prior = [320, 640, 1280]
LDM_PRIOR = [C0, C1, C2 + C2]        # [32, 64, 128]
OUT_DIM = 96                         # stand-in for channels_in = 192 * 8
OUT_PAD = 128                        # out channels zero-padded to a lane-dense 128
VIT_LOGITS, FC_HID, NCLS, EMB_DIM = 128, 64, 32, 64  # stand-ins for 1000/400/ncls/768
GN_GROUPS = 16
GN_EPS = 1e-5
CTX_H, CTX_W = 12, 16                # stand-in for F.interpolate(..., size=(120,160))

H0, W0 = IMG_H // 2, IMG_W // 2      # 16, 16  (unet-stub scale-0 feature map)
H1, W1 = H0 // 2, W0 // 2            # 8, 8
H2, W2 = H0 // 4, W0 // 4            # 4, 4

M1 = H1 * W1                         # 64  output pixels of conv geometry 0
M2 = H2 * W2                         # 16  output pixels of conv geometry 1


# ----------------------------- host-side constants -----------------------------
def _selection_matrix(hin, win, hout, wout):
    """Stacked tap-major 0/1 gather matrix for a 3x3 / stride-2 / pad-1 conv.

    Shape (9 * hout*wout, hin*win), row index = tap * m + (u*wout + v); a row is all
    zero when the tap falls in the zero-padding region.  Static shapes only, so this
    is built once on the host (bf16) instead of with per-grid-step iota/compare ops.
    """
    m, n_in = hout * wout, hin * win
    s = np.zeros((9 * m, n_in), np.float32)
    for ki in range(3):
        for kj in range(3):
            tap = ki * 3 + kj
            for u in range(hout):
                for v in range(wout):
                    r, c = 2 * u + ki - 1, 2 * v + kj - 1
                    if 0 <= r < hin and 0 <= c < win:
                        s[tap * m + u * wout + v, r * win + c] = 1.0
    return jnp.asarray(s, jnp.bfloat16)


def _group_membership(c, group_size):
    gid = np.arange(c) // group_size
    return jnp.asarray((gid[:, None] == gid[None, :]).astype(np.float32))


# ----------------------------- in-kernel helpers ------------------------------
def _conv3x3_s2(x_bf16, sel_ref, w_ref, b_ref, m):
    """3x3 / stride-2 / pad-1 convolution, fully in-kernel.

    x_bf16  : (hin*win, cin) bf16   NHWC-flattened single sample
    sel_ref : (9*m, hin*win) bf16   host-precomputed stacked gather matrix
    w_ref   : (9, cin, cout) bf16   tap-major weights (tap index = ki*3 + kj)
    b_ref   : (1, cout) f32         bias
    returns (m, cout) f32

    One tall gather matmul builds all 9 tap patches at once (no im2col in HBM, no
    in-kernel mask construction), then 9 small tap matmuls accumulate in f32.
    """
    cout = w_ref.shape[-1]
    # exact 0/1 gather of bf16 values -> casting back to bf16 is lossless
    patches = jnp.dot(sel_ref[...], x_bf16,
                      preferred_element_type=jnp.float32).astype(jnp.bfloat16)
    acc = jnp.zeros((m, cout), jnp.float32)
    for tap in range(9):
        acc = acc + jnp.dot(patches[tap * m:(tap + 1) * m, :], w_ref[tap],
                            preferred_element_type=jnp.float32)
    return acc + b_ref[...]


def _gn_relu(x, gm_ref, g_ref, b_ref, n_per_group):
    """GroupNorm + ReLU on (rows, C).

    Both statistics (sum, sum of squares) are broadcast back per-channel with ONE
    (2, C) @ (C, C) group-membership matmul — no cross-lane shuffles, half the MXU
    pushes of the previous two-matmul version.
    """
    inv_n = 1.0 / float(n_per_group)
    s = jnp.concatenate([jnp.sum(x, axis=0, keepdims=True),
                         jnp.sum(x * x, axis=0, keepdims=True)], axis=0)   # (2, C)
    stats = jnp.dot(s, gm_ref[...], preferred_element_type=jnp.float32) * inv_n
    mean = stats[0:1, :]
    var = jnp.maximum(stats[1:2, :] - mean * mean, 0.0)
    y = (x - mean) * jax.lax.rsqrt(var + GN_EPS) * g_ref[...] + b_ref[...]
    return jnp.maximum(y, 0.0)


def _gelu_erf(x):
    """Exact-erf GELU; erf via Abramowitz–Stegun 7.1.26 (|abs err| < 1.5e-7),
    built only from ops with guaranteed Mosaic lowerings (exp, mul, add, where)."""
    z = x * 0.7071067811865476
    az = jnp.abs(z)
    t = 1.0 / (1.0 + 0.3275911 * az)
    poly = ((((1.061405429 * t - 1.453152027) * t + 1.421413741) * t
             - 0.284496736) * t + 0.254829592) * t
    erf_abs = 1.0 - poly * jnp.exp(-az * az)
    erf_z = jnp.where(z >= 0.0, erf_abs, -erf_abs)
    return 0.5 * x * (1.0 + erf_z)


# ----------------------------- fused encoder-tail kernel ----------------------
def _encoder_tail_kernel(x0_ref, x1_ref, x2_ref, s1_ref, s2_ref,
                         w1a_ref, b1a_ref, gm1_ref, g1_ref, be1_ref,
                         w1b_ref, b1b_ref,
                         w2_ref, b2_ref,
                         wo_ref, bo_ref, gmo_ref, go_ref, beo_ref,
                         o_ref):
    # ---- layer1: conv3x3/s2 -> GroupNorm(16)+ReLU -> conv3x3/s2 ----
    x0 = x0_ref[0]                                                  # (256, 32) bf16
    t = _conv3x3_s2(x0, s1_ref, w1a_ref, b1a_ref, M1)               # (64, 32) f32
    t = _gn_relu(t, gm1_ref, g1_ref, be1_ref,
                 n_per_group=M1 * (C0 // GN_GROUPS))
    y1 = _conv3x3_s2(t.astype(jnp.bfloat16), s2_ref, w1b_ref, b1b_ref, M2)   # (16, 32)

    # ---- layer2: conv3x3/s2 (same geometry as conv1b -> shared selection const) ----
    y2 = _conv3x3_s2(x1_ref[0], s2_ref, w2_ref, b2_ref, M2)         # (16, 64)

    # ---- out_layer: conv1x1 over concat([y1, y2, feats2]) -> GN(16)+ReLU ----
    # The channel concat is folded into three partial matmuls against row slices of
    # the (224, 128) bf16 1x1 weight, so no in-kernel concatenate of activations.
    x2 = x2_ref[0]                                                  # (16, 128) bf16
    out = (jnp.dot(y1.astype(jnp.bfloat16), wo_ref[0:C0, :],
                   preferred_element_type=jnp.float32)
           + jnp.dot(y2.astype(jnp.bfloat16), wo_ref[C0:C0 + C1, :],
                     preferred_element_type=jnp.float32)
           + jnp.dot(x2, wo_ref[C0 + C1:C0 + C1 + LDM_PRIOR[2], :],
                     preferred_element_type=jnp.float32)
           + bo_ref[...])                                           # (16, 128) f32
    out = _gn_relu(out, gmo_ref, go_ref, beo_ref,
                   n_per_group=M2 * (OUT_DIM // GN_GROUPS))
    o_ref[0] = out.astype(o_ref.dtype)                              # lane-dense 128


def encoder_tail(feats0, feats1, feats2, p):
    """layer1 + layer2 + out_layer fused into a single batch-parallel Pallas call."""
    b = feats0.shape[0]
    # NHWC, spatial-flattened, bf16 activations (halves DMA bytes; f32 accumulation in-kernel)
    x0 = jnp.transpose(feats0, (0, 2, 3, 1)).reshape(b, H0 * W0, C0).astype(jnp.bfloat16)
    x1 = jnp.transpose(feats1, (0, 2, 3, 1)).reshape(b, H1 * W1, C1).astype(jnp.bfloat16)
    x2 = jnp.transpose(feats2, (0, 2, 3, 1)).reshape(b, H2 * W2, LDM_PRIOR[2]).astype(jnp.bfloat16)

    def conv_w(w):  # (cout, cin, 3, 3) -> (9, cin, cout) bf16, tap-major
        cout, cin = w.shape[0], w.shape[1]
        return jnp.transpose(w, (2, 3, 1, 0)).reshape(9, cin, cout).astype(jnp.bfloat16)

    w1a = conv_w(p["l1c1_w"]); b1a = p["l1c1_b"].reshape(1, C0)
    w1b = conv_w(p["l1c2_w"]); b1b = p["l1c2_b"].reshape(1, C0)
    w2 = conv_w(p["l2c1_w"]); b2 = p["l2c1_b"].reshape(1, C1)
    g1 = p["l1gn_g"].reshape(1, C0); be1 = p["l1gn_b"].reshape(1, C0)
    # 1x1 out conv, zero-padded to 128 output channels for a lane-dense store, bf16.
    pad = OUT_PAD - OUT_DIM
    wo = jnp.pad(jnp.transpose(p["out_w"].reshape(OUT_DIM, sum(LDM_PRIOR)), (1, 0)),
                 ((0, 0), (0, pad))).astype(jnp.bfloat16)
    bo = jnp.pad(p["out_b"], (0, pad)).reshape(1, OUT_PAD)
    go = jnp.pad(p["outgn_g"], (0, pad), constant_values=1.0).reshape(1, OUT_PAD)
    beo = jnp.pad(p["outgn_b"], (0, pad)).reshape(1, OUT_PAD)
    gm1 = _group_membership(C0, C0 // GN_GROUPS)
    gmo = _group_membership(OUT_PAD, OUT_DIM // GN_GROUPS)
    # host-precomputed stacked gather matrices (one per conv geometry; geometry 1 shared)
    s1 = _selection_matrix(H0, W0, H1, W1)      # (576, 256) bf16
    s2 = _selection_matrix(H1, W1, H2, W2)      # (144, 64)  bf16

    def full(shape):
        return pl.BlockSpec(shape, lambda i, _n=len(shape): (0,) * _n)

    def per_b(shape):
        return pl.BlockSpec((1,) + shape, lambda i: (i, 0, 0))

    out = pl.pallas_call(
        _encoder_tail_kernel,
        out_shape=jax.ShapeDtypeStruct((b, H2 * W2, OUT_PAD), jnp.float32),
        grid=(b,),
        in_specs=[
            per_b((H0 * W0, C0)), per_b((H1 * W1, C1)), per_b((H2 * W2, LDM_PRIOR[2])),
            full((9 * M1, H0 * W0)), full((9 * M2, H1 * W1)),
            full((9, C0, C0)), full((1, C0)), full((C0, C0)), full((1, C0)), full((1, C0)),
            full((9, C0, C0)), full((1, C0)),
            full((9, C1, C1)), full((1, C1)),
            full((sum(LDM_PRIOR), OUT_PAD)), full((1, OUT_PAD)),
            full((OUT_PAD, OUT_PAD)), full((1, OUT_PAD)), full((1, OUT_PAD)),
        ],
        out_specs=pl.BlockSpec((1, H2 * W2, OUT_PAD), lambda i: (i, 0, 0)),
        compiler_params=pltpu.CompilerParams(dimension_semantics=("parallel",)),
    )(x0, x1, x2, s1, s2,
      w1a, b1a, gm1, g1, be1,
      w1b, b1b,
      w2, b2,
      wo, bo, gmo, go, beo)

    # back to NCHW, dropping the lane-padding channels (fused by XLA into the transpose)
    out = out.reshape(b, H2, W2, OUT_PAD)[..., :OUT_DIM]
    return jnp.transpose(out, (0, 3, 1, 2))


# ----------------------------- CIDE head kernel -------------------------------
def _cide_kernel(logits_ref, w1_ref, b1_ref, w2_ref, b2_ref, emb_ref, o_ref):
    h = jnp.dot(logits_ref[...], w1_ref[...],
                preferred_element_type=jnp.float32) + b1_ref[...]
    h = _gelu_erf(h)                              # nn.GELU() default = exact erf
    h = jnp.dot(h.astype(jnp.bfloat16), w2_ref[...],
                preferred_element_type=jnp.float32) + b2_ref[...]
    # softmax(dim=1) with an EUP approx reciprocal instead of a VPU divide
    mx = jnp.max(h, axis=1, keepdims=True)
    e = jnp.exp(h - mx)
    prob = e * pl.reciprocal(jnp.sum(e, axis=1, keepdims=True), approx=True)
    o_ref[...] = jnp.dot(prob.astype(jnp.bfloat16), emb_ref[...],
                         preferred_element_type=jnp.float32)


def cide_head(vit_logits, p):
    """fc -> GELU -> fc -> softmax -> @ embeddings, fused in one Pallas kernel.
    All matmul operands are pre-cast to bf16 host-side (f32 accumulate/epilogue)."""
    return pl.pallas_call(
        _cide_kernel,
        out_shape=jax.ShapeDtypeStruct((vit_logits.shape[0], EMB_DIM), jnp.float32),
    )(
        vit_logits.astype(jnp.bfloat16),
        p["fc1_w"].astype(jnp.bfloat16), p["fc1_b"].reshape(1, -1),
        p["fc2_w"].astype(jnp.bfloat16), p["fc2_b"].reshape(1, -1),
        p["embeddings"].astype(jnp.bfloat16),
    )


# ----------------------------- stubs & glue -----------------------------------
def upsample_nearest2(x):
    # F.interpolate(..., scale_factor=2) default mode='nearest'
    return jnp.repeat(jnp.repeat(x, 2, axis=2), 2, axis=3)


def unet_stub(x_scaled, scene_embedding):
    # TODO(synk): the frozen SD VQ encoder + SD UNet (UNetWrapper) are external
    # pretrained checkpoints with no in-repo definition; replaced by a
    # deterministic multi-scale feature stub with the correct layout/channels.
    b = x_scaled.shape[0]
    k0, k1, k2, k3 = jax.random.split(jax.random.PRNGKey(42), 4)
    drive = 1.0 + 1e-3 * jnp.mean(x_scaled) + 1e-3 * jnp.mean(scene_embedding)
    return [
        drive * jax.random.normal(k0, (b, C0, H0, W0), jnp.float32),
        drive * jax.random.normal(k1, (b, C1, H1, W1), jnp.float32),
        drive * jax.random.normal(k2, (b, C2, H2, W2), jnp.float32),
        drive * jax.random.normal(k3, (b, C2, H2 // 2, W2 // 2), jnp.float32),
    ]


def encoder_forward(x_scaled, p):
    # TODO(synk): ViTForImageClassification + vit_processor are external frozen
    # models and EmbeddingAdapter is undefined in the reference source; synthetic
    # deterministic logits are used and the adapter/gamma step is omitted.
    vit_logits = jax.random.normal(jax.random.PRNGKey(7),
                                   (x_scaled.shape[0], VIT_LOGITS), jnp.float32)
    scene_emb = cide_head(vit_logits, p)

    outs = unet_stub(x_scaled, scene_emb)
    feats2 = jnp.concatenate([outs[2], upsample_nearest2(outs[3])], axis=1)
    conv_out = encoder_tail(outs[0], outs[1], feats2, p)   # fused Pallas kernel
    return conv_out, outs[0], scene_emb


def ecodepth4_forward(x, p):
    # x * 2.0 - 1.0 left to XLA elementwise fusion (a dedicated kernel launch
    # would cost more than the VPU work at this size).
    x = x * 2.0 - 1.0
    conv_feats, context, scene_emb = encoder_forward(x, p)
    # F.interpolate(context, size=(120,160), mode='bilinear') (align_corners=False)
    context = jax.image.resize(
        context, (context.shape[0], context.shape[1], CTX_H, CTX_W), method="bilinear")
    # (h == 480 or h == 352) crop branch not applicable at these shapes.
    # TODO(synk): AutoRegDecoder depends on BasicUpdateBlockDepth (and 4x bilinear
    # upsample of its outputs) which is not defined in the reference source;
    # returning the encoder features in place of the predicted depth list.
    return {"pred_d": [conv_feats], "_context": context, "_scene_embedding": scene_emb}


# ----------------------------- parameter init ---------------------------------
def init_params(key):
    ks = jax.random.split(key, 12)

    def tn(k, shape):  # trunc_normal_(std=0.02)
        return 0.02 * jax.random.truncated_normal(k, -2.0, 2.0, shape, jnp.float32)

    return {
        "l1c1_w": tn(ks[0], (C0, C0, 3, 3)), "l1c1_b": jnp.zeros((C0,), jnp.float32),
        "l1gn_g": jnp.ones((C0,), jnp.float32), "l1gn_b": jnp.zeros((C0,), jnp.float32),
        "l1c2_w": tn(ks[1], (C0, C0, 3, 3)), "l1c2_b": jnp.zeros((C0,), jnp.float32),
        "l2c1_w": tn(ks[2], (C1, C1, 3, 3)), "l2c1_b": jnp.zeros((C1,), jnp.float32),
        "out_w": tn(ks[3], (OUT_DIM, sum(LDM_PRIOR), 1, 1)),
        "out_b": jnp.zeros((OUT_DIM,), jnp.float32),
        "outgn_g": jnp.ones((OUT_DIM,), jnp.float32),
        "outgn_b": jnp.zeros((OUT_DIM,), jnp.float32),
        # CIDE fc + embeddings (stored as (in, out) for right-multiplication)
        "fc1_w": tn(ks[4], (VIT_LOGITS, FC_HID)), "fc1_b": jnp.zeros((FC_HID,), jnp.float32),
        "fc2_w": tn(ks[5], (FC_HID, NCLS)), "fc2_b": jnp.zeros((NCLS,), jnp.float32),
        "embeddings": jax.random.normal(ks[6], (NCLS, EMB_DIM), jnp.float32),
    }


if __name__ == "__main__":
    key = jax.random.PRNGKey(0)
    kx, kp = jax.random.split(key)
    x = jax.random.uniform(kx, (B, IMG_C, IMG_H, IMG_W), jnp.float32)
    params = init_params(kp)
    fwd = jax.jit(ecodepth4_forward)
    out = fwd(x, params)
    jax.block_until_ready(out)
    assert out["pred_d"][0].shape == (B, OUT_DIM, IMG_H // 8, IMG_W // 8)
    print("KERNEL_OK")
</pallas_src>

<mosaic_0001>
module attributes {stable_mosaic.version = 11 : i64} {
  func.func @_cide_kernel(%arg0: memref<2x128xbf16, #tpu.memory_space<vmem>>, %arg1: memref<128x64xbf16, #tpu.memory_space<vmem>>, %arg2: memref<1x64xf32, #tpu.memory_space<vmem>>, %arg3: memref<64x32xbf16, #tpu.memory_space<vmem>>, %arg4: memref<1x32xf32, #tpu.memory_space<vmem>>, %arg5: memref<32x64xbf16, #tpu.memory_space<vmem>>, %arg6: memref<2x64xf32, #tpu.memory_space<vmem>>) attributes {dimension_semantics = [], scalar_prefetch = 0 : i64, scratch_operands = 0 : i64, tpu.core_type = #tpu.core_type<tc>} {
    %c0 = arith.constant 0 : index
    %c0_0 = arith.constant 0 : index
    %0 = vector.load %arg0[%c0, %c0_0] : memref<2x128xbf16, #tpu.memory_space<vmem>>, vector<2x128xbf16>
    %c0_1 = arith.constant 0 : index
    %c0_2 = arith.constant 0 : index
    %1 = vector.load %arg1[%c0_1, %c0_2] : memref<128x64xbf16, #tpu.memory_space<vmem>>, vector<128x64xbf16>
    %cst = arith.constant dense<0.000000e+00> : vector<2x64xf32>
    %2 = tpu.matmul %0, %1, %cst {dimension_numbers = #tpu.dot_dimension_numbers<[1], [0], [0], [1], [0, 0, 1, 1], [], []>} : vector<2x128xbf16>, vector<128x64xbf16>, vector<2x64xf32> -> vector<2x64xf32>
    %c0_3 = arith.constant 0 : index
    %c0_4 = arith.constant 0 : index
    %3 = vector.load %arg2[%c0_3, %c0_4] : memref<1x64xf32, #tpu.memory_space<vmem>>, vector<1x64xf32>
    %4 = vector.broadcast %3 : vector<1x64xf32> to vector<2x64xf32>
    %5 = arith.addf %2, %4 : vector<2x64xf32>
    %cst_5 = arith.constant 0.707106769 : f32
    %6 = vector.broadcast %cst_5 : f32 to vector<2x64xf32>
    %7 = arith.mulf %5, %6 : vector<2x64xf32>
    %8 = math.absf %7 : vector<2x64xf32>
    %cst_6 = arith.constant 0.327591091 : f32
    %9 = vector.broadcast %cst_6 : f32 to vector<2x64xf32>
    %10 = arith.mulf %9, %8 : vector<2x64xf32>
    %cst_7 = arith.constant 1.000000e+00 : f32
    %11 = vector.broadcast %cst_7 : f32 to vector<2x64xf32>
    %12 = arith.addf %11, %10 : vector<2x64xf32>
    %cst_8 = arith.constant 1.000000e+00 : f32
    %13 = vector.broadcast %cst_8 : f32 to vector<2x64xf32>
    %14 = arith.divf %13, %12 : vector<2x64xf32>
    %cst_9 = arith.constant 1.06140542 : f32
    %15 = vector.broadcast %cst_9 : f32 to vector<2x64xf32>
    %16 = arith.mulf %15, %14 : vector<2x64xf32>
    %cst_10 = arith.constant 1.45315206 : f32
    %17 = vector.broadcast %cst_10 : f32 to vector<2x64xf32>
    %18 = arith.subf %16, %17 : vector<2x64xf32>
    %19 = arith.mulf %18, %14 : vector<2x64xf32>
    %cst_11 = arith.constant 1.42141378 : f32
    %20 = vector.broadcast %cst_11 : f32 to vector<2x64xf32>
    %21 = arith.addf %19, %20 : vector<2x64xf32>
    %22 = arith.mulf %21, %14 : vector<2x64xf32>
    %cst_12 = arith.constant 0.284496725 : f32
    %23 = vector.broadcast %cst_12 : f32 to vector<2x64xf32>
    %24 = arith.subf %22, %23 : vector<2x64xf32>
    %25 = arith.mulf %24, %14 : vector<2x64xf32>
    %cst_13 = arith.constant 0.254829586 : f32
    %26 = vector.broadcast %cst_13 : f32 to vector<2x64xf32>
    %27 = arith.addf %25, %26 : vector<2x64xf32>
    %28 = arith.mulf %27, %14 : vector<2x64xf32>
    %cst_14 = arith.constant 0.000000e+00 : f32
    %29 = vector.broadcast %cst_14 : f32 to vector<2x64xf32>
    %30 = arith.subf %29, %8 : vector<2x64xf32>
    %31 = arith.mulf %30, %8 : vector<2x64xf32>
    %32 = math.exp %31 : vector<2x64xf32>
    %33 = arith.mulf %28, %32 : vector<2x64xf32>
    %cst_15 = arith.constant 1.000000e+00 : f32
    %34 = vector.broadcast %cst_15 : f32 to vector<2x64xf32>
    %35 = arith.subf %34, %33 : vector<2x64xf32>
    %cst_16 = arith.constant 0.000000e+00 : f32
    %36 = vector.broadcast %cst_16 : f32 to vector<2x64xf32>
    %37 = arith.cmpf oge, %7, %36 : vector<2x64xf32>
    %cst_17 = arith.constant 0.000000e+00 : f32
    %38 = vector.broadcast %cst_17 : f32 to vector<2x64xf32>
    %39 = arith.subf %38, %35 : vector<2x64xf32>
    %40 = arith.select %37, %35, %39 : vector<2x64xi1>, vector<2x64xf32>
    %cst_18 = arith.constant 5.000000e-01 : f32
    %41 = vector.broadcast %cst_18 : f32 to vector<2x64xf32>
    %42 = arith.mulf %41, %5 : vector<2x64xf32>
    %cst_19 = arith.constant 1.000000e+00 : f32
    %43 = vector.broadcast %cst_19 : f32 to vector<2x64xf32>
    %44 = arith.addf %43, %40 : vector<2x64xf32>
    %45 = arith.mulf %42, %44 : vector<2x64xf32>
    %46 = arith.truncf %45 : vector<2x64xf32> to vector<2x64xbf16>
    %c0_20 = arith.constant 0 : index
    %c0_21 = arith.constant 0 : index
    %47 = vector.load %arg3[%c0_20, %c0_21] : memref<64x32xbf16, #tpu.memory_space<vmem>>, vector<64x32xbf16>
    %cst_22 = arith.constant dense<0.000000e+00> : vector<2x32xf32>
    %48 = tpu.matmul %46, %47, %cst_22 {dimension_numbers = #tpu.dot_dimension_numbers<[1], [0], [0], [1], [0, 0, 1, 1], [], []>} : vector<2x64xbf16>, vector<64x32xbf16>, vector<2x32xf32> -> vector<2x32xf32>
    %c0_23 = arith.constant 0 : index
    %c0_24 = arith.constant 0 : index
    %49 = vector.load %arg4[%c0_23, %c0_24] : memref<1x32xf32, #tpu.memory_space<vmem>>, vector<1x32xf32>
    %50 = vector.broadcast %49 : vector<1x32xf32> to vector<2x32xf32>
    %51 = arith.addf %48, %50 : vector<2x32xf32>
    %cst_25 = arith.constant dense<0xFF800000> : vector<2xf32>
    %52 = vector.multi_reduction <maximumf>, %51, %cst_25 [1] : vector<2x32xf32> to vector<2xf32>
    %53 = vector.shape_cast %52 : vector<2xf32> to vector<2x1xf32>
    %54 = vector.broadcast %53 : vector<2x1xf32> to vector<2x32xf32>
    %55 = arith.subf %51, %54 : vector<2x32xf32>
    %56 = math.exp %55 : vector<2x32xf32>
    %cst_26 = arith.constant dense<0.000000e+00> : vector<2xf32>
    %57 = vector.multi_reduction <add>, %56, %cst_26 [1] : vector<2x32xf32> to vector<2xf32>
    %58 = vector.shape_cast %57 : vector<2xf32> to vector<2x1xf32>
    %59 = tpu.reciprocal %58 {approx = true} : vector<2x1xf32> -> vector<2x1xf32>
    %60 = vector.broadcast %59 : vector<2x1xf32> to vector<2x32xf32>
    %61 = arith.mulf %56, %60 : vector<2x32xf32>
    %62 = arith.truncf %61 : vector<2x32xf32> to vector<2x32xbf16>
    %c0_27 = arith.constant 0 : index
    %c0_28 = arith.constant 0 : index
    %63 = vector.load %arg5[%c0_27, %c0_28] : memref<32x64xbf16, #tpu.memory_space<vmem>>, vector<32x64xbf16>
    %cst_29 = arith.constant dense<0.000000e+00> : vector<2x64xf32>
    %64 = tpu.matmul %62, %63, %cst_29 {dimension_numbers = #tpu.dot_dimension_numbers<[1], [0], [0], [1], [0, 0, 1, 1], [], []>} : vector<2x32xbf16>, vector<32x64xbf16>, vector<2x64xf32> -> vector<2x64xf32>
    %c0_30 = arith.constant 0 : index
    %c0_31 = arith.constant 0 : index
    %65 = vector.load %arg6[%c0_30, %c0_31] : memref<2x64xf32, #tpu.memory_space<vmem>>, vector<2x64xf32>
    tpu.vector_store %arg6[%c0_30, %c0_31], %64 {strides = array<i32>} : memref<2x64xf32, #tpu.memory_space<vmem>>, vector<2x64xf32>,
    return
  }
}

module attributes {stable_mosaic.version = 11 : i64} {
  func.func @_encoder_tail_kernel(%arg0: i32, %arg1: memref<1x256x32xbf16, #tpu.memory_space<vmem>>, %arg2: memref<1x64x64xbf16, #tpu.memory_space<vmem>>, %arg3: memref<1x16x128xbf16, #tpu.memory_space<vmem>>, %arg4: memref<576x256xbf16, #tpu.memory_space<vmem>>, %arg5: memref<144x64xbf16, #tpu.memory_space<vmem>>, %arg6: memref<9x32x32xbf16, #tpu.memory_space<vmem>>, %arg7: memref<1x32xf32, #tpu.memory_space<vmem>>, %arg8: memref<32x32xf32, #tpu.memory_space<vmem>>, %arg9: memref<1x32xf32, #tpu.memory_space<vmem>>, %arg10: memref<1x32xf32, #tpu.memory_space<vmem>>, %arg11: memref<9x32x32xbf16, #tpu.memory_space<vmem>>, %arg12: memref<1x32xf32, #tpu.memory_space<vmem>>, %arg13: memref<9x64x64xbf16, #tpu.memory_space<vmem>>, %arg14: memref<1x64xf32, #tpu.memory_space<vmem>>, %arg15: memref<224x128xbf16, #tpu.memory_space<vmem>>, %arg16: memref<1x128xf32, #tpu.memory_space<vmem>>, %arg17: memref<128x128xf32, #tpu.memory_space<vmem>>, %arg18: memref<1x128xf32, #tpu.memory_space<vmem>>, %arg19: memref<1x128xf32, #tpu.memory_space<vmem>>, %arg20: memref<1x16x128xf32, #tpu.memory_space<vmem>>) attributes {dimension_semantics = [#tpu.dimension_semantics<parallel>], iteration_bounds = array<i64: 2>, scalar_prefetch = 0 : i64, scratch_operands = 0 : i64, tpu.core_type = #tpu.core_type<tc>, window_params = [{transform_indices = @transform_0, window_bounds = array<i64: 1, 256, 32>}, {transform_indices = @transform_1, window_bounds = array<i64: 1, 64, 64>}, {transform_indices = @transform_2, window_bounds = array<i64: 1, 16, 128>}, {pipeline_mode = #tpu.pipeline_mode<synchronous>, transform_indices = @transform_3, window_bounds = array<i64: 576, 256>}, {pipeline_mode = #tpu.pipeline_mode<synchronous>, transform_indices = @transform_4, window_bounds = array<i64: 144, 64>}, {pipeline_mode = #tpu.pipeline_mode<synchronous>, transform_indices = @transform_5, window_bounds = array<i64: 9, 32, 32>}, {pipeline_mode = #tpu.pipeline_mode<synchronous>, transform_indices = @transform_6, window_bounds = array<i64: 1, 32>}, {pipeline_mode = #tpu.pipeline_mode<synchronous>, transform_indices = @transform_7, window_bounds = array<i64: 32, 32>}, {pipeline_mode = #tpu.pipeline_mode<synchronous>, transform_indices = @transform_8, window_bounds = array<i64: 1, 32>}, {pipeline_mode = #tpu.pipeline_mode<synchronous>, transform_indices = @transform_9, window_bounds = array<i64: 1, 32>}, {pipeline_mode = #tpu.pipeline_mode<synchronous>, transform_indices = @transform_10, window_bounds = array<i64: 9, 32, 32>}, {pipeline_mode = #tpu.pipeline_mode<synchronous>, transform_indices = @transform_11, window_bounds = array<i64: 1, 32>}, {pipeline_mode = #tpu.pipeline_mode<synchronous>, transform_indices = @transform_12, window_bounds = array<i64: 9, 64, 64>}, {pipeline_mode = #tpu.pipeline_mode<synchronous>, transform_indices = @transform_13, window_bounds = array<i64: 1, 64>}, {pipeline_mode = #tpu.pipeline_mode<synchronous>, transform_indices = @transform_14, window_bounds = array<i64: 224, 128>}, {pipeline_mode = #tpu.pipeline_mode<synchronous>, transform_indices = @transform_15, window_bounds = array<i64: 1, 128>}, {pipeline_mode = #tpu.pipeline_mode<synchronous>, transform_indices = @transform_16, window_bounds = array<i64: 128, 128>}, {pipeline_mode = #tpu.pipeline_mode<synchronous>, transform_indices = @transform_17, window_bounds = array<i64: 1, 128>}, {pipeline_mode = #tpu.pipeline_mode<synchronous>, transform_indices = @transform_18, window_bounds = array<i64: 1, 128>}, {transform_indices = @transform_19, window_bounds = array<i64: 1, 16, 128>}]} {
    %c0 = arith.constant 0 : index
    %c0_0 = arith.constant 0 : index
    %c0_1 = arith.constant 0 : index
    %0 = vector.load %arg1[%c0, %c0_0, %c0_1] : memref<1x256x32xbf16, #tpu.memory_space<vmem>>, vector<1x256x32xbf16>
    %1 = vector.shape_cast %0 : vector<1x256x32xbf16> to vector<256x32xbf16>
    %c0_2 = arith.constant 0 : index
    %c0_3 = arith.constant 0 : index
    %2 = vector.load %arg4[%c0_2, %c0_3] : memref<576x256xbf16, #tpu.memory_space<vmem>>, vector<576x256xbf16>
    %cst = arith.constant dense<0.000000e+00> : vector<576x32xf32>
    %3 = tpu.matmul %2, %1, %cst {dimension_numbers = #tpu.dot_dimension_numbers<[1], [0], [0], [1], [0, 0, 1, 1], [], []>} : vector<576x256xbf16>, vector<256x32xbf16>, vector<576x32xf32> -> vector<576x32xf32>
    %4 = arith.truncf %3 : vector<576x32xf32> to vector<576x32xbf16>
    %cst_4 = arith.constant 0.000000e+00 : f32
    %5 = vector.broadcast %cst_4 : f32 to vector<64x32xf32>
    %6 = vector.extract_strided_slice %4 {offsets = [0, 0], sizes = [64, 32], strides = [1, 1]} : vector<576x32xbf16> to vector<64x32xbf16>
    %c0_5 = arith.constant 0 : index
    %c0_6 = arith.constant 0 : index
    %c0_7 = arith.constant 0 : index
    %7 = vector.load %arg6[%c0_5, %c0_6, %c0_7] : memref<9x32x32xbf16, #tpu.memory_space<vmem>>, vector<1x32x32xbf16>
    %8 = vector.shape_cast %7 : vector<1x32x32xbf16> to vector<32x32xbf16>
    %cst_8 = arith.constant dense<0.000000e+00> : vector<64x32xf32>
    %9 = tpu.matmul %6, %8, %cst_8 {dimension_numbers = #tpu.dot_dimension_numbers<[1], [0], [0], [1], [0, 0, 1, 1], [], []>} : vector<64x32xbf16>, vector<32x32xbf16>, vector<64x32xf32> -> vector<64x32xf32>
    %10 = arith.addf %5, %9 : vector<64x32xf32>
    %11 = vector.extract_strided_slice %4 {offsets = [64, 0], sizes = [64, 32], strides = [1, 1]} : vector<576x32xbf16> to vector<64x32xbf16>
    %c1 = arith.constant 1 : index
    %c0_9 = arith.constant 0 : index
    %c0_10 = arith.constant 0 : index
    %12 = vector.load %arg6[%c1, %c0_9, %c0_10] : memref<9x32x32xbf16, #tpu.memory_space<vmem>>, vector<1x32x32xbf16>
    %13 = vector.shape_cast %12 : vector<1x32x32xbf16> to vector<32x32xbf16>
    %cst_11 = arith.constant dense<0.000000e+00> : vector<64x32xf32>
    %14 = tpu.matmul %11, %13, %cst_11 {dimension_numbers = #tpu.dot_dimension_numbers<[1], [0], [0], [1], [0, 0, 1, 1], [], []>} : vector<64x32xbf16>, vector<32x32xbf16>, vector<64x32xf32> -> vector<64x32xf32>
    %15 = arith.addf %10, %14 : vector<64x32xf32>
    %16 = vector.extract_strided_slice %4 {offsets = [128, 0], sizes = [64, 32], strides = [1, 1]} : vector<576x32xbf16> to vector<64x32xbf16>
    %c2 = arith.constant 2 : index
    %c0_12 = arith.constant 0 : index
    %c0_13 = arith.constant 0 : index
    %17 = vector.load %arg6[%c2, %c0_12, %c0_13] : memref<9x32x32xbf16, #tpu.memory_space<vmem>>, vector<1x32x32xbf16>
    %18 = vector.shape_cast %17 : vector<1x32x32xbf16> to vector<32x32xbf16>
    %cst_14 = arith.constant dense<0.000000e+00> : vector<64x32xf32>
    %19 = tpu.matmul %16, %18, %cst_14 {dimension_numbers = #tpu.dot_dimension_numbers<[1], [0], [0], [1], [0, 0, 1, 1], [], []>} : vector<64x32xbf16>, vector<32x32xbf16>, vector<64x32xf32> -> vector<64x32xf32>
    %20 = arith.addf %15, %19 : vector<64x32xf32>
    %21 = vector.extract_strided_slice %4 {offsets = [192, 0], sizes = [64, 32], strides = [1, 1]} : vector<576x32xbf16> to vector<64x32xbf16>
    %c3 = arith.constant 3 : index
    %c0_15 = arith.constant 0 : index
    %c0_16 = arith.constant 0 : index
    %22 = vector.load %arg6[%c3, %c0_15, %c0_16] : memref<9x32x32xbf16, #tpu.memory_space<vmem>>, vector<1x32x32xbf16>
    %23 = vector.shape_cast %22 : vector<1x32x32xbf16> to vector<32x32xbf16>
    %cst_17 = arith.constant dense<0.000000e+00> : vector<64x32xf32>
    %24 = tpu.matmul %21, %23, %cst_17 {dimension_numbers = #tpu.dot_dimension_numbers<[1], [0], [0], [1], [0, 0, 1, 1], [], []>} : vector<64x32xbf16>, vector<32x32xbf16>, vector<64x32xf32> -> vector<64x32xf32>
    %25 = arith.addf %20, %24 : vector<64x32xf32>
    %26 = vector.extract_strided_slice %4 {offsets = [256, 0], sizes = [64, 32], strides = [1, 1]} : vector<576x32xbf16> to vector<64x32xbf16>
    %c4 = arith.constant 4 : index
    %c0_18 = arith.constant 0 : index
    %c0_19 = arith.constant 0 : index
    %27 = vector.load %arg6[%c4, %c0_18, %c0_19] : memref<9x32x32xbf16, #tpu.memory_space<vmem>>, vector<1x32x32xbf16>
    %28 = vector.shape_cast %27 : vector<1x32x32xbf16> to vector<32x32xbf16>
    %cst_20 = arith.constant dense<0.000000e+00> : vector<64x32xf32>
    %29 = tpu.matmul %26, %28, %cst_20 {dimension_numbers = #tpu.dot_dimension_numbers<[1], [0], [0], [1], [0, 0, 1, 1], [], []>} : vector<64x32xbf16>, vector<32x32xbf16>, vector<64x32xf32> -> vector<64x32xf32>
    %30 = arith.addf %25, %29 : vector<64x32xf32>
    %31 = vector.extract_strided_slice %4 {offsets = [320, 0], sizes = [64, 32], strides = [1, 1]} : vector<576x32xbf16> to vector<64x32xbf16>
    %c5 = arith.constant 5 : index
    %c0_21 = arith.constant 0 : index
    %c0_22 = arith.constant 0 : index
    %32 = vector.load %arg6[%c5, %c0_21, %c0_22] : memref<9x32x32xbf16, #tpu.memory_space<vmem>>, vector<1x32x32xbf16>
    %33 = vector.shape_cast %32 : vector<1x32x32xbf16> to vector<32x32xbf16>
    %cst_23 = arith.constant dense<0.000000e+00> : vector<64x32xf32>
    %34 = tpu.matmul %31, %33, %cst_23 {dimension_numbers = #tpu.dot_dimension_numbers<[1], [0], [0], [1], [0, 0, 1, 1], [], []>} : vector<64x32xbf16>, vector<32x32xbf16>, vector<64x32xf32> -> vector<64x32xf32>
    %35 = arith.addf %30, %34 : vector<64x32xf32>
    %36 = vector.extract_strided_slice %4 {offsets = [384, 0], sizes = [64, 32], strides = [1, 1]} : vector<576x32xbf16> to vector<64x32xbf16>
    %c6 = arith.constant 6 : index
    %c0_24 = arith.constant 0 : index
    %c0_25 = arith.constant 0 : index
    %37 = vector.load %arg6[%c6, %c0_24, %c0_25] : memref<9x32x32xbf16, #tpu.memory_space<vmem>>, vector<1x32x32xbf16>
    %38 = vector.shape_cast %37 : vector<1x32x32xbf16> to vector<32x32xbf16>
    %cst_26 = arith.constant dense<0.000000e+00> : vector<64x32xf32>
    %39 = tpu.matmul %36, %38, %cst_26 {dimension_numbers = #tpu.dot_dimension_numbers<[1], [0], [0], [1], [0, 0, 1, 1], [], []>} : vector<64x32xbf16>, vector<32x32xbf16>, vector<64x32xf32> -> vector<64x32xf32>
    %40 = arith.addf %35, %39 : vector<64x32xf32>
    %41 = vector.extract_strided_slice %4 {offsets = [448, 0], sizes = [64, 32], strides = [1, 1]} : vector<576x32xbf16> to vector<64x32xbf16>
    %c7 = arith.constant 7 : index
    %c0_27 = arith.constant 0 : index
    %c0_28 = arith.constant 0 : index
    %42 = vector.load %arg6[%c7, %c0_27, %c0_28] : memref<9x32x32xbf16, #tpu.memory_space<vmem>>, vector<1x32x32xbf16>
    %43 = vector.shape_cast %42 : vector<1x32x32xbf16> to vector<32x32xbf16>
    %cst_29 = arith.constant dense<0.000000e+00> : vector<64x32xf32>
    %44 = tpu.matmul %41, %43, %cst_29 {dimension_numbers = #tpu.dot_dimension_numbers<[1], [0], [0], [1], [0, 0, 1, 1], [], []>} : vector<64x32xbf16>, vector<32x32xbf16>, vector<64x32xf32> -> vector<64x32xf32>
    %45 = arith.addf %40, %44 : vector<64x32xf32>
    %46 = vector.extract_strided_slice %4 {offsets = [512, 0], sizes = [64, 32], strides = [1, 1]} : vector<576x32xbf16> to vector<64x32xbf16>
    %c8 = arith.constant 8 : index
    %c0_30 = arith.constant 0 : index
    %c0_31 = arith.constant 0 : index
    %47 = vector.load %arg6[%c8, %c0_30, %c0_31] : memref<9x32x32xbf16, #tpu.memory_space<vmem>>, vector<1x32x32xbf16>
    %48 = vector.shape_cast %47 : vector<1x32x32xbf16> to vector<32x32xbf16>
    %cst_32 = arith.constant dense<0.000000e+00> : vector<64x32xf32>
    %49 = tpu.matmul %46, %48, %cst_32 {dimension_numbers = #tpu.dot_dimension_numbers<[1], [0], [0], [1], [0, 0, 1, 1], [], []>} : vector<64x32xbf16>, vector<32x32xbf16>, vector<64x32xf32> -> vector<64x32xf32>
    %50 = arith.addf %45, %49 : vector<64x32xf32>
    %c0_33 = arith.constant 0 : index
    %c0_34 = arith.constant 0 : index
    %51 = vector.load %arg7[%c0_33, %c0_34] : memref<1x32xf32, #tpu.memory_space<vmem>>, vector<1x32xf32>
    %52 = vector.broadcast %51 : vector<1x32xf32> to vector<64x32xf32>
    %53 = arith.addf %50, %52 : vector<64x32xf32>
    %cst_35 = arith.constant dense<0.000000e+00> : vector<32xf32>
    %54 = vector.multi_reduction <add>, %53, %cst_35 [0] : vector<64x32xf32> to vector<32xf32>
    %55 = vector.shape_cast %54 : vector<32xf32> to vector<1x32xf32>
    %56 = arith.mulf %53, %53 : vector<64x32xf32>
    %cst_36 = arith.constant dense<0.000000e+00> : vector<32xf32>
    %57 = vector.multi_reduction <add>, %56, %cst_36 [0] : vector<64x32xf32> to vector<32xf32>
    %58 = vector.shape_cast %57 : vector<32xf32> to vector<1x32xf32>
    %59 = tpu.concatenate %55, %58 in 0 : vector<1x32xf32>, vector<1x32xf32> -> vector<2x32xf32>
    %c0_37 = arith.constant 0 : index
    %c0_38 = arith.constant 0 : index
    %60 = vector.load %arg8[%c0_37, %c0_38] : memref<32x32xf32, #tpu.memory_space<vmem>>, vector<32x32xf32>
    %cst_39 = arith.constant dense<0.000000e+00> : vector<2x32xf32>
    %61 = tpu.matmul %59, %60, %cst_39 {dimension_numbers = #tpu.dot_dimension_numbers<[1], [0], [0], [1], [0, 0, 1, 1], [], []>} : vector<2x32xf32>, vector<32x32xf32>, vector<2x32xf32> -> vector<2x32xf32>
    %cst_40 = arith.constant 7.812500e-03 : f32
    %62 = vector.broadcast %cst_40 : f32 to vector<2x32xf32>
    %63 = arith.mulf %61, %62 : vector<2x32xf32>
    %64 = vector.extract_strided_slice %63 {offsets = [0, 0], sizes = [1, 32], strides = [1, 1]} : vector<2x32xf32> to vector<1x32xf32>
    %65 = vector.extract_strided_slice %63 {offsets = [1, 0], sizes = [1, 32], strides = [1, 1]} : vector<2x32xf32> to vector<1x32xf32>
    %66 = arith.mulf %64, %64 : vector<1x32xf32>
    %67 = arith.subf %65, %66 : vector<1x32xf32>
    %cst_41 = arith.constant 0.000000e+00 : f32
    %68 = vector.broadcast %cst_41 : f32 to vector<1x32xf32>
    %69 = arith.maximumf %67, %68 : vector<1x32xf32>
    %70 = vector.broadcast %64 : vector<1x32xf32> to vector<64x32xf32>
    %71 = arith.subf %53, %70 : vector<64x32xf32>
    %cst_42 = arith.constant 9.99999974E-6 : f32
    %72 = vector.broadcast %cst_42 : f32 to vector<1x32xf32>
    %73 = arith.addf %69, %72 : vector<1x32xf32>
    %74 = math.rsqrt %73 : vector<1x32xf32>
    %75 = vector.broadcast %74 : vector<1x32xf32> to vector<64x32xf32>
    %76 = arith.mulf %71, %75 : vector<64x32xf32>
    %c0_43 = arith.constant 0 : index
    %c0_44 = arith.constant 0 : index
    %77 = vector.load %arg9[%c0_43, %c0_44] : memref<1x32xf32, #tpu.memory_space<vmem>>, vector<1x32xf32>
    %78 = vector.broadcast %77 : vector<1x32xf32> to vector<64x32xf32>
    %79 = arith.mulf %76, %78 : vector<64x32xf32>
    %c0_45 = arith.constant 0 : index
    %c0_46 = arith.constant 0 : index
    %80 = vector.load %arg10[%c0_45, %c0_46] : memref<1x32xf32, #tpu.memory_space<vmem>>, vector<1x32xf32>
    %81 = vector.broadcast %80 : vector<1x32xf32> to vector<64x32xf32>
    %82 = arith.addf %79, %81 : vector<64x32xf32>
    %cst_47 = arith.constant 0.000000e+00 : f32
    %83 = vector.broadcast %cst_47 : f32 to vector<64x32xf32>
    %84 = arith.maximumf %82, %83 : vector<64x32xf32>
    %85 = arith.truncf %84 : vector<64x32xf32> to vector<64x32xbf16>
    %c0_48 = arith.constant 0 : index
    %c0_49 = arith.constant 0 : index
    %86 = vector.load %arg5[%c0_48, %c0_49] : memref<144x64xbf16, #tpu.memory_space<vmem>>, vector<144x64xbf16>
    %cst_50 = arith.constant dense<0.000000e+00> : vector<144x32xf32>
    %87 = tpu.matmul %86, %85, %cst_50 {dimension_numbers = #tpu.dot_dimension_numbers<[1], [0], [0], [1], [0, 0, 1, 1], [], []>} : vector<144x64xbf16>, vector<64x32xbf16>, vector<144x32xf32> -> vector<144x32xf32>
    %88 = arith.truncf %87 : vector<144x32xf32> to vector<144x32xbf16>
    %cst_51 = arith.constant 0.000000e+00 : f32
    %89 = vector.broadcast %cst_51 : f32 to vector<16x32xf32>
    %90 = vector.extract_strided_slice %88 {offsets = [0, 0], sizes = [16, 32], strides = [1, 1]} : vector<144x32xbf16> to vector<16x32xbf16>
    %c0_52 = arith.constant 0 : index
    %c0_53 = arith.constant 0 : index
    %c0_54 = arith.constant 0 : index
    %91 = vector.load %arg11[%c0_52, %c0_53, %c0_54] : memref<9x32x32xbf16, #tpu.memory_space<vmem>>, vector<1x32x32xbf16>
    %92 = vector.shape_cast %91 : vector<1x32x32xbf16> to vector<32x32xbf16>
    %cst_55 = arith.constant dense<0.000000e+00> : vector<16x32xf32>
    %93 = tpu.matmul %90, %92, %cst_55 {dimension_numbers = #tpu.dot_dimension_numbers<[1], [0], [0], [1], [0, 0, 1, 1], [], []>} : vector<16x32xbf16>, vector<32x32xbf16>, vector<16x32xf32> -> vector<16x32xf32>
    %94 = arith.addf %89, %93 : vector<16x32xf32>
    %95 = vector.extract_strided_slice %88 {offsets = [16, 0], sizes = [16, 32], strides = [1, 1]} : vector<144x32xbf16> to vector<16x32xbf16>
    %c1_56 = arith.constant 1 : index
    %c0_57 = arith.constant 0 : index
    %c0_58 = arith.constant 0 : index
    %96 = vector.load %arg11[%c1_56, %c0_57, %c0_58] : memref<9x32x32xbf16, #tpu.memory_space<vmem>>, vector<1x32x32xbf16>
    %97 = vector.shape_cast %96 : vector<1x32x32xbf16> to vector<32x32xbf16>
    %cst_59 = arith.constant dense<0.000000e+00> : vector<16x32xf32>
    %98 = tpu.matmul %95, %97, %cst_59 {dimension_numbers = #tpu.dot_dimension_numbers<[1], [0], [0], [1], [0, 0, 1, 1], [], []>} : vector<16x32xbf16>, vector<32x32xbf16>, vector<16x32xf32> -> vector<16x32xf32>
    %99 = arith.addf %94, %98 : vector<16x32xf32>
    %100 = vector.extract_strided_slice %88 {offsets = [32, 0], sizes = [16, 32], strides = [1, 1]} : vector<144x32xbf16> to vector<16x32xbf16>
    %c2_60 = arith.constant 2 : index
    %c0_61 = arith.constant 0 : index
    %c0_62 = arith.constant 0 : index
    %101 = vector.load %arg11[%c2_60, %c0_61, %c0_62] : memref<9x32x32xbf16, #tpu.memory_space<vmem>>, vector<1x32x32xbf16>
    %102 = vector.shape_cast %101 : vector<1x32x32xbf16> to vector<32x32xbf16>
    %cst_63 = arith.constant dense<0.000000e+00> : vector<16x32xf32>
    %103 = tpu.matmul %100, %102, %cst_63 {dimension_numbers = #tpu.dot_dimension_numbers<[1], [0], [0], [1], [0, 0, 1, 1], [], []>} : vector<16x32xbf16>, vector<32x32xbf16>, vector<16x32xf32> -> vector<16x32xf32>
    %104 = arith.addf %99, %103 : vector<16x32xf32>
    %105 = vector.extract_strided_slice %88 {offsets = [48, 0], sizes = [16, 32], strides = [1, 1]} : vector<144x32xbf16> to vector<16x32xbf16>
    %c3_64 = arith.constant 3 : index
    %c0_65 = arith.constant 0 : index
    %c0_66 = arith.constant 0 : index
    %106 = vector.load %arg11[%c3_64, %c0_65, %c0_66] : memref<9x32x32xbf16, #tpu.memory_space<vmem>>, vector<1x32x32xbf16>
    %107 = vector.shape_cast %106 : vector<1x32x32xbf16> to vector<32x32xbf16>
    %cst_67 = arith.constant dense<0.000000e+00> : vector<16x32xf32>
    %108 = tpu.matmul %105, %107, %cst_67 {dimension_numbers = #tpu.dot_dimension_numbers<[1], [0], [0], [1], [0, 0, 1, 1], [], []>} : vector<16x32xbf16>, vector<32x32xbf16>, vector<16x32xf32> -> vector<16x32xf32>
    %109 = arith.addf %104, %108 : vector<16x32xf32>
    %110 = vector.extract_strided_slice %88 {offsets = [64, 0], sizes = [16, 32], strides = [1, 1]} : vector<144x32xbf16> to vector<16x32xbf16>
    %c4_68 = arith.constant 4 : index
    %c0_69 = arith.constant 0 : index
    %c0_70 = arith.constant 0 : index
    %111 = vector.load %arg11[%c4_68, %c0_69, %c0_70] : memref<9x32x32xbf16, #tpu.memory_space<vmem>>, vector<1x32x32xbf16>
    %112 = vector.shape_cast %111 : vector<1x32x32xbf16> to vector<32x32xbf16>
    %cst_71 = arith.constant dense<0.000000e+00> : vector<16x32xf32>
    %113 = tpu.matmul %110, %112, %cst_71 {dimension_numbers = #tpu.dot_dimension_numbers<[1], [0], [0], [1], [0, 0, 1, 1], [], []>} : vector<16x32xbf16>, vector<32x32xbf16>, vector<16x32xf32> -> vector<16x32xf32>
    %114 = arith.addf %109, %113 : vector<16x32xf32>
    %115 = vector.extract_strided_slice %88 {offsets = [80, 0], sizes = [16, 32], strides = [1, 1]} : vector<144x32xbf16> to vector<16x32xbf16>
    %c5_72 = arith.constant 5 : index
    %c0_73 = arith.constant 0 : index
    %c0_74 = arith.constant 0 : index
    %116 = vector.load %arg11[%c5_72, %c0_73, %c0_74] : memref<9x32x32xbf16, #tpu.memory_space<vmem>>, vector<1x32x32xbf16>
    %117 = vector.shape_cast %116 : vector<1x32x32xbf16> to vector<32x32xbf16>
    %cst_75 = arith.constant dense<0.000000e+00> : vector<16x32xf32>
    %118 = tpu.matmul %115, %117, %cst_75 {dimension_numbers = #tpu.dot_dimension_numbers<[1], [0], [0], [1], [0, 0, 1, 1], [], []>} : vector<16x32xbf16>, vector<32x32xbf16>, vector<16x32xf32> -> vector<16x32xf32>
    %119 = arith.addf %114, %118 : vector<16x32xf32>
    %120 = vector.extract_strided_slice %88 {offsets = [96, 0], sizes = [16, 32], strides = [1, 1]} : vector<144x32xbf16> to vector<16x32xbf16>
    %c6_76 = arith.constant 6 : index
    %c0_77 = arith.constant 0 : index
    %c0_78 = arith.constant 0 : index
    %121 = vector.load %arg11[%c6_76, %c0_77, %c0_78] : memref<9x32x32xbf16, #tpu.memory_space<vmem>>, vector<1x32x32xbf16>
    %122 = vector.shape_cast %121 : vector<1x32x32xbf16> to vector<32x32xbf16>
    %cst_79 = arith.constant dense<0.000000e+00> : vector<16x32xf32>
    %123 = tpu.matmul %120, %122, %cst_79 {dimension_numbers = #tpu.dot_dimension_numbers<[1], [0], [0], [1], [0, 0, 1, 1], [], []>} : vector<16x32xbf16>, vector<32x32xbf16>, vector<16x32xf32> -> vector<16x32xf32>
    %124 = arith.addf %119, %123 : vector<16x32xf32>
    %125 = vector.extract_strided_slice %88 {offsets = [112, 0], sizes = [16, 32], strides = [1, 1]} : vector<144x32xbf16> to vector<16x32xbf16>
    %c7_80 = arith.constant 7 : index
    %c0_81 = arith.constant 0 : index
    %c0_82 = arith.constant 0 : index
    %126 = vector.load %arg11[%c7_80, %c0_81, %c0_82] : memref<9x32x32xbf16, #tpu.memory_space<vmem>>, vector<1x32x32xbf16>
    %127 = vector.shape_cast %126 : vector<1x32x32xbf16> to vector<32x32xbf16>
    %cst_83 = arith.constant dense<0.000000e+00> : vector<16x32xf32>
    %128 = tpu.matmul %125, %127, %cst_83 {dimension_numbers = #tpu.dot_dimension_numbers<[1], [0], [0], [1], [0, 0, 1, 1], [], []>} : vector<16x32xbf16>, vector<32x32xbf16>, vector<16x32xf32> -> vector<16x32xf32>
    %129 = arith.addf %124, %128 : vector<16x32xf32>
    %130 = vector.extract_strided_slice %88 {offsets = [128, 0], sizes = [16, 32], strides = [1, 1]} : vector<144x32xbf16> to vector<16x32xbf16>
    %c8_84 = arith.constant 8 : index
    %c0_85 = arith.constant 0 : index
    %c0_86 = arith.constant 0 : index
    %131 = vector.load %arg11[%c8_84, %c0_85, %c0_86] : memref<9x32x32xbf16, #tpu.memory_space<vmem>>, vector<1x32x32xbf16>
    %132 = vector.shape_cast %131 : vector<1x32x32xbf16> to vector<32x32xbf16>
    %cst_87 = arith.constant dense<0.000000e+00> : vector<16x32xf32>
    %133 = tpu.matmul %130, %132, %cst_87 {dimension_numbers = #tpu.dot_dimension_numbers<[1], [0], [0], [1], [0, 0, 1, 1], [], []>} : vector<16x32xbf16>, vector<32x32xbf16>, vector<16x32xf32> -> vector<16x32xf32>
    %134 = arith.addf %129, %133 : vector<16x32xf32>
    %c0_88 = arith.constant 0 : index
    %c0_89 = arith.constant 0 : index
    %135 = vector.load %arg12[%c0_88, %c0_89] : memref<1x32xf32, #tpu.memory_space<vmem>>, vector<1x32xf32>
    %136 = vector.broadcast %135 : vector<1x32xf32> to vector<16x32xf32>
    %137 = arith.addf %134, %136 : vector<16x32xf32>
    %c0_90 = arith.constant 0 : index
    %c0_91 = arith.constant 0 : index
    %c0_92 = arith.constant 0 : index
    %138 = vector.load %arg2[%c0_90, %c0_91, %c0_92] : memref<1x64x64xbf16, #tpu.memory_space<vmem>>, vector<1x64x64xbf16>
    %139 = vector.shape_cast %138 : vector<1x64x64xbf16> to vector<64x64xbf16>
    %c0_93 = arith.constant 0 : index
    %c0_94 = arith.constant 0 : index
    %140 = vector.load %arg5[%c0_93, %c0_94] : memref<144x64xbf16, #tpu.memory_space<vmem>>, vector<144x64xbf16>
    %cst_95 = arith.constant dense<0.000000e+00> : vector<144x64xf32>
    %141 = tpu.matmul %140, %139, %cst_95 {dimension_numbers = #tpu.dot_dimension_numbers<[1], [0], [0], [1], [0, 0, 1, 1], [], []>} : vector<144x64xbf16>, vector<64x64xbf16>, vector<144x64xf32> -> vector<144x64xf32>
    %142 = arith.truncf %141 : vector<144x64xf32> to vector<144x64xbf16>
    %cst_96 = arith.constant 0.000000e+00 : f32
    %143 = vector.broadcast %cst_96 : f32 to vector<16x64xf32>
    %144 = vector.extract_strided_slice %142 {offsets = [0, 0], sizes = [16, 64], strides = [1, 1]} : vector<144x64xbf16> to vector<16x64xbf16>
    %c0_97 = arith.constant 0 : index
    %c0_98 = arith.constant 0 : index
    %c0_99 = arith.constant 0 : index
    %145 = vector.load %arg13[%c0_97, %c0_98, %c0_99] : memref<9x64x64xbf16, #tpu.memory_space<vmem>>, vector<1x64x64xbf16>
    %146 = vector.shape_cast %145 : vector<1x64x64xbf16> to vector<64x64xbf16>
    %cst_100 = arith.constant dense<0.000000e+00> : vector<16x64xf32>
    %147 = tpu.matmul %144, %146, %cst_100 {dimension_numbers = #tpu.dot_dimension_numbers<[1], [0], [0], [1], [0, 0, 1, 1], [], []>} : vector<16x64xbf16>, vector<64x64xbf16>, vector<16x64xf32> -> vector<16x64xf32>
    %148 = arith.addf %143, %147 : vector<16x64xf32>
    %149 = vector.extract_strided_slice %142 {offsets = [16, 0], sizes = [16, 64], strides = [1, 1]} : vector<144x64xbf16> to vector<16x64xbf16>
    %c1_101 = arith.constant 1 : index
    %c0_102 = arith.constant 0 : index
    %c0_103 = arith.constant 0 : index
    %150 = vector.load %arg13[%c1_101, %c0_102, %c0_103] : memref<9x64x64xbf16, #tpu.memory_space<vmem>>, vector<1x64x64xbf16>
    %151 = vector.shape_cast %150 : vector<1x64x64xbf16> to vector<64x64xbf16>
    %cst_104 = arith.constant dense<0.000000e+00> : vector<16x64xf32>
    %152 = tpu.matmul %149, %151, %cst_104 {dimension_numbers = #tpu.dot_dimension_numbers<[1], [0], [0], [1], [0, 0, 1, 1], [], []>} : vector<16x64xbf16>, vector<64x64xbf16>, vector<16x64xf32> -> vector<16x64xf32>
    %153 = arith.addf %148, %152 : vector<16x64xf32>
    %154 = vector.extract_strided_slice %142 {offsets = [32, 0], sizes = [16, 64], strides = [1, 1]} : vector<144x64xbf16> to vector<16x64xbf16>
    %c2_105 = arith.constant 2 : index
    %c0_106 = arith.constant 0 : index
    %c0_107 = arith.constant 0 : index
    %155 = vector.load %arg13[%c2_105, %c0_106, %c0_107] : memref<9x64x64xbf16, #tpu.memory_space<vmem>>, vector<1x64x64xbf16>
    %156 = vector.shape_cast %155 : vector<1x64x64xbf16> to vector<64x64xbf16>
    %cst_108 = arith.constant dense<0.000000e+00> : vector<16x64xf32>
    %157 = tpu.matmul %154, %156, %cst_108 {dimension_numbers = #tpu.dot_dimension_numbers<[1], [0], [0], [1], [0, 0, 1, 1], [], []>} : vector<16x64xbf16>, vector<64x64xbf16>, vector<16x64xf32> -> vector<16x64xf32>
    %158 = arith.addf %153, %157 : vector<16x64xf32>
    %159 = vector.extract_strided_slice %142 {offsets = [48, 0], sizes = [16, 64], strides = [1, 1]} : vector<144x64xbf16> to vector<16x64xbf16>
    %c3_109 = arith.constant 3 : index
    %c0_110 = arith.constant 0 : index
    %c0_111 = arith.constant 0 : index
    %160 = vector.load %arg13[%c3_109, %c0_110, %c0_111] : memref<9x64x64xbf16, #tpu.memory_space<vmem>>, vector<1x64x64xbf16>
    %161 = vector.shape_cast %160 : vector<1x64x64xbf16> to vector<64x64xbf16>
    %cst_112 = arith.constant dense<0.000000e+00> : vector<16x64xf32>
    %162 = tpu.matmul %159, %161, %cst_112 {dimension_numbers = #tpu.dot_dimension_numbers<[1], [0], [0], [1], [0, 0, 1, 1], [], []>} : vector<16x64xbf16>, vector<64x64xbf16>, vector<16x64xf32> -> vector<16x64xf32>
    %163 = arith.addf %158, %162 : vector<16x64xf32>
    %164 = vector.extract_strided_slice %142 {offsets = [64, 0], sizes = [16, 64], strides = [1, 1]} : vector<144x64xbf16> to vector<16x64xbf16>
    %c4_113 = arith.constant 4 : index
    %c0_114 = arith.constant 0 : index
    %c0_115 = arith.constant 0 : index
    %165 = vector.load %arg13[%c4_113, %c0_114, %c0_115] : memref<9x64x64xbf16, #tpu.memory_space<vmem>>, vector<1x64x64xbf16>
    %166 = vector.shape_cast %165 : vector<1x64x64xbf16> to vector<64x64xbf16>
    %cst_116 = arith.constant dense<0.000000e+00> : vector<16x64xf32>
    %167 = tpu.matmul %164, %166, %cst_116 {dimension_numbers = #tpu.dot_dimension_numbers<[1], [0], [0], [1], [0, 0, 1, 1], [], []>} : vector<16x64xbf16>, vector<64x64xbf16>, vector<16x64xf32> -> vector<16x64xf32>
    %168 = arith.addf %163, %167 : vector<16x64xf32>
    %169 = vector.extract_strided_slice %142 {offsets = [80, 0], sizes = [16, 64], strides = [1, 1]} : vector<144x64xbf16> to vector<16x64xbf16>
    %c5_117 = arith.constant 5 : index
    %c0_118 = arith.constant 0 : index
    %c0_119 = arith.constant 0 : index
    %170 = vector.load %arg13[%c5_117, %c0_118, %c0_119] : memref<9x64x64xbf16, #tpu.memory_space<vmem>>, vector<1x64x64xbf16>
    %171 = vector.shape_cast %170 : vector<1x64x64xbf16> to vector<64x64xbf16>
    %cst_120 = arith.constant dense<0.000000e+00> : vector<16x64xf32>
    %172 = tpu.matmul %169, %171, %cst_120 {dimension_numbers = #tpu.dot_dimension_numbers<[1], [0], [0], [1], [0, 0, 1, 1], [], []>} : vector<16x64xbf16>, vector<64x64xbf16>, vector<16x64xf32> -> vector<16x64xf32>
    %173 = arith.addf %168, %172 : vector<16x64xf32>
    %174 = vector.extract_strided_slice %142 {offsets = [96, 0], sizes = [16, 64], strides = [1, 1]} : vector<144x64xbf16> to vector<16x64xbf16>
    %c6_121 = arith.constant 6 : index
    %c0_122 = arith.constant 0 : index
    %c0_123 = arith.constant 0 : index
    %175 = vector.load %arg13[%c6_121, %c0_122, %c0_123] : memref<9x64x64xbf16, #tpu.memory_space<vmem>>, vector<1x64x64xbf16>
    %176 = vector.shape_cast %175 : vector<1x64x64xbf16> to vector<64x64xbf16>
    %cst_124 = arith.constant dense<0.000000e+00> : vector<16x64xf32>
    %177 = tpu.matmul %174, %176, %cst_124 {dimension_numbers = #tpu.dot_dimension_numbers<[1], [0], [0], [1], [0, 0, 1, 1], [], []>} : vector<16x64xbf16>, vector<64x64xbf16>, vector<16x64xf32> -> vector<16x64xf32>
    %178 = arith.addf %173, %177 : vector<16x64xf32>
    %179 = vector.extract_strided_slice %142 {offsets = [112, 0], sizes = [16, 64], strides = [1, 1]} : vector<144x64xbf16> to vector<16x64xbf16>
    %c7_125 = arith.constant 7 : index
    %c0_126 = arith.constant 0 : index
    %c0_127 = arith.constant 0 : index
    %180 = vector.load %arg13[%c7_125, %c0_126, %c0_127] : memref<9x64x64xbf16, #tpu.memory_space<vmem>>, vector<1x64x64xbf16>
    %181 = vector.shape_cast %180 : vector<1x64x64xbf16> to vector<64x64xbf16>
    %cst_128 = arith.constant dense<0.000000e+00> : vector<16x64xf32>
    %182 = tpu.matmul %179, %181, %cst_128 {dimension_numbers = #tpu.dot_dimension_numbers<[1], [0], [0], [1], [0, 0, 1, 1], [], []>} : vector<16x64xbf16>, vector<64x64xbf16>, vector<16x64xf32> -> vector<16x64xf32>
    %183 = arith.addf %178, %182 : vector<16x64xf32>
    %184 = vector.extract_strided_slice %142 {offsets = [128, 0], sizes = [16, 64], strides = [1, 1]} : vector<144x64xbf16> to vector<16x64xbf16>
    %c8_129 = arith.constant 8 : index
    %c0_130 = arith.constant 0 : index
    %c0_131 = arith.constant 0 : index
    %185 = vector.load %arg13[%c8_129, %c0_130, %c0_131] : memref<9x64x64xbf16, #tpu.memory_space<vmem>>, vector<1x64x64xbf16>
    %186 = vector.shape_cast %185 : vector<1x64x64xbf16> to vector<64x64xbf16>
    %cst_132 = arith.constant dense<0.000000e+00> : vector<16x64xf32>
    %187 = tpu.matmul %184, %186, %cst_132 {dimension_numbers = #tpu.dot_dimension_numbers<[1], [0], [0], [1], [0, 0, 1, 1], [], []>} : vector<16x64xbf16>, vector<64x64xbf16>, vector<16x64xf32> -> vector<16x64xf32>
    %188 = arith.addf %183, %187 : vector<16x64xf32>
    %c0_133 = arith.constant 0 : index
    %c0_134 = arith.constant 0 : index
    %189 = vector.load %arg14[%c0_133, %c0_134] : memref<1x64xf32, #tpu.memory_space<vmem>>, vector<1x64xf32>
    %190 = vector.broadcast %189 : vector<1x64xf32> to vector<16x64xf32>
    %191 = arith.addf %188, %190 : vector<16x64xf32>
    %c0_135 = arith.constant 0 : index
    %c0_136 = arith.constant 0 : index
    %c0_137 = arith.constant 0 : index
    %192 = vector.load %arg3[%c0_135, %c0_136, %c0_137] : memref<1x16x128xbf16, #tpu.memory_space<vmem>>, vector<1x16x128xbf16>
    %193 = vector.shape_cast %192 : vector<1x16x128xbf16> to vector<16x128xbf16>
    %194 = arith.truncf %137 : vector<16x32xf32> to vector<16x32xbf16>
    %c0_138 = arith.constant 0 : index
    %c0_139 = arith.constant 0 : index
    %195 = vector.load %arg15[%c0_138, %c0_139] : memref<224x128xbf16, #tpu.memory_space<vmem>>, vector<32x128xbf16>
    %cst_140 = arith.constant dense<0.000000e+00> : vector<16x128xf32>
    %196 = tpu.matmul %194, %195, %cst_140 {dimension_numbers = #tpu.dot_dimension_numbers<[1], [0], [0], [1], [0, 0, 1, 1], [], []>} : vector<16x32xbf16>, vector<32x128xbf16>, vector<16x128xf32> -> vector<16x128xf32>
    %197 = arith.truncf %191 : vector<16x64xf32> to vector<16x64xbf16>
    %c32 = arith.constant 32 : index
    %c0_141 = arith.constant 0 : index
    %198 = vector.load %arg15[%c32, %c0_141] : memref<224x128xbf16, #tpu.memory_space<vmem>>, vector<64x128xbf16>
    %cst_142 = arith.constant dense<0.000000e+00> : vector<16x128xf32>
    %199 = tpu.matmul %197, %198, %cst_142 {dimension_numbers = #tpu.dot_dimension_numbers<[1], [0], [0], [1], [0, 0, 1, 1], [], []>} : vector<16x64xbf16>, vector<64x128xbf16>, vector<16x128xf32> -> vector<16x128xf32>
    %200 = arith.addf %196, %199 : vector<16x128xf32>
    %c96 = arith.constant 96 : index
    %c0_143 = arith.constant 0 : index
    %201 = vector.load %arg15[%c96, %c0_143] : memref<224x128xbf16, #tpu.memory_space<vmem>>, vector<128x128xbf16>
    %cst_144 = arith.constant dense<0.000000e+00> : vector<16x128xf32>
    %202 = tpu.matmul %193, %201, %cst_144 {dimension_numbers = #tpu.dot_dimension_numbers<[1], [0], [0], [1], [0, 0, 1, 1], [], []>} : vector<16x128xbf16>, vector<128x128xbf16>, vector<16x128xf32> -> vector<16x128xf32>
    %203 = arith.addf %200, %202 : vector<16x128xf32>
    %c0_145 = arith.constant 0 : index
    %c0_146 = arith.constant 0 : index
    %204 = vector.load %arg16[%c0_145, %c0_146] : memref<1x128xf32, #tpu.memory_space<vmem>>, vector<1x128xf32>
    %205 = vector.broadcast %204 : vector<1x128xf32> to vector<16x128xf32>
    %206 = arith.addf %203, %205 : vector<16x128xf32>
    %cst_147 = arith.constant dense<0.000000e+00> : vector<128xf32>
    %207 = vector.multi_reduction <add>, %206, %cst_147 [0] : vector<16x128xf32> to vector<128xf32>
    %208 = vector.shape_cast %207 : vector<128xf32> to vector<1x128xf32>
    %209 = arith.mulf %206, %206 : vector<16x128xf32>
    %cst_148 = arith.constant dense<0.000000e+00> : vector<128xf32>
    %210 = vector.multi_reduction <add>, %209, %cst_148 [0] : vector<16x128xf32> to vector<128xf32>
    %211 = vector.shape_cast %210 : vector<128xf32> to vector<1x128xf32>
    %212 = tpu.concatenate %208, %211 in 0 : vector<1x128xf32>, vector<1x128xf32> -> vector<2x128xf32>
    %c0_149 = arith.constant 0 : index
    %c0_150 = arith.constant 0 : index
    %213 = vector.load %arg17[%c0_149, %c0_150] : memref<128x128xf32, #tpu.memory_space<vmem>>, vector<128x128xf32>
    %cst_151 = arith.constant dense<0.000000e+00> : vector<2x128xf32>
    %214 = tpu.matmul %212, %213, %cst_151 {dimension_numbers = #tpu.dot_dimension_numbers<[1], [0], [0], [1], [0, 0, 1, 1], [], []>} : vector<2x128xf32>, vector<128x128xf32>, vector<2x128xf32> -> vector<2x128xf32>
    %cst_152 = arith.constant 0.010416667 : f32
    %215 = vector.broadcast %cst_152 : f32 to vector<2x128xf32>
    %216 = arith.mulf %214, %215 : vector<2x128xf32>
    %217 = vector.extract_strided_slice %216 {offsets = [0, 0], sizes = [1, 128], strides = [1, 1]} : vector<2x128xf32> to vector<1x128xf32>
    %218 = vector.extract_strided_slice %216 {offsets = [1, 0], sizes = [1, 128], strides = [1, 1]} : vector<2x128xf32> to vector<1x128xf32>
    %219 = arith.mulf %217, %217 : vector<1x128xf32>
    %220 = arith.subf %218, %219 : vector<1x128xf32>
    %cst_153 = arith.constant 0.000000e+00 : f32
    %221 = vector.broadcast %cst_153 : f32 to vector<1x128xf32>
    %222 = arith.maximumf %220, %221 : vector<1x128xf32>
    %223 = vector.broadcast %217 : vector<1x128xf32> to vector<16x128xf32>
    %224 = arith.subf %206, %223 : vector<16x128xf32>
    %cst_154 = arith.constant 9.99999974E-6 : f32
    %225 = vector.broadcast %cst_154 : f32 to vector<1x128xf32>
    %226 = arith.addf %222, %225 : vector<1x128xf32>
    %227 = math.rsqrt %226 : vector<1x128xf32>
    %228 = vector.broadcast %227 : vector<1x128xf32> to vector<16x128xf32>
    %229 = arith.mulf %224, %228 : vector<16x128xf32>
    %c0_155 = arith.constant 0 : index
    %c0_156 = arith.constant 0 : index
    %230 = vector.load %arg18[%c0_155, %c0_156] : memref<1x128xf32, #tpu.memory_space<vmem>>, vector<1x128xf32>
    %231 = vector.broadcast %230 : vector<1x128xf32> to vector<16x128xf32>
    %232 = arith.mulf %229, %231 : vector<16x128xf32>
    %c0_157 = arith.constant 0 : index
    %c0_158 = arith.constant 0 : index
    %233 = vector.load %arg19[%c0_157, %c0_158] : memref<1x128xf32, #tpu.memory_space<vmem>>, vector<1x128xf32>
    %234 = vector.broadcast %233 : vector<1x128xf32> to vector<16x128xf32>
    %235 = arith.addf %232, %234 : vector<16x128xf32>
    %cst_159 = arith.constant 0.000000e+00 : f32
    %236 = vector.broadcast %cst_159 : f32 to vector<16x128xf32>
    %237 = arith.maximumf %235, %236 : vector<16x128xf32>
    %c0_160 = arith.constant 0 : index
    %c0_161 = arith.constant 0 : index
    %c0_162 = arith.constant 0 : index
    %238 = vector.load %arg20[%c0_160, %c0_161, %c0_162] : memref<1x16x128xf32, #tpu.memory_space<vmem>>, vector<1x16x128xf32>
    %239 = vector.shape_cast %238 : vector<1x16x128xf32> to vector<16x128xf32>
    %240 = vector.shape_cast %237 : vector<16x128xf32> to vector<1x16x128xf32>
    tpu.vector_store %arg20[%c0_160, %c0_161, %c0_162], %240 {strides = array<i32>} : memref<1x16x128xf32, #tpu.memory_space<vmem>>, vector<1x16x128xf32>,
    return
  }
  func.func @transform_0(%arg0: i32) -> (i32, i32, i32) {
    %c0_i32 = arith.constant 0 : i32
    %c0_i32_0 = arith.constant 0 : i32
    %c0_i32_1 = arith.constant 0 : i32
    return %arg0, %c0_i32, %c0_i32_0 : i32, i32, i32
  }
  func.func @transform_1(%arg0: i32) -> (i32, i32, i32) {
    %c0_i32 = arith.constant 0 : i32
    %c0_i32_0 = arith.constant 0 : i32
    %c0_i32_1 = arith.constant 0 : i32
    return %arg0, %c0_i32, %c0_i32_0 : i32, i32, i32
  }
  func.func @transform_2(%arg0: i32) -> (i32, i32, i32) {
    %c0_i32 = arith.constant 0 : i32
    %c0_i32_0 = arith.constant 0 : i32
    %c0_i32_1 = arith.constant 0 : i32
    return %arg0, %c0_i32, %c0_i32_0 : i32, i32, i32
  }
  func.func @transform_3(%arg0: i32) -> (i32, i32) {
    %c0_i32 = arith.constant 0 : i32
    %c0_i32_0 = arith.constant 0 : i32
    %c0_i32_1 = arith.constant 0 : i32
    return %c0_i32, %c0_i32_0 : i32, i32
  }
  func.func @transform_4(%arg0: i32) -> (i32, i32) {
    %c0_i32 = arith.constant 0 : i32
    %c0_i32_0 = arith.constant 0 : i32
    %c0_i32_1 = arith.constant 0 : i32
    return %c0_i32, %c0_i32_0 : i32, i32
  }
  func.func @transform_5(%arg0: i32) -> (i32, i32, i32) {
    %c0_i32 = arith.constant 0 : i32
    %c0_i32_0 = arith.constant 0 : i32
    %c0_i32_1 = arith.constant 0 : i32
    %c0_i32_2 = arith.constant 0 : i32
    return %c0_i32, %c0_i32_0, %c0_i32_1 : i32, i32, i32
  }
  func.func @transform_6(%arg0: i32) -> (i32, i32) {
    %c0_i32 = arith.constant 0 : i32
    %c0_i32_0 = arith.constant 0 : i32
    %c0_i32_1 = arith.constant 0 : i32
    return %c0_i32, %c0_i32_0 : i32, i32
  }
  func.func @transform_7(%arg0: i32) -> (i32, i32) {
    %c0_i32 = arith.constant 0 : i32
    %c0_i32_0 = arith.constant 0 : i32
    %c0_i32_1 = arith.constant 0 : i32
    return %c0_i32, %c0_i32_0 : i32, i32
  }
  func.func @transform_8(%arg0: i32) -> (i32, i32) {
    %c0_i32 = arith.constant 0 : i32
    %c0_i32_0 = arith.constant 0 : i32
    %c0_i32_1 = arith.constant 0 : i32
    return %c0_i32, %c0_i32_0 : i32, i32
  }
  func.func @transform_9(%arg0: i32) -> (i32, i32) {
    %c0_i32 = arith.constant 0 : i32
    %c0_i32_0 = arith.constant 0 : i32
    %c0_i32_1 = arith.constant 0 : i32
    return %c0_i32, %c0_i32_0 : i32, i32
  }
  func.func @transform_10(%arg0: i32) -> (i32, i32, i32) {
    %c0_i32 = arith.constant 0 : i32
    %c0_i32_0 = arith.constant 0 : i32
    %c0_i32_1 = arith.constant 0 : i32
    %c0_i32_2 = arith.constant 0 : i32
    return %c0_i32, %c0_i32_0, %c0_i32_1 : i32, i32, i32
  }
  func.func @transform_11(%arg0: i32) -> (i32, i32) {
    %c0_i32 = arith.constant 0 : i32
    %c0_i32_0 = arith.constant 0 : i32
    %c0_i32_1 = arith.constant 0 : i32
    return %c0_i32, %c0_i32_0 : i32, i32
  }
  func.func @transform_12(%arg0: i32) -> (i32, i32, i32) {
    %c0_i32 = arith.constant 0 : i32
    %c0_i32_0 = arith.constant 0 : i32
    %c0_i32_1 = arith.constant 0 : i32
    %c0_i32_2 = arith.constant 0 : i32
    return %c0_i32, %c0_i32_0, %c0_i32_1 : i32, i32, i32
  }
  func.func @transform_13(%arg0: i32) -> (i32, i32) {
    %c0_i32 = arith.constant 0 : i32
    %c0_i32_0 = arith.constant 0 : i32
    %c0_i32_1 = arith.constant 0 : i32
    return %c0_i32, %c0_i32_0 : i32, i32
  }
  func.func @transform_14(%arg0: i32) -> (i32, i32) {
    %c0_i32 = arith.constant 0 : i32
    %c0_i32_0 = arith.constant 0 : i32
    %c0_i32_1 = arith.constant 0 : i32
    return %c0_i32, %c0_i32_0 : i32, i32
  }
  func.func @transform_15(%arg0: i32) -> (i32, i32) {
    %c0_i32 = arith.constant 0 : i32
    %c0_i32_0 = arith.constant 0 : i32
    %c0_i32_1 = arith.constant 0 : i32
    return %c0_i32, %c0_i32_0 : i32, i32
  }
  func.func @transform_16(%arg0: i32) -> (i32, i32) {
    %c0_i32 = arith.constant 0 : i32
    %c0_i32_0 = arith.constant 0 : i32
    %c0_i32_1 = arith.constant 0 : i32
    return %c0_i32, %c0_i32_0 : i32, i32
  }
  func.func @transform_17(%arg0: i32) -> (i32, i32) {
    %c0_i32 = arith.constant 0 : i32
    %c0_i32_0 = arith.constant 0 : i32
    %c0_i32_1 = arith.constant 0 : i32
    return %c0_i32, %c0_i32_0 : i32, i32
  }
  func.func @transform_18(%arg0: i32) -> (i32, i32) {
    %c0_i32 = arith.constant 0 : i32
    %c0_i32_0 = arith.constant 0 : i32
    %c0_i32_1 = arith.constant 0 : i32
    return %c0_i32, %c0_i32_0 : i32, i32
  }
  func.func @transform_19(%arg0: i32) -> (i32, i32, i32) {
    %c0_i32 = arith.constant 0 : i32
    %c0_i32_0 = arith.constant 0 : i32
    %c0_i32_1 = arith.constant 0 : i32
    return %arg0, %c0_i32, %c0_i32_0 : i32, i32, i32
  }
}

</mosaic_0001>

<llo_original>
// kernel: ecodepth4_forward.2
$region0: #{ecodepth4_forward.2}
  #allocation0 [shape = 'u32[]', space=smem, size = 0x4, offset = 0x4, fixed_abs, tag = 'smem constant byte address 0x4 - core index']
  #allocation1 [shape = 'u32[144,128]{1,0:T(1,128)}', space=vmem, size = 0x12000, scoped, tag = 'internal scratch']
  %s0 = inlined_call_operand.vmem [shape: bf16[2,128], index: 0, kind: input, shape index: {}]
  %s1 = inlined_call_operand.vmem [shape: bf16[128,64], index: 1, kind: input, shape index: {}]
  %s2 = inlined_call_operand.vmem [shape: f32[1,64], index: 2, kind: input, shape index: {}]
  %s3 = inlined_call_operand.vmem [shape: bf16[64,32], index: 3, kind: input, shape index: {}]
  %s4 = inlined_call_operand.vmem [shape: f32[1,32], index: 4, kind: input, shape index: {}]
  %s5 = inlined_call_operand.vmem [shape: bf16[32,64], index: 5, kind: input, shape index: {}]
  %s6 = inlined_call_operand.vmem [shape: f32[2,64], index: 6, kind: output, shape index: {}]
  %s7 = sld [smem:[#allocation0]]
  $region34: #{ecodepth4_forward.2} parent=0
    _
  %s9 = ssub.s32 1, %s7
  %s10 = scalar_select 0, %s9, %s7
  // Predicated region
  $region2: #{ecodepth4_forward.2} parent=0 // pred_check
    _
  $region3: #{ecodepth4_forward.2} parent=0 // pred_check_branch
    %12 = sbr.rel (0) target = $region5
  $region4: #{ecodepth4_forward.2} parent=0 // pred_region
    _
  $region5: #{ecodepth4_forward.2} parent=0 // pred_fallthru
    _
  // Predicated region
  $region6: #{ecodepth4_forward.2} parent=0 // pred_check
    _
  $region7: #{ecodepth4_forward.2} parent=0 // pred_check_branch
    %14 = sbr.rel (0) target = $region9
  $region8: #{ecodepth4_forward.2} parent=0 // pred_region
    _
  $region9: #{ecodepth4_forward.2} parent=0 // pred_fallthru
    _
  // Predicated region
  $region10: #{ecodepth4_forward.2} parent=0 // pred_check
    _
  $region11: #{ecodepth4_forward.2} parent=0 // pred_check_branch
    %16 = sbr.rel (0) target = $region13
  $region12: #{ecodepth4_forward.2} parent=0 // pred_region
    _
  $region13: #{ecodepth4_forward.2} parent=0 // pred_fallthru
    _
  // Predicated region
  $region14: #{ecodepth4_forward.2} parent=0 // pred_check
    _
  $region15: #{ecodepth4_forward.2} parent=0 // pred_check_branch
    %18 = sbr.rel (0) target = $region17
  $region16: #{ecodepth4_forward.2} parent=0 // pred_region
    _
  $region17: #{ecodepth4_forward.2} parent=0 // pred_fallthru
    _
  // Predicated region
  $region18: #{ecodepth4_forward.2} parent=0 // pred_check
    _
  $region19: #{ecodepth4_forward.2} parent=0 // pred_check_branch
    %20 = sbr.rel (0) target = $region21
  $region20: #{ecodepth4_forward.2} parent=0 // pred_region
    _
  $region21: #{ecodepth4_forward.2} parent=0 // pred_fallthru
    _
  // Predicated region
  $region22: #{ecodepth4_forward.2} parent=0 // pred_check
    _
  $region23: #{ecodepth4_forward.2} parent=0 // pred_check_branch
    %22 = sbr.rel (0) target = $region25
  $region24: #{ecodepth4_forward.2} parent=0 // pred_region
    _
  $region25: #{ecodepth4_forward.2} parent=0 // pred_fallthru
    _
  %v24 = vld [vmem:[%s0] sm:$0x1]
  %v25 = vld [vmem:[%s1] sm:$0xf]
  %v26 = vld [vmem:[%s1 + $0x4] sm:$0xf]
  %v27 = vld [vmem:[%s1 + $0x8] sm:$0xf]
  %v28 = vld [vmem:[%s1 + $0xc] sm:$0xf]
  %v29 = vld [vmem:[%s1 + $0x10] sm:$0xf]
  %v30 = vld [vmem:[%s1 + $0x14] sm:$0xf]
  %v31 = vld [vmem:[%s1 + $0x18] sm:$0xf]
  %v32 = vld [vmem:[%s1 + $0x1c] sm:$0xf]
  %v33 = vld [vmem:[%s1 + $0x20] sm:$0xf]
  %v34 = vld [vmem:[%s1 + $0x24] sm:$0xf]
  %v35 = vld [vmem:[%s1 + $0x28] sm:$0xf]
  %v36 = vld [vmem:[%s1 + $0x2c] sm:$0xf]
  %v37 = vld [vmem:[%s1 + $0x30] sm:$0xf]
  %v38 = vld [vmem:[%s1 + $0x34] sm:$0xf]
  %v39 = vld [vmem:[%s1 + $0x38] sm:$0xf]
  %v40 = vld [vmem:[%s1 + $0x3c] sm:$0xf]
  %v41 = vld [vmem:[%s2] sm:$0x1]
  %v43 = vlaneseq
  %v44 = vshrl.u32 %v43, 7
  %v45 = vsub.s32 0, %v44
  %v46 = vrot.slane %v41, %v45
  %v64 = vunpack.c.l.b16 %v25
  %v65 = vunpack.c.l.b16 %v26
  %v66 = vunpack.c.l.b16 %v27
  %v67 = vunpack.c.l.b16 %v28
  %v68 = vunpack.c.l.b16 %v29
  %v69 = vunpack.c.l.b16 %v30
  %v70 = vunpack.c.l.b16 %v31
  %v71 = vunpack.c.l.b16 %v32
  %v72 = vunpack.c.l.b16 %v33
  %v73 = vunpack.c.l.b16 %v34
  %v74 = vunpack.c.l.b16 %v35
  %v75 = vunpack.c.l.b16 %v36
  %v76 = vunpack.c.l.b16 %v37
  %v77 = vunpack.c.l.b16 %v38
  %v78 = vunpack.c.l.b16 %v39
  %v79 = vunpack.c.l.b16 %v40
  %v80 = vpack.c.b16 %v65, %v64
  %v81 = vpack.c.b16 %v67, %v66
  %v82 = vpack.c.b16 %v69, %v68
  %v83 = vpack.c.b16 %v71, %v70
  %v84 = vpack.c.b16 %v73, %v72
  %v85 = vpack.c.b16 %v75, %v74
  %v86 = vpack.c.b16 %v77, %v76
  %v87 = vpack.c.b16 %v79, %v78
  %96 = vmatprep.subr.bf16.mxu0 0
  %97 = vmatpush1.bf16.msra.mxu0 %v80
  %98 = vmatprep.subr.bf16.mxu0 0
  %99 = vmatpush1.bf16.msra.mxu0 %v81
  %100 = vmatprep.subr.bf16.mxu0 0
  %101 = vmatpush1.bf16.msra.mxu0 %v82
  %102 = vmatprep.subr.bf16.mxu0 0
  %103 = vmatpush1.bf16.msra.mxu0 %v83
  %104 = vmatprep.subr.bf16.mxu0 0
  %105 = vmatpush1.bf16.msra.mxu0 %v84
  %106 = vmatprep.subr.bf16.mxu0 0
  %107 = vmatpush1.bf16.msra.mxu0 %v85
  %108 = vmatprep.subr.bf16.mxu0 0
  %109 = vmatpush1.bf16.msra.mxu0 %v86
  %110 = vmatprep.subr.bf16.mxu0 0
  %111 = vmatpush1.bf16.msra.mxu0 %v87
  %112 = vmatprep.subr.bf16.mxu0 0
  %113 = vmatpush1.bf16.msra.mxu0 0
  %114 = vmatprep.subr.bf16.mxu0 0
  %115 = vmatpush1.bf16.msra.mxu0 0
  %116 = vmatprep.subr.bf16.mxu0 0
  %117 = vmatpush1.bf16.msra.mxu0 0
  %118 = vmatprep.subr.bf16.mxu0 0
  %119 = vmatpush1.bf16.msra.mxu0 0
  %120 = vmatprep.subr.bf16.mxu0 0
  %121 = vmatpush1.bf16.msra.mxu0 0
  %122 = vmatprep.subr.bf16.mxu0 0
  %123 = vmatpush1.bf16.msra.mxu0 0
  %124 = vmatprep.subr.bf16.mxu0 0
  %125 = vmatpush1.bf16.msra.mxu0 0
  %126 = vmatprep.subr.bf16.mxu0 0
  %127 = vmatpush1.bf16.msra.mxu0 0
  %128 = vmatprep.mubr.bf16.mxu0 0
  %129 = vmatmul.mubr.bf16.gmra.mrb[0].mxu0 %v24
  %v130 = vpop.f32.mrb[0].mxu0
  %v131 = vadd.f32 %v46, %v130
  %v132 = vpop.f32.mrb[0].mxu0
  %v133 = vpop.f32.mrb[0].mxu0
  %v134 = vpop.f32.mrb[0].mxu0
  %135 = vdwg.mxu0
  %v136 = vmul.f32 %v131, 0.70710677
  %v137 = vand.u32 2147483647, %v136
  %v138 = vmul.f32 %v137, 0.3275911
  %v139 = vadd.f32 %v138, 1.0
  %v140 = vrcp.pop %v139
  %v141 = vmul.f32 1.0, %v140
  %v142 = vmul.f32 %v141, 1.0614054
  %v143 = vsub.f32 %v142, 1.4531521
  %v144 = vmul.f32 %v143, %v141
  %v145 = vadd.f32 %v144, 1.4214138
  %v146 = vmul.f32 %v145, %v141
  %v147 = vsub.f32 %v146, 0.28449672
  %v148 = vmul.f32 %v147, %v141
  %v149 = vadd.f32 %v148, 0.2548296
  %v150 = vmul.f32 %v149, %v141
  %v151 = vsub.f32 0.0, %v137
  %v152 = vmul.f32 %v151, %v137
  %v153 = vmul.f32 %v152, 1.442695
  %v154 = vpow.pop %v153
  %v155 = vmul.f32 %v150, %v154
  %v156 = vsub.f32 1.0, %v155
  %vm157 = vcmp.ge.f32.partialorder %v136, 0.0
  %v158 = vsub.f32 0.0, %v156
  %v159 = vsel %vm157, %v156, %v158
  %v160 = vmul.f32 %v131, 0.5
  %v161 = vadd.f32 %v159, 1.0
  %v162 = vmul.f32 %v160, %v161
  %v163 = vpack.c.bf16 %v162, %v162
  %v164 = vld [vmem:[%s3] sm:$0xf]
  %v165 = vld [vmem:[%s3 + $0x4] sm:$0xf]
  %v166 = vld [vmem:[%s3 + $0x8] sm:$0xf]
  %v167 = vld [vmem:[%s3 + $0xc] sm:$0xf]
  %v168 = vld [vmem:[%s3 + $0x10] sm:$0xf]
  %v169 = vld [vmem:[%s3 + $0x14] sm:$0xf]
  %v170 = vld [vmem:[%s3 + $0x18] sm:$0xf]
  %v171 = vld [vmem:[%s3 + $0x1c] sm:$0xf]
  %v172 = vld [vmem:[%s4] sm:$0x1]
  %v174 = vlaneseq
  %v175 = vshrl.u32 %v174, 7
  %v176 = vsub.s32 0, %v175
  %v177 = vrot.slane %v172, %v176
  %v187 = vunpack.c.l.b16 %v164
  %v188 = vunpack.c.l.b16 %v165
  %v189 = vunpack.c.l.b16 %v166
  %v190 = vunpack.c.l.b16 %v167
  %v191 = vunpack.c.l.b16 %v168
  %v192 = vunpack.c.l.b16 %v169
  %v193 = vunpack.c.l.b16 %v170
  %v194 = vunpack.c.l.b16 %v171
  %v195 = vpack.c.b16 %v188, %v187
  %v196 = vpack.c.b16 %v190, %v189
  %v197 = vpack.c.b16 %v192, %v191
  %v198 = vpack.c.b16 %v194, %v193
  %vm203 = vcmask 523264
  %v205 = vsel %vm203, %v163, 0
  %207 = vmatprep.subr.bf16.mxu0 0
  %208 = vmatpush1.bf16.msra.mxu0 %v195
  %209 = vmatprep.subr.bf16.mxu0 0
  %210 = vmatpush1.bf16.msra.mxu0 %v196
  %211 = vmatprep.subr.bf16.mxu0 0
  %212 = vmatpush1.bf16.msra.mxu0 %v197
  %213 = vmatprep.subr.bf16.mxu0 0
  %214 = vmatpush1.bf16.msra.mxu0 %v198
  %215 = vmatprep.subr.bf16.mxu0 0
  %216 = vmatpush1.bf16.msra.mxu0 0
  %217 = vmatprep.subr.bf16.mxu0 0
  %218 = vmatpush1.bf16.msra.mxu0 0
  %219 = vmatprep.subr.bf16.mxu0 0
  %220 = vmatpush1.bf16.msra.mxu0 0
  %221 = vmatprep.subr.bf16.mxu0 0
  %222 = vmatpush1.bf16.msra.mxu0 0
  %223 = vmatprep.subr.bf16.mxu0 0
  %224 = vmatpush1.bf16.msra.mxu0 0
  %225 = vmatprep.subr.bf16.mxu0 0
  %226 = vmatpush1.bf16.msra.mxu0 0
  %227 = vmatprep.subr.bf16.mxu0 0
  %228 = vmatpush1.bf16.msra.mxu0 0
  %229 = vmatprep.subr.bf16.mxu0 0
  %230 = vmatpush1.bf16.msra.mxu0 0
  %231 = vmatprep.subr.bf16.mxu0 0
  %232 = vmatpush1.bf16.msra.mxu0 0
  %233 = vmatprep.subr.bf16.mxu0 0
  %234 = vmatpush1.bf16.msra.mxu0 0
  %235 = vmatprep.subr.bf16.mxu0 0
  %236 = vmatpush1.bf16.msra.mxu0 0
  %237 = vmatprep.subr.bf16.mxu0 0
  %238 = vmatpush1.bf16.msra.mxu0 0
  %239 = vmatprep.mubr.bf16.mxu0 0
  %240 = vmatmul.mubr.bf16.gmra.mrb[0].mxu0 %v205
  %v241 = vpop.f32.mrb[0].mxu0
  %v242 = vadd.f32 %v177, %v241
  %v243 = vpop.f32.mrb[0].mxu0
  %v244 = vpop.f32.mrb[0].mxu0
  %v245 = vpop.f32.mrb[0].mxu0
  %246 = vdwg.mxu0
  %vm247 = vcmask 254976
  %v248 = vsel %vm247, %v242, -inf
  %249 = vmax.xlane.f32.xlu0 %v248
  %v250 = vpop.xlane.xlu0 %249
  %v251 = vsub.f32 %v242, %v250
  %v252 = vmul.f32 %v251, 1.442695
  %v253 = vpow.pop %v252
  %v254 = vsel %vm247, %v253, 0.0
  %255 = vadd.xlane.f32.xlu0 %v254
  %v256 = vpop.xlane.xlu0 %255
  %v257 = vrcp.pop %v256
  %v258 = vmul.f32 %v253, %v257
  %v259 = vpack.c.bf16 %v258, %v258
  %v260 = vld [vmem:[%s5] sm:$0xf]
  %v261 = vld [vmem:[%s5 + $0x4] sm:$0xf]
  %v262 = vld [vmem:[%s5 + $0x8] sm:$0xf]
  %v263 = vld [vmem:[%s5 + $0xc] sm:$0xf]
  %v268 = vunpack.c.l.b16 %v260
  %v269 = vunpack.c.l.b16 %v261
  %v270 = vunpack.c.l.b16 %v262
  %v271 = vunpack.c.l.b16 %v263
  %v272 = vpack.c.b16 %v269, %v268
  %v273 = vpack.c.b16 %v271, %v270
  %vm276 = vcmask 261120
  %v278 = vsel %vm276, %v259, 0
  %280 = vmatprep.subr.bf16.mxu0 0
  %281 = vmatpush1.bf16.msra.mxu0 %v272
  %282 = vmatprep.subr.bf16.mxu0 0
  %283 = vmatpush1.bf16.msra.mxu0 %v273
  %284 = vmatprep.subr.bf16.mxu0 0
  %285 = vmatpush1.bf16.msra.mxu0 0
  %286 = vmatprep.subr.bf16.mxu0 0
  %287 = vmatpush1.bf16.msra.mxu0 0
  %288 = vmatprep.subr.bf16.mxu0 0
  %289 = vmatpush1.bf16.msra.mxu0 0
  %290 = vmatprep.subr.bf16.mxu0 0
  %291 = vmatpush1.bf16.msra.mxu0 0
  %292 = vmatprep.subr.bf16.mxu0 0
  %293 = vmatpush1.bf16.msra.mxu0 0
  %294 = vmatprep.subr.bf16.mxu0 0
  %295 = vmatpush1.bf16.msra.mxu0 0
  %296 = vmatprep.subr.bf16.mxu0 0
  %297 = vmatpush1.bf16.msra.mxu0 0
  %298 = vmatprep.subr.bf16.mxu0 0
  %299 = vmatpush1.bf16.msra.mxu0 0
  %300 = vmatprep.subr.bf16.mxu0 0
  %301 = vmatpush1.bf16.msra.mxu0 0
  %302 = vmatprep.subr.bf16.mxu0 0
  %303 = vmatpush1.bf16.msra.mxu0 0
  %304 = vmatprep.subr.bf16.mxu0 0
  %305 = vmatpush1.bf16.msra.mxu0 0
  %306 = vmatprep.subr.bf16.mxu0 0
  %307 = vmatpush1.bf16.msra.mxu0 0
  %308 = vmatprep.subr.bf16.mxu0 0
  %309 = vmatpush1.bf16.msra.mxu0 0
  %310 = vmatprep.subr.bf16.mxu0 0
  %311 = vmatpush1.bf16.msra.mxu0 0
  %312 = vmatprep.mubr.bf16.mxu0 0
  %313 = vmatmul.mubr.bf16.gmra.mrb[0].mxu0 %v278
  %v314 = vpop.f32.mrb[0].mxu0
  %v315 = vadd.f32 0.0, %v314
  %v316 = vpop.f32.mrb[0].mxu0
  %v317 = vpop.f32.mrb[0].mxu0
  %v318 = vpop.f32.mrb[0].mxu0
  %319 = vdwg.mxu0
  %vm320 = vcmask 517120
  %321 = vst.msk [vmem:[%s6] sm:$0x3] %vm320, %v315
  // Predicated region
  $region26: #{ecodepth4_forward.2} parent=0 // pred_check
    _
  $region27: #{ecodepth4_forward.2} parent=0 // pred_check_branch
    %323 = sbr.rel (0) target = $region29
  $region28: #{ecodepth4_forward.2} parent=0 // pred_region
    _
  $region29: #{ecodepth4_forward.2} parent=0 // pred_fallthru
    _
  // Predicated region
  $region30: #{ecodepth4_forward.2} parent=0 // pred_check
    _
  $region31: #{ecodepth4_forward.2} parent=0 // pred_check_branch
    %325 = sbr.rel (0) target = $region33
  $region32: #{ecodepth4_forward.2} parent=0 // pred_region
    _
  $region33: #{ecodepth4_forward.2} parent=0 // pred_fallthru
    _

// kernel: ecodepth4_forward.3
$region0: #{ecodepth4_forward.3}
  #allocation0 [shape = 'u32[]', space=smem, size = 0x4, offset = 0x4, fixed_abs, tag = 'smem constant byte address 0x4 - core index']
  #allocation1 [shape = 'u32[144,128]{1,0:T(1,128)}', space=vmem, size = 0x12000, scoped, tag = 'internal scratch']
  %s0 = inlined_call_operand.vmem [shape: bf16[2,256,32], index: 0, kind: input, shape index: {}]
  %s1 = inlined_call_operand.vmem [shape: bf16[2,64,64], index: 1, kind: input, shape index: {}]
  %s2 = inlined_call_operand.vmem [shape: bf16[2,16,128], index: 2, kind: input, shape index: {}]
  %s3 = inlined_call_operand.vmem [shape: bf16[576,256], index: 3, kind: input, shape index: {}]
  %s4 = inlined_call_operand.vmem [shape: bf16[144,64], index: 4, kind: input, shape index: {}]
  %s5 = inlined_call_operand.vmem [shape: bf16[9,32,32], index: 5, kind: input, shape index: {}]
  %s6 = inlined_call_operand.vmem [shape: f32[1,32], index: 6, kind: input, shape index: {}]
  %s7 = inlined_call_operand.vmem [shape: f32[32,32], index: 7, kind: input, shape index: {}]
  %s8 = inlined_call_operand.vmem [shape: f32[1,32], index: 8, kind: input, shape index: {}]
  %s9 = inlined_call_operand.vmem [shape: f32[1,32], index: 9, kind: input, shape index: {}]
  %s10 = inlined_call_operand.vmem [shape: bf16[9,32,32], index: 10, kind: input, shape index: {}]
  %s11 = inlined_call_operand.vmem [shape: f32[1,32], index: 11, kind: input, shape index: {}]
  %s12 = inlined_call_operand.vmem [shape: bf16[9,64,64], index: 12, kind: input, shape index: {}]
  %s13 = inlined_call_operand.vmem [shape: f32[1,64], index: 13, kind: input, shape index: {}]
  %s14 = inlined_call_operand.vmem [shape: bf16[224,128], index: 14, kind: input, shape index: {}]
  %s15 = inlined_call_operand.vmem [shape: f32[1,128], index: 15, kind: input, shape index: {}]
  %s16 = inlined_call_operand.vmem [shape: f32[128,128], index: 16, kind: input, shape index: {}]
  %s17 = inlined_call_operand.vmem [shape: f32[1,128], index: 17, kind: input, shape index: {}]
  %s18 = inlined_call_operand.vmem [shape: f32[1,128], index: 18, kind: input, shape index: {}]
  %s19 = inlined_call_operand.vmem [shape: f32[2,16,128], index: 19, kind: output, shape index: {}]
  %s20 = sld [smem:[#allocation0]]
  $region109: #{ecodepth4_forward.3} parent=0
    _
  %s22 = ssub.s32 1, %s20
  %s23 = scalar_select 0, %s22, %s20
  loop: start=0, step=1, limit=4
  $region2: #{ecodepth4_forward.3} parent=0 // loop_pre_header
    _
  $region3: #{ecodepth4_forward.3} parent=0 // loop_header
    %s25 = sphi 0, %s29
    %p26 = scmp.ge.s32.totalorder %s25, 4
    %s35 = sphi 0, %s37
    %s38 = sphi 0, %s35
    %s39 = sphi 0, %s38
    %s55 = sphi 0, %s39
    %s61 = sphi 0, %s63
    %s64 = sphi 0, %s61
    %s65 = sphi 0, %s64
    %s81 = sphi 0, %s65
    %s87 = sphi 0, %s89
    %s90 = sphi 0, %s87
    %s91 = sphi 0, %s90
    %s107 = sphi 0, %s91
    %s111 = sphi 0, %s111
    %s113 = sphi 0, %s111
    %s114 = sphi 0, %s113
    %s128 = sphi 0, %s114
    %s132 = sphi 0, %s132
    %s134 = sphi 0, %s132
    %s135 = sphi 0, %s134
    %s149 = sphi 0, %s135
    %s153 = sphi 0, %s153
    %s155 = sphi 0, %s153
    %s156 = sphi 0, %s155
    %s170 = sphi 0, %s156
    %s174 = sphi 0, %s174
    %s176 = sphi 0, %s174
    %s177 = sphi 0, %s176
    %s191 = sphi 0, %s177
    %s195 = sphi 0, %s195
    %s197 = sphi 0, %s195
    %s198 = sphi 0, %s197
    %s212 = sphi 0, %s198
    %s216 = sphi 0, %s216
    %s218 = sphi 0, %s216
    %s219 = sphi 0, %s218
    %s233 = sphi 0, %s219
    %s237 = sphi 0, %s237
    %s239 = sphi 0, %s237
    %s240 = sphi 0, %s239
    %s254 = sphi 0, %s240
    %s258 = sphi 0, %s258
    %s260 = sphi 0, %s258
    %s261 = sphi 0, %s260
    %s275 = sphi 0, %s261
    %s279 = sphi 0, %s279
    %s281 = sphi 0, %s279
    %s282 = sphi 0, %s281
    %s296 = sphi 0, %s282
    %s300 = sphi 0, %s300
    %s302 = sphi 0, %s300
    %s303 = sphi 0, %s302
    %s317 = sphi 0, %s303
    %s321 = sphi 0, %s321
    %s323 = sphi 0, %s321
    %s324 = sphi 0, %s323
    %s338 = sphi 0, %s324
    %s342 = sphi 0, %s342
    %s344 = sphi 0, %s342
    %s345 = sphi 0, %s344
    %s359 = sphi 0, %s345
    %s363 = sphi 0, %s363
    %s365 = sphi 0, %s363
    %s366 = sphi 0, %s365
    %s380 = sphi 0, %s366
    %s384 = sphi 0, %s384
    %s386 = sphi 0, %s384
    %s387 = sphi 0, %s386
    %s401 = sphi 0, %s387
    %s405 = sphi 0, %s405
    %s407 = sphi 0, %s405
    %s408 = sphi 0, %s407
    %s422 = sphi 0, %s408
    %s426 = sphi 0, %s426
    %s428 = sphi 0, %s426
    %s429 = sphi 0, %s428
    %s443 = sphi 0, %s429
    %s449 = sphi 0, %s451
    %s452 = sphi 0, %s449
    %s453 = sphi 0, %s452
    %s469 = sphi 0, %s453
  $region4: #{ecodepth4_forward.3} parent=0 // loop_header_branch
    %28 = sbr.rel (%p26) target = $region8
  $region5: #{ecodepth4_forward.3} parent=0 // loop_body
    %s30 = ssub.s32 %s25, 1
    %s31 = ssub.s32 %s25, 2
    %s32 = sadd.s32 %s25, 1
    %s33 = ssub.s32 %s25, %s32
    %p34 = scmp.eq.s32.totalorder %s33, 0
    %s36 = sadd.s32 %s35, 1
    %s37 = scalar_select %p34, %s35, %s36
    %p40 = pneg %p34
    %p41 = scmp.eq.s32.totalorder %s25, 1
    %p42 = por %p40, %p41
    %p43 = scmp.ne.s32.totalorder %s35, %s38
    %p44 = scmp.eq.s32.totalorder %s25, 0
    %p45 = por %p43, %p44
    %p46 = scmp.ne.s32.totalorder %s35, %s38
    %p47 = scmp.eq.s32.totalorder %s30, 1
    %p48 = por %p46, %p47
    %p49 = scmp.ne.s32.totalorder %s38, %s39
    %p50 = scmp.eq.s32.totalorder %s30, 0
    %p51 = por %p49, %p50
    %p52 = scmp.ne.s32.totalorder %s38, %s39
    %p53 = scmp.eq.s32.totalorder %s31, 1
    %p54 = por %p52, %p53
    %p56 = scmp.ne.s32.totalorder %s39, %s55
    %p57 = scmp.eq.s32.totalorder %s31, 0
    %p58 = por %p56, %p57
    %s59 = ssub.s32 %s25, %s32
    %p60 = scmp.eq.s32.totalorder %s59, 0
    %s62 = sadd.s32 %s61, 1
    %s63 = scalar_select %p60, %s61, %s62
    %p66 = pneg %p60
    %p67 = scmp.eq.s32.totalorder %s25, 1
    %p68 = por %p66, %p67
    %p69 = scmp.ne.s32.totalorder %s61, %s64
    %p70 = scmp.eq.s32.totalorder %s25, 0
    %p71 = por %p69, %p70
    %p72 = scmp.ne.s32.totalorder %s61, %s64
    %p73 = scmp.eq.s32.totalorder %s30, 1
    %p74 = por %p72, %p73
    %p75 = scmp.ne.s32.totalorder %s64, %s65
    %p76 = scmp.eq.s32.totalorder %s30, 0
    %p77 = por %p75, %p76
    %p78 = scmp.ne.s32.totalorder %s64, %s65
    %p79 = scmp.eq.s32.totalorder %s31, 1
    %p80 = por %p78, %p79
    %p82 = scmp.ne.s32.totalorder %s65, %s81
    %p83 = scmp.eq.s32.totalorder %s31, 0
    %p84 = por %p82, %p83
    %s85 = ssub.s32 %s25, %s32
    %p86 = scmp.eq.s32.totalorder %s85, 0
    %s88 = sadd.s32 %s87, 1
    %s89 = scalar_select %p86, %s87, %s88
    %p92 = pneg %p86
    %p93 = scmp.eq.s32.totalorder %s25, 1
    %p94 = por %p92, %p93
    %p95 = scmp.ne.s32.totalorder %s87, %s90
    %p96 = scmp.eq.s32.totalorder %s25, 0
    %p97 = por %p95, %p96
    %p98 = scmp.ne.s32.totalorder %s87, %s90
    %p99 = scmp.eq.s32.totalorder %s30, 1
    %p100 = por %p98, %p99
    %p101 = scmp.ne.s32.totalorder %s90, %s91
    %p102 = scmp.eq.s32.totalorder %s30, 0
    %p103 = por %p101, %p102
    %p104 = scmp.ne.s32.totalorder %s90, %s91
    %p105 = scmp.eq.s32.totalorder %s31, 1
    %p106 = por %p104, %p105
    %p108 = scmp.ne.s32.totalorder %s91, %s107
    %p109 = scmp.eq.s32.totalorder %s31, 0
    %p110 = por %p108, %p109
    %s112 = sadd.s32 %s111, 1
    %p115 = scmp.eq.s32.totalorder %s25, 1
    %p116 = scmp.ne.s32.totalorder %s111, %s113
    %p117 = scmp.eq.s32.totalorder %s25, 0
    %p118 = por %p116, %p117
    %p119 = scmp.ne.s32.totalorder %s111, %s113
    %p120 = scmp.eq.s32.totalorder %s30, 1
    %p121 = por %p119, %p120
    %p122 = scmp.ne.s32.totalorder %s113, %s114
    %p123 = scmp.eq.s32.totalorder %s30, 0
    %p124 = por %p122, %p123
    %p125 = scmp.ne.s32.totalorder %s113, %s114
    %p126 = scmp.eq.s32.totalorder %s31, 1
    %p127 = por %p125, %p126
    %p129 = scmp.ne.s32.totalorder %s114, %s128
    %p130 = scmp.eq.s32.totalorder %s31, 0
    %p131 = por %p129, %p130
    %s133 = sadd.s32 %s132, 1
    %p136 = scmp.eq.s32.totalorder %s25, 1
    %p137 = scmp.ne.s32.totalorder %s132, %s134
    %p138 = scmp.eq.s32.totalorder %s25, 0
    %p139 = por %p137, %p138
    %p140 = scmp.ne.s32.totalorder %s132, %s134
    %p141 = scmp.eq.s32.totalorder %s30, 1
    %p142 = por %p140, %p141
    %p143 = scmp.ne.s32.totalorder %s134, %s135
    %p144 = scmp.eq.s32.totalorder %s30, 0
    %p145 = por %p143, %p144
    %p146 = scmp.ne.s32.totalorder %s134, %s135
    %p147 = scmp.eq.s32.totalorder %s31, 1
    %p148 = por %p146, %p147
    %p150 = scmp.ne.s32.totalorder %s135, %s149
    %p151 = scmp.eq.s32.totalorder %s31, 0
    %p152 = por %p150, %p151
    %s154 = sadd.s32 %s153, 1
    %p157 = scmp.eq.s32.totalorder %s25, 1
    %p158 = scmp.ne.s32.totalorder %s153, %s155
    %p159 = scmp.eq.s32.totalorder %s25, 0
    %p160 = por %p158, %p159
    %p161 = scmp.ne.s32.totalorder %s153, %s155
    %p162 = scmp.eq.s32.totalorder %s30, 1
    %p163 = por %p161, %p162
    %p164 = scmp.ne.s32.totalorder %s155, %s156
    %p165 = scmp.eq.s32.totalorder %s30, 0
    %p166 = por %p164, %p165
    %p167 = scmp.ne.s32.totalorder %s155, %s156
    %p168 = scmp.eq.s32.totalorder %s31, 1
    %p169 = por %p167, %p168
    %p171 = scmp.ne.s32.totalorder %s156, %s170
    %p172 = scmp.eq.s32.totalorder %s31, 0
    %p173 = por %p171, %p172
    %s175 = sadd.s32 %s174, 1
    %p178 = scmp.eq.s32.totalorder %s25, 1
    %p179 = scmp.ne.s32.totalorder %s174, %s176
    %p180 = scmp.eq.s32.totalorder %s25, 0
    %p181 = por %p179, %p180
    %p182 = scmp.ne.s32.totalorder %s174, %s176
    %p183 = scmp.eq.s32.totalorder %s30, 1
    %p184 = por %p182, %p183
    %p185 = scmp.ne.s32.totalorder %s176, %s177
    %p186 = scmp.eq.s32.totalorder %s30, 0
    %p187 = por %p185, %p186
    %p188 = scmp.ne.s32.totalorder %s176, %s177
    %p189 = scmp.eq.s32.totalorder %s31, 1
    %p190 = por %p188, %p189
    %p192 = scmp.ne.s32.totalorder %s177, %s191
    %p193 = scmp.eq.s32.totalorder %s31, 0
    %p194 = por %p192, %p193
    %s196 = sadd.s32 %s195, 1
    %p199 = scmp.eq.s32.totalorder %s25, 1
    %p200 = scmp.ne.s32.totalorder %s195, %s197
    %p201 = scmp.eq.s32.totalorder %s25, 0
    %p202 = por %p200, %p201
    %p203 = scmp.ne.s32.totalorder %s195, %s197
    %p204 = scmp.eq.s32.totalorder %s30, 1
    %p205 = por %p203, %p204
    %p206 = scmp.ne.s32.totalorder %s197, %s198
    %p207 = scmp.eq.s32.totalorder %s30, 0
    %p208 = por %p206, %p207
    %p209 = scmp.ne.s32.totalorder %s197, %s198
    %p210 = scmp.eq.s32.totalorder %s31, 1
    %p211 = por %p209, %p210
    %p213 = scmp.ne.s32.totalorder %s198, %s212
    %p214 = scmp.eq.s32.totalorder %s31, 0
    %p215 = por %p213, %p214
    %s217 = sadd.s32 %s216, 1
    %p220 = scmp.eq.s32.totalorder %s25, 1
    %p221 = scmp.ne.s32.totalorder %s216, %s218
    %p222 = scmp.eq.s32.totalorder %s25, 0
    %p223 = por %p221, %p222
    %p224 = scmp.ne.s32.totalorder %s216, %s218
    %p225 = scmp.eq.s32.totalorder %s30, 1
    %p226 = por %p224, %p225
    %p227 = scmp.ne.s32.totalorder %s218, %s219
    %p228 = scmp.eq.s32.totalorder %s30, 0
    %p229 = por %p227, %p228
    %p230 = scmp.ne.s32.totalorder %s218, %s219
    %p231 = scmp.eq.s32.totalorder %s31, 1
    %p232 = por %p230, %p231
    %p234 = scmp.ne.s32.totalorder %s219, %s233
    %p235 = scmp.eq.s32.totalorder %s31, 0
    %p236 = por %p234, %p235
    %s238 = sadd.s32 %s237, 1
    %p241 = scmp.eq.s32.totalorder %s25, 1
    %p242 = scmp.ne.s32.totalorder %s237, %s239
    %p243 = scmp.eq.s32.totalorder %s25, 0
    %p244 = por %p242, %p243
    %p245 = scmp.ne.s32.totalorder %s237, %s239
    %p246 = scmp.eq.s32.totalorder %s30, 1
    %p247 = por %p245, %p246
    %p248 = scmp.ne.s32.totalorder %s239, %s240
    %p249 = scmp.eq.s32.totalorder %s30, 0
    %p250 = por %p248, %p249
    %p251 = scmp.ne.s32.totalorder %s239, %s240
    %p252 = scmp.eq.s32.totalorder %s31, 1
    %p253 = por %p251, %p252
    %p255 = scmp.ne.s32.totalorder %s240, %s254
    %p256 = scmp.eq.s32.totalorder %s31, 0
    %p257 = por %p255, %p256
    %s259 = sadd.s32 %s258, 1
    %p262 = scmp.eq.s32.totalorder %s25, 1
    %p263 = scmp.ne.s32.totalorder %s258, %s260
    %p264 = scmp.eq.s32.totalorder %s25, 0
    %p265 = por %p263, %p264
    %p266 = scmp.ne.s32.totalorder %s258, %s260
    %p267 = scmp.eq.s32.totalorder %s30, 1
    %p268 = por %p266, %p267
    %p269 = scmp.ne.s32.totalorder %s260, %s261
    %p270 = scmp.eq.s32.totalorder %s30, 0
    %p271 = por %p269, %p270
    %p272 = scmp.ne.s32.totalorder %s260, %s261
    %p273 = scmp.eq.s32.totalorder %s31, 1
    %p274 = por %p272, %p273
    %p276 = scmp.ne.s32.totalorder %s261, %s275
    %p277 = scmp.eq.s32.totalorder %s31, 0
    %p278 = por %p276, %p277
    %s280 = sadd.s32 %s279, 1
    %p283 = scmp.eq.s32.totalorder %s25, 1
    %p284 = scmp.ne.s32.totalorder %s279, %s281
    %p285 = scmp.eq.s32.totalorder %s25, 0
    %p286 = por %p284, %p285
    %p287 = scmp.ne.s32.totalorder %s279, %s281
    %p288 = scmp.eq.s32.totalorder %s30, 1
    %p289 = por %p287, %p288
    %p290 = scmp.ne.s32.totalorder %s281, %s282
    %p291 = scmp.eq.s32.totalorder %s30, 0
    %p292 = por %p290, %p291
    %p293 = scmp.ne.s32.totalorder %s281, %s282
    %p294 = scmp.eq.s32.totalorder %s31, 1
    %p295 = por %p293, %p294
    %p297 = scmp.ne.s32.totalorder %s282, %s296
    %p298 = scmp.eq.s32.totalorder %s31, 0
    %p299 = por %p297, %p298
    %s301 = sadd.s32 %s300, 1
    %p304 = scmp.eq.s32.totalorder %s25, 1
    %p305 = scmp.ne.s32.totalorder %s300, %s302
    %p306 = scmp.eq.s32.totalorder %s25, 0
    %p307 = por %p305, %p306
    %p308 = scmp.ne.s32.totalorder %s300, %s302
    %p309 = scmp.eq.s32.totalorder %s30, 1
    %p310 = por %p308, %p309
    %p311 = scmp.ne.s32.totalorder %s302, %s303
    %p312 = scmp.eq.s32.totalorder %s30, 0
    %p313 = por %p311, %p312
    %p314 = scmp.ne.s32.totalorder %s302, %s303
    %p315 = scmp.eq.s32.totalorder %s31, 1
    %p316 = por %p314, %p315
    %p318 = scmp.ne.s32.totalorder %s303, %s317
    %p319 = scmp.eq.s32.totalorder %s31, 0
    %p320 = por %p318, %p319
    %s322 = sadd.s32 %s321, 1
    %p325 = scmp.eq.s32.totalorder %s25, 1
    %p326 = scmp.ne.s32.totalorder %s321, %s323
    %p327 = scmp.eq.s32.totalorder %s25, 0
    %p328 = por %p326, %p327
    %p329 = scmp.ne.s32.totalorder %s321, %s323
    %p330 = scmp.eq.s32.totalorder %s30, 1
    %p331 = por %p329, %p330
    %p332 = scmp.ne.s32.totalorder %s323, %s324
    %p333 = scmp.eq.s32.totalorder %s30, 0
    %p334 = por %p332, %p333
    %p335 = scmp.ne.s32.totalorder %s323, %s324
    %p336 = scmp.eq.s32.totalorder %s31, 1
    %p337 = por %p335, %p336
    %p339 = scmp.ne.s32.totalorder %s324, %s338
    %p340 = scmp.eq.s32.totalorder %s31, 0
    %p341 = por %p339, %p340
    %s343 = sadd.s32 %s342, 1
    %p346 = scmp.eq.s32.totalorder %s25, 1
    %p347 = scmp.ne.s32.totalorder %s342, %s344
    %p348 = scmp.eq.s32.totalorder %s25, 0
    %p349 = por %p347, %p348
    %p350 = scmp.ne.s32.totalorder %s342, %s344
    %p351 = scmp.eq.s32.totalorder %s30, 1
    %p352 = por %p350, %p351
    %p353 = scmp.ne.s32.totalorder %s344, %s345
    %p354 = scmp.eq.s32.totalorder %s30, 0
    %p355 = por %p353, %p354
    %p356 = scmp.ne.s32.totalorder %s344, %s345
    %p357 = scmp.eq.s32.totalorder %s31, 1
    %p358 = por %p356, %p357
    %p360 = scmp.ne.s32.totalorder %s345, %s359
    %p361 = scmp.eq.s32.totalorder %s31, 0
    %p362 = por %p360, %p361
    %s364 = sadd.s32 %s363, 1
    %p367 = scmp.eq.s32.totalorder %s25, 1
    %p368 = scmp.ne.s32.totalorder %s363, %s365
    %p369 = scmp.eq.s32.totalorder %s25, 0
    %p370 = por %p368, %p369
    %p371 = scmp.ne.s32.totalorder %s363, %s365
    %p372 = scmp.eq.s32.totalorder %s30, 1
    %p373 = por %p371, %p372
    %p374 = scmp.ne.s32.totalorder %s365, %s366
    %p375 = scmp.eq.s32.totalorder %s30, 0
    %p376 = por %p374, %p375
    %p377 = scmp.ne.s32.totalorder %s365, %s366
    %p378 = scmp.eq.s32.totalorder %s31, 1
    %p379 = por %p377, %p378
    %p381 = scmp.ne.s32.totalorder %s366, %s380
    %p382 = scmp.eq.s32.totalorder %s31, 0
    %p383 = por %p381, %p382
    %s385 = sadd.s32 %s384, 1
    %p388 = scmp.eq.s32.totalorder %s25, 1
    %p389 = scmp.ne.s32.totalorder %s384, %s386
    %p390 = scmp.eq.s32.totalorder %s25, 0
    %p391 = por %p389, %p390
    %p392 = scmp.ne.s32.totalorder %s384, %s386
    %p393 = scmp.eq.s32.totalorder %s30, 1
    %p394 = por %p392, %p393
    %p395 = scmp.ne.s32.totalorder %s386, %s387
    %p396 = scmp.eq.s32.totalorder %s30, 0
    %p397 = por %p395, %p396
    %p398 = scmp.ne.s32.totalorder %s386, %s387
    %p399 = scmp.eq.s32.totalorder %s31, 1
    %p400 = por %p398, %p399
    %p402 = scmp.ne.s32.totalorder %s387, %s401
    %p403 = scmp.eq.s32.totalorder %s31, 0
    %p404 = por %p402, %p403
    %s406 = sadd.s32 %s405, 1
    %p409 = scmp.eq.s32.totalorder %s25, 1
    %p410 = scmp.ne.s32.totalorder %s405, %s407
    %p411 = scmp.eq.s32.totalorder %s25, 0
    %p412 = por %p410, %p411
    %p413 = scmp.ne.s32.totalorder %s405, %s407
    %p414 = scmp.eq.s32.totalorder %s30, 1
    %p415 = por %p413, %p414
    %p416 = scmp.ne.s32.totalorder %s407, %s408
    %p417 = scmp.eq.s32.totalorder %s30, 0
    %p418 = por %p416, %p417
    %p419 = scmp.ne.s32.totalorder %s407, %s408
    %p420 = scmp.eq.s32.totalorder %s31, 1
    %p421 = por %p419, %p420
    %p423 = scmp.ne.s32.totalorder %s408, %s422
    %p424 = scmp.eq.s32.totalorder %s31, 0
    %p425 = por %p423, %p424
    %s427 = sadd.s32 %s426, 1
    %p430 = scmp.eq.s32.totalorder %s25, 1
    %p431 = scmp.ne.s32.totalorder %s426, %s428
    %p432 = scmp.eq.s32.totalorder %s25, 0
    %p433 = por %p431, %p432
    %p434 = scmp.ne.s32.totalorder %s426, %s428
    %p435 = scmp.eq.s32.totalorder %s30, 1
    %p436 = por %p434, %p435
    %p437 = scmp.ne.s32.totalorder %s428, %s429
    %p438 = scmp.eq.s32.totalorder %s30, 0
    %p439 = por %p437, %p438
    %p440 = scmp.ne.s32.totalorder %s428, %s429
    %p441 = scmp.eq.s32.totalorder %s31, 1
    %p442 = por %p440, %p441
    %p444 = scmp.ne.s32.totalorder %s429, %s443
    %p445 = scmp.eq.s32.totalorder %s31, 0
    %p446 = por %p444, %p445
    %s447 = ssub.s32 %s25, %s32
    %p448 = scmp.eq.s32.totalorder %s447, 0
    %s450 = sadd.s32 %s449, 1
    %s451 = scalar_select %p448, %s449, %s450
    %p454 = pneg %p448
    %p455 = scmp.eq.s32.totalorder %s25, 1
    %p456 = por %p454, %p455
    %p457 = scmp.ne.s32.totalorder %s449, %s452
    %p458 = scmp.eq.s32.totalorder %s25, 0
    %p459 = por %p457, %p458
    %p460 = scmp.ne.s32.totalorder %s449, %s452
    %p461 = scmp.eq.s32.totalorder %s30, 1
    %p462 = por %p460, %p461
    %p463 = scmp.ne.s32.totalorder %s452, %s453
    %p464 = scmp.eq.s32.totalorder %s30, 0
    %p465 = por %p463, %p464
    %p466 = scmp.ne.s32.totalorder %s452, %s453
    %p467 = scmp.eq.s32.totalorder %s31, 1
    %p468 = por %p466, %p467
    %p470 = scmp.ne.s32.totalorder %s453, %s469
    %p471 = scmp.eq.s32.totalorder %s31, 0
    %p472 = por %p470, %p471
    %p473 = scmp.le.s32.totalorder 1, %s25
    %p474 = scmp.lt.s32.totalorder %s25, 3
    %p475 = pnand %p473, %p474
    %p476 = pneg %p475
    // Predicated region
    $region9: #{ecodepth4_forward.3} parent=5 // pred_check
      _
    $region10: #{ecodepth4_forward.3} parent=5 // pred_check_branch
      %478 = sbr.rel (%p475) target = $region12
    $region11: #{ecodepth4_forward.3} parent=5 // pred_region
      %s479 = ssub.s32 %s25, 1
      // Predicated region
      $region13: #{ecodepth4_forward.3} parent=11 // pred_check
        %p480 = pneg %p124
      $region14: #{ecodepth4_forward.3} parent=11 // pred_check_branch
        %482 = sbr.rel (%p480) target = $region16
      $region15: #{ecodepth4_forward.3} parent=11 // pred_region
        _
      $region16: #{ecodepth4_forward.3} parent=11 // pred_fallthru
        _
      // Predicated region
      $region17: #{ecodepth4_forward.3} parent=11 // pred_check
        %p483 = pneg %p145
      $region18: #{ecodepth4_forward.3} parent=11 // pred_check_branch
        %485 = sbr.rel (%p483) target = $region20
      $region19: #{ecodepth4_forward.3} parent=11 // pred_region
        _
      $region20: #{ecodepth4_forward.3} parent=11 // pred_fallthru
        _
      // Predicated region
      $region21: #{ecodepth4_forward.3} parent=11 // pred_check
        %p486 = pneg %p166
      $region22: #{ecodepth4_forward.3} parent=11 // pred_check_branch
        %488 = sbr.rel (%p486) target = $region24
      $region23: #{ecodepth4_forward.3} parent=11 // pred_region
        _
      $region24: #{ecodepth4_forward.3} parent=11 // pred_fallthru
        _
      // Predicated region
      $region25: #{ecodepth4_forward.3} parent=11 // pred_check
        %p489 = pneg %p187
      $region26: #{ecodepth4_forward.3} parent=11 // pred_check_branch
        %491 = sbr.rel (%p489) target = $region28
      $region27: #{ecodepth4_forward.3} parent=11 // pred_region
        _
      $region28: #{ecodepth4_forward.3} parent=11 // pred_fallthru
        _
      // Predicated region
      $region29: #{ecodepth4_forward.3} parent=11 // pred_check
        %p492 = pneg %p208
      $region30: #{ecodepth4_forward.3} parent=11 // pred_check_branch
        %494 = sbr.rel (%p492) target = $region32
      $region31: #{ecodepth4_forward.3} parent=11 // pred_region
        _
      $region32: #{ecodepth4_forward.3} parent=11 // pred_fallthru
        _
      // Predicated region
      $region33: #{ecodepth4_forward.3} parent=11 // pred_check
        %p495 = pneg %p229
      $region34: #{ecodepth4_forward.3} parent=11 // pred_check_branch
        %497 = sbr.rel (%p495) target = $region36
      $region35: #{ecodepth4_forward.3} parent=11 // pred_region
        _
      $region36: #{ecodepth4_forward.3} parent=11 // pred_fallthru
        _
      // Predicated region
      $region37: #{ecodepth4_forward.3} parent=11 // pred_check
        %p498 = pneg %p250
      $region38: #{ecodepth4_forward.3} parent=11 // pred_check_branch
        %500 = sbr.rel (%p498) target = $region40
      $region39: #{ecodepth4_forward.3} parent=11 // pred_region
        _
      $region40: #{ecodepth4_forward.3} parent=11 // pred_fallthru
        _
      // Predicated region
      $region41: #{ecodepth4_forward.3} parent=11 // pred_check
        %p501 = pneg %p271
      $region42: #{ecodepth4_forward.3} parent=11 // pred_check_branch
        %503 = sbr.rel (%p501) target = $region44
      $region43: #{ecodepth4_forward.3} parent=11 // pred_region
        _
      $region44: #{ecodepth4_forward.3} parent=11 // pred_fallthru
        _
      // Predicated region
      $region45: #{ecodepth4_forward.3} parent=11 // pred_check
        %p504 = pneg %p292
      $region46: #{ecodepth4_forward.3} parent=11 // pred_check_branch
        %506 = sbr.rel (%p504) target = $region48
      $region47: #{ecodepth4_forward.3} parent=11 // pred_region
        _
      $region48: #{ecodepth4_forward.3} parent=11 // pred_fallthru
        _
      // Predicated region
      $region49: #{ecodepth4_forward.3} parent=11 // pred_check
        %p507 = pneg %p313
      $region50: #{ecodepth4_forward.3} parent=11 // pred_check_branch
        %509 = sbr.rel (%p507) target = $region52
      $region51: #{ecodepth4_forward.3} parent=11 // pred_region
        _
      $region52: #{ecodepth4_forward.3} parent=11 // pred_fallthru
        _
      // Predicated region
      $region53: #{ecodepth4_forward.3} parent=11 // pred_check
        %p510 = pneg %p334
      $region54: #{ecodepth4_forward.3} parent=11 // pred_check_branch
        %512 = sbr.rel (%p510) target = $region56
      $region55: #{ecodepth4_forward.3} parent=11 // pred_region
        _
      $region56: #{ecodepth4_forward.3} parent=11 // pred_fallthru
        _
      // Predicated region
      $region57: #{ecodepth4_forward.3} parent=11 // pred_check
        %p513 = pneg %p355
      $region58: #{ecodepth4_forward.3} parent=11 // pred_check_branch
        %515 = sbr.rel (%p513) target = $region60
      $region59: #{ecodepth4_forward.3} parent=11 // pred_region
        _
      $region60: #{ecodepth4_forward.3} parent=11 // pred_fallthru
        _
      // Predicated region
      $region61: #{ecodepth4_forward.3} parent=11 // pred_check
        %p516 = pneg %p376
      $region62: #{ecodepth4_forward.3} parent=11 // pred_check_branch
        %518 = sbr.rel (%p516) target = $region64
      $region63: #{ecodepth4_forward.3} parent=11 // pred_region
        _
      $region64: #{ecodepth4_forward.3} parent=11 // pred_fallthru
        _
      // Predicated region
      $region65: #{ecodepth4_forward.3} parent=11 // pred_check
        %p519 = pneg %p397
      $region66: #{ecodepth4_forward.3} parent=11 // pred_check_branch
        %521 = sbr.rel (%p519) target = $region68
      $region67: #{ecodepth4_forward.3} parent=11 // pred_region
        _
      $region68: #{ecodepth4_forward.3} parent=11 // pred_fallthru
        _
      // Predicated region
      $region69: #{ecodepth4_forward.3} parent=11 // pred_check
        %p522 = pneg %p418
      $region70: #{ecodepth4_forward.3} parent=11 // pred_check_branch
        %524 = sbr.rel (%p522) target = $region72
      $region71: #{ecodepth4_forward.3} parent=11 // pred_region
        _
      $region72: #{ecodepth4_forward.3} parent=11 // pred_fallthru
        _
      // Predicated region
      $region73: #{ecodepth4_forward.3} parent=11 // pred_check
        %p525 = pneg %p439
      $region74: #{ecodepth4_forward.3} parent=11 // pred_check_branch
        %527 = sbr.rel (%p525) target = $region76
      $region75: #{ecodepth4_forward.3} parent=11 // pred_region
        _
      $region76: #{ecodepth4_forward.3} parent=11 // pred_fallthru
        _
    $region12: #{ecodepth4_forward.3} parent=5 // pred_fallthru
      _
    %p528 = scmp.lt.s32.totalorder %s25, 2
    // Predicated region
    $region77: #{ecodepth4_forward.3} parent=5 // pred_check
      %p529 = pneg %p528
    $region78: #{ecodepth4_forward.3} parent=5 // pred_check_branch
      %531 = sbr.rel (%p529) target = $region80
    $region79: #{ecodepth4_forward.3} parent=5 // pred_region
      // Predicated region
      $region81: #{ecodepth4_forward.3} parent=79 // pred_check
        %p532 = pneg %p45
      $region82: #{ecodepth4_forward.3} parent=79 // pred_check_branch
        %534 = sbr.rel (%p532) target = $region84
      $region83: #{ecodepth4_forward.3} parent=79 // pred_region
        %p535 = scmp.lt.s32.totalorder %s25, 1
        %s536 = scalar_select %p535, %s25, 1
        %s537 = smul.addr %s536, 32
        %s538 = smul.addr %s537, 4
        %s539 = scalar_lea.vmem %s0, %s538
      $region84: #{ecodepth4_forward.3} parent=79 // pred_fallthru
        _
      // Predicated region
      $region85: #{ecodepth4_forward.3} parent=79 // pred_check
        %p540 = pneg %p71
      $region86: #{ecodepth4_forward.3} parent=79 // pred_check_branch
        %542 = sbr.rel (%p540) target = $region88
      $region87: #{ecodepth4_forward.3} parent=79 // pred_region
        %p543 = scmp.lt.s32.totalorder %s25, 1
        %s544 = scalar_select %p543, %s25, 1
        %s545 = smul.addr %s544, 8
        %s546 = smul.addr %s545, 4
        %s547 = scalar_lea.vmem %s1, %s546
      $region88: #{ecodepth4_forward.3} parent=79 // pred_fallthru
        _
      // Predicated region
      $region89: #{ecodepth4_forward.3} parent=79 // pred_check
        %p548 = pneg %p97
      $region90: #{ecodepth4_forward.3} parent=79 // pred_check_branch
        %550 = sbr.rel (%p548) target = $region92
      $region91: #{ecodepth4_forward.3} parent=79 // pred_region
        %p551 = scmp.lt.s32.totalorder %s25, 1
        %s552 = scalar_select %p551, %s25, 1
        %s553 = smul.addr %s552, 2
        %s554 = smul.addr %s553, 4
        %s555 = scalar_lea.vmem %s2, %s554
      $region92: #{ecodepth4_forward.3} parent=79 // pred_fallthru
        _
    $region80: #{ecodepth4_forward.3} parent=5 // pred_fallthru
      _
    %p556 = scmp.le.s32.totalorder 1, %s25
    %p557 = scmp.lt.s32.totalorder %s25, 3
    %p558 = pnand %p556, %p557
    %p559 = pneg %p558
    // Predicated region
    $region93: #{ecodepth4_forward.3} parent=5 // pred_check
      _
    $region94: #{ecodepth4_forward.3} parent=5 // pred_check_branch
      %561 = sbr.rel (%p558) target = $region96
    $region95: #{ecodepth4_forward.3} parent=5 // pred_region
      %s562 = ssub.s32 %s25, 1
      %p563 = scmp.lt.s32.totalorder %s30, 1
      %s564 = scalar_select %p563, %s30, 1
      %s565 = smul.addr %s564, 32
      %s566 = smul.addr %s565, 4
      %s567 = scalar_lea.vmem %s0, %s566
      %p568 = pneg %p51
      %p569 = pneg %p48
      %p570 = scmp.lt.s32.totalorder %s30, 1
      %s571 = scalar_select %p570, %s30, 1
      %s572 = smul.addr %s571, 8
      %s573 = smul.addr %s572, 4
      %s574 = scalar_lea.vmem %s1, %s573
      %p575 = pneg %p77
      %p576 = pneg %p74
      %p577 = scmp.lt.s32.totalorder %s30, 1
      %s578 = scalar_select %p577, %s30, 1
      %s579 = smul.addr %s578, 2
      %s580 = smul.addr %s579, 4
      %s581 = scalar_lea.vmem %s2, %s580
      %p582 = pneg %p103
      %p583 = pneg %p100
      %p584 = pneg %p124
      %p585 = pneg %p121
      %p586 = pneg %p145
      %p587 = pneg %p142
      %p588 = pneg %p166
      %p589 = pneg %p163
      %p590 = pneg %p187
      %p591 = pneg %p184
      %p592 = pneg %p208
      %p593 = pneg %p205
      %p594 = pneg %p229
      %p595 = pneg %p226
      %p596 = pneg %p250
      %p597 = pneg %p247
      %p598 = pneg %p271
      %p599 = pneg %p268
      %p600 = pneg %p292
      %p601 = pneg %p289
      %p602 = pneg %p313
      %p603 = pneg %p310
      %p604 = pneg %p334
      %p605 = pneg %p331
      %p606 = pneg %p355
      %p607 = pneg %p352
      %p608 = pneg %p376
      %p609 = pneg %p373
      %p610 = pneg %p397
      %p611 = pneg %p394
      %p612 = pneg %p418
      %p613 = pneg %p415
      %p614 = pneg %p439
      %p615 = pneg %p436
      %p616 = pneg %p465
      %p617 = pneg %p462
      %p618 = scmp.lt.s32.totalorder %s30, 1
      %s619 = scalar_select %p618, %s30, 1
      %s620 = smul.addr %s619, 2
      %s621 = smul.addr %s620, 8
      %s622 = scalar_lea.vmem %s19, %s621
      %p623 = scmp.lt.s32.totalorder %s30, 1
      %s624 = scalar_select %p623, %s30, 1
      %s625 = smul.addr %s624, 32
      %s626 = smul.addr %s625, 4
      %s627 = scalar_lea.vmem %s0, %s626
      %p628 = scmp.lt.s32.totalorder %s30, 1
      %s629 = scalar_select %p628, %s30, 1
      %s630 = smul.addr %s629, 8
      %s631 = smul.addr %s630, 4
      %s632 = scalar_lea.vmem %s1, %s631
      %p633 = scmp.lt.s32.totalorder %s30, 1
      %s634 = scalar_select %p633, %s30, 1
      %s635 = smul.addr %s634, 2
      %s636 = smul.addr %s635, 4
      %s637 = scalar_lea.vmem %s2, %s636
      %p638 = scmp.lt.s32.totalorder %s30, 1
      %s639 = scalar_select %p638, %s30, 1
      %s640 = smul.addr %s639, 2
      %s641 = smul.addr %s640, 8
      %s642 = scalar_lea.vmem %s19, %s641
      %v644 = vld [vmem:[%s627] sm:$0xf]
      %v645 = vld [vmem:[%s627 + $0x4] sm:$0xf]
      %v646 = vld [vmem:[%s627 + $0x8] sm:$0xf]
      %v647 = vld [vmem:[%s627 + $0xc] sm:$0xf]
      %v648 = vld [vmem:[%s627 + $0x10] sm:$0xf]
      %v649 = vld [vmem:[%s627 + $0x14] sm:$0xf]
      %v650 = vld [vmem:[%s627 + $0x18] sm:$0xf]
      %v651 = vld [vmem:[%s627 + $0x1c] sm:$0xf]
      %v652 = vld [vmem:[%s627 + $0x20] sm:$0xf]
      %v653 = vld [vmem:[%s627 + $0x24] sm:$0xf]
      %v654 = vld [vmem:[%s627 + $0x28] sm:$0xf]
      %v655 = vld [vmem:[%s627 + $0x2c] sm:$0xf]
      %v656 = vld [vmem:[%s627 + $0x30] sm:$0xf]
      %v657 = vld [vmem:[%s627 + $0x34] sm:$0xf]
      %v658 = vld [vmem:[%s627 + $0x38] sm:$0xf]
      %v659 = vld [vmem:[%s627 + $0x3c] sm:$0xf]
      %v660 = vld [vmem:[%s627 + $0x40] sm:$0xf]
      %v661 = vld [vmem:[%s627 + $0x44] sm:$0xf]
      %v662 = vld [vmem:[%s627 + $0x48] sm:$0xf]
      %v663 = vld [vmem:[%s627 + $0x4c] sm:$0xf]
      %v664 = vld [vmem:[%s627 + $0x50] sm:$0xf]
      %v665 = vld [vmem:[%s627 + $0x54] sm:$0xf]
      %v666 = vld [vmem:[%s627 + $0x58] sm:$0xf]
      %v667 = vld [vmem:[%s627 + $0x5c] sm:$0xf]
      %v668 = vld [vmem:[%s627 + $0x60] sm:$0xf]
      %v669 = vld [vmem:[%s627 + $0x64] sm:$0xf]
      %v670 = vld [vmem:[%s627 + $0x68] sm:$0xf]
      %v671 = vld [vmem:[%s627 + $0x6c] sm:$0xf]
      %v672 = vld [vmem:[%s627 + $0x70] sm:$0xf]
      %v673 = vld [vmem:[%s627 + $0x74] sm:$0xf]
      %v674 = vld [vmem:[%s627 + $0x78] sm:$0xf]
      %v675 = vld [vmem:[%s627 + $0x7c] sm:$0xf]
      %v676 = vld [vmem:[%s3] sm:$0xff]
      %v677 = vld [vmem:[%s3 + $0x8] sm:$0xff]
      %v678 = vld [vmem:[%s3 + $0x10] sm:$0xff]
      %v679 = vld [vmem:[%s3 + $0x18] sm:$0xff]
      %v680 = vld [vmem:[%s3 + $0x20] sm:$0xff]
      %v681 = vld [vmem:[%s3 + $0x28] sm:$0xff]
      %v682 = vld [vmem:[%s3 + $0x30] sm:$0xff]
      %v683 = vld [vmem:[%s3 + $0x38] sm:$0xff]
      %v684 = vld [vmem:[%s3 + $0x40] sm:$0xff]
      %v685 = vld [vmem:[%s3 + $0x48] sm:$0xff]
      %v686 = vld [vmem:[%s3 + $0x50] sm:$0xff]
      %v687 = vld [vmem:[%s3 + $0x58] sm:$0xff]
      %v688 = vld [vmem:[%s3 + $0x60] sm:$0xff]
      %v689 = vld [vmem:[%s3 + $0x68] sm:$0xff]
      %v690 = vld [vmem:[%s3 + $0x70] sm:$0xff]
      %v691 = vld [vmem:[%s3 + $0x78] sm:$0xff]
      %v692 = vld [vmem:[%s3 + $0x80] sm:$0xff]
      %v693 = vld [vmem:[%s3 + $0x88] sm:$0xff]
      %v694 = vld [vmem:[%s3 + $0x90] sm:$0xff]
      %v695 = vld [vmem:[%s3 + $0x98] sm:$0xff]
      %v696 = vld [vmem:[%s3 + $0xa0] sm:$0xff]
      %v697 = vld [vmem:[%s3 + $0xa8] sm:$0xff]
      %v698 = vld [vmem:[%s3 + $0xb0] sm:$0xff]
      %v699 = vld [vmem:[%s3 + $0xb8] sm:$0xff]
      %v700 = vld [vmem:[%s3 + $0xc0] sm:$0xff]
      %v701 = vld [vmem:[%s3 + $0xc8] sm:$0xff]
      %v702 = vld [vmem:[%s3 + $0xd0] sm:$0xff]
      %v703 = vld [vmem:[%s3 + $0xd8] sm:$0xff]
      %v704 = vld [vmem:[%s3 + $0xe0] sm:$0xff]
      %v705 = vld [vmem:[%s3 + $0xe8] sm:$0xff]
      %v706 = vld [vmem:[%s3 + $0xf0] sm:$0xff]
      %v707 = vld [vmem:[%s3 + $0xf8] sm:$0xff]
      %v708 = vld [vmem:[%s3 + $0x100] sm:$0xff]
      %v709 = vld [vmem:[%s3 + $0x108] sm:$0xff]
      %v710 = vld [vmem:[%s3 + $0x110] sm:$0xff]
      %v711 = vld [vmem:[%s3 + $0x118] sm:$0xff]
      %v712 = vld [vmem:[%s3 + $0x120] sm:$0xff]
      %v713 = vld [vmem:[%s3 + $0x128] sm:$0xff]
      %v714 = vld [vmem:[%s3 + $0x130] sm:$0xff]
      %v715 = vld [vmem:[%s3 + $0x138] sm:$0xff]
      %v716 = vld [vmem:[%s3 + $0x140] sm:$0xff]
      %v717 = vld [vmem:[%s3 + $0x148] sm:$0xff]
      %v718 = vld [vmem:[%s3 + $0x150] sm:$0xff]
      %v719 = vld [vmem:[%s3 + $0x158] sm:$0xff]
      %v720 = vld [vmem:[%s3 + $0x160] sm:$0xff]
      %v721 = vld [vmem:[%s3 + $0x168] sm:$0xff]
      %v722 = vld [vmem:[%s3 + $0x170] sm:$0xff]
      %v723 = vld [vmem:[%s3 + $0x178] sm:$0xff]
      %v724 = vld [vmem:[%s3 + $0x180] sm:$0xff]
      %v725 = vld [vmem:[%s3 + $0x188] sm:$0xff]
      %v726 = vld [vmem:[%s3 + $0x190] sm:$0xff]
      %v727 = vld [vmem:[%s3 + $0x198] sm:$0xff]
      %v728 = vld [vmem:[%s3 + $0x1a0] sm:$0xff]
      %v729 = vld [vmem:[%s3 + $0x1a8] sm:$0xff]
      %v730 = vld [vmem:[%s3 + $0x1b0] sm:$0xff]
      %v731 = vld [vmem:[%s3 + $0x1b8] sm:$0xff]
      %v732 = vld [vmem:[%s3 + $0x1c0] sm:$0xff]
      %v733 = vld [vmem:[%s3 + $0x1c8] sm:$0xff]
      %v734 = vld [vmem:[%s3 + $0x1d0] sm:$0xff]
      %v735 = vld [vmem:[%s3 + $0x1d8] sm:$0xff]
      %v736 = vld [vmem:[%s3 + $0x1e0] sm:$0xff]
      %v737 = vld [vmem:[%s3 + $0x1e8] sm:$0xff]
      %v738 = vld [vmem:[%s3 + $0x1f0] sm:$0xff]
      %v739 = vld [vmem:[%s3 + $0x1f8] sm:$0xff]
      %v740 = vld [vmem:[%s3 + $0x200] sm:$0xff]
      %v741 = vld [vmem:[%s3 + $0x208] sm:$0xff]
      %v742 = vld [vmem:[%s3 + $0x210] sm:$0xff]
      %v743 = vld [vmem:[%s3 + $0x218] sm:$0xff]
      %v744 = vld [vmem:[%s3 + $0x220] sm:$0xff]
      %v745 = vld [vmem:[%s3 + $0x228] sm:$0xff]
      %v746 = vld [vmem:[%s3 + $0x230] sm:$0xff]
      %v747 = vld [vmem:[%s3 + $0x238] sm:$0xff]
      %v820 = vunpack.c.l.b16 %v676
      %v821 = vunpack.c.h.b16 %v676
      %v822 = vunpack.c.l.b16 %v677
      %v823 = vunpack.c.h.b16 %v677
      %v824 = vunpack.c.l.b16 %v678
      %v825 = vunpack.c.h.b16 %v678
      %v826 = vunpack.c.l.b16 %v679
      %v827 = vunpack.c.h.b16 %v679
      %v828 = vunpack.c.l.b16 %v680
      %v829 = vunpack.c.h.b16 %v680
      %v830 = vunpack.c.l.b16 %v681
      %v831 = vunpack.c.h.b16 %v681
      %v832 = vunpack.c.l.b16 %v682
      %v833 = vunpack.c.h.b16 %v682
      %v834 = vunpack.c.l.b16 %v683
      %v835 = vunpack.c.h.b16 %v683
      %v836 = vunpack.c.l.b16 %v684
      %v837 = vunpack.c.h.b16 %v684
      %v838 = vunpack.c.l.b16 %v685
      %v839 = vunpack.c.h.b16 %v685
      %v840 = vunpack.c.l.b16 %v686
      %v841 = vunpack.c.h.b16 %v686
      %v842 = vunpack.c.l.b16 %v687
      %v843 = vunpack.c.h.b16 %v687
      %v844 = vunpack.c.l.b16 %v688
      %v845 = vunpack.c.h.b16 %v688
      %v846 = vunpack.c.l.b16 %v689
      %v847 = vunpack.c.h.b16 %v689
      %v848 = vunpack.c.l.b16 %v690
      %v849 = vunpack.c.h.b16 %v690
      %v850 = vunpack.c.l.b16 %v691
      %v851 = vunpack.c.h.b16 %v691
      %v852 = vunpack.c.l.b16 %v692
      %v853 = vunpack.c.h.b16 %v692
      %v854 = vunpack.c.l.b16 %v693
      %v855 = vunpack.c.h.b16 %v693
      %v856 = vunpack.c.l.b16 %v694
      %v857 = vunpack.c.h.b16 %v694
      %v858 = vunpack.c.l.b16 %v695
      %v859 = vunpack.c.h.b16 %v695
      %v860 = vunpack.c.l.b16 %v696
      %v861 = vunpack.c.h.b16 %v696
      %v862 = vunpack.c.l.b16 %v697
      %v863 = vunpack.c.h.b16 %v697
      %v864 = vunpack.c.l.b16 %v698
      %v865 = vunpack.c.h.b16 %v698
      %v866 = vunpack.c.l.b16 %v699
      %v867 = vunpack.c.h.b16 %v699
      %v868 = vunpack.c.l.b16 %v700
      %v869 = vunpack.c.h.b16 %v700
      %v870 = vunpack.c.l.b16 %v701
      %v871 = vunpack.c.h.b16 %v701
      %v872 = vunpack.c.l.b16 %v702
      %v873 = vunpack.c.h.b16 %v702
      %v874 = vunpack.c.l.b16 %v703
      %v875 = vunpack.c.h.b16 %v703
      %v876 = vunpack.c.l.b16 %v704
      %v877 = vunpack.c.h.b16 %v704
      %v878 = vunpack.c.l.b16 %v705
      %v879 = vunpack.c.h.b16 %v705
      %v880 = vunpack.c.l.b16 %v706
      %v881 = vunpack.c.h.b16 %v706
      %v882 = vunpack.c.l.b16 %v707
      %v883 = vunpack.c.h.b16 %v707
      %v884 = vunpack.c.l.b16 %v708
      %v885 = vunpack.c.h.b16 %v708
      %v886 = vunpack.c.l.b16 %v709
      %v887 = vunpack.c.h.b16 %v709
      %v888 = vunpack.c.l.b16 %v710
      %v889 = vunpack.c.h.b16 %v710
      %v890 = vunpack.c.l.b16 %v711
      %v891 = vunpack.c.h.b16 %v711
      %v892 = vunpack.c.l.b16 %v712
      %v893 = vunpack.c.h.b16 %v712
      %v894 = vunpack.c.l.b16 %v713
      %v895 = vunpack.c.h.b16 %v713
      %v896 = vunpack.c.l.b16 %v714
      %v897 = vunpack.c.h.b16 %v714
      %v898 = vunpack.c.l.b16 %v715
      %v899 = vunpack.c.h.b16 %v715
      %v900 = vunpack.c.l.b16 %v716
      %v901 = vunpack.c.h.b16 %v716
      %v902 = vunpack.c.l.b16 %v717
      %v903 = vunpack.c.h.b16 %v717
      %v904 = vunpack.c.l.b16 %v718
      %v905 = vunpack.c.h.b16 %v718
      %v906 = vunpack.c.l.b16 %v719
      %v907 = vunpack.c.h.b16 %v719
      %v908 = vunpack.c.l.b16 %v720
      %v909 = vunpack.c.h.b16 %v720
      %v910 = vunpack.c.l.b16 %v721
      %v911 = vunpack.c.h.b16 %v721
      %v912 = vunpack.c.l.b16 %v722
      %v913 = vunpack.c.h.b16 %v722
      %v914 = vunpack.c.l.b16 %v723
      %v915 = vunpack.c.h.b16 %v723
      %v916 = vunpack.c.l.b16 %v724
      %v917 = vunpack.c.h.b16 %v724
      %v918 = vunpack.c.l.b16 %v725
      %v919 = vunpack.c.h.b16 %v725
      %v920 = vunpack.c.l.b16 %v726
      %v921 = vunpack.c.h.b16 %v726
      %v922 = vunpack.c.l.b16 %v727
      %v923 = vunpack.c.h.b16 %v727
      %v924 = vunpack.c.l.b16 %v728
      %v925 = vunpack.c.h.b16 %v728
      %v926 = vunpack.c.l.b16 %v729
      %v927 = vunpack.c.h.b16 %v729
      %v928 = vunpack.c.l.b16 %v730
      %v929 = vunpack.c.h.b16 %v730
      %v930 = vunpack.c.l.b16 %v731
      %v931 = vunpack.c.h.b16 %v731
      %v932 = vunpack.c.l.b16 %v732
      %v933 = vunpack.c.h.b16 %v732
      %v934 = vunpack.c.l.b16 %v733
      %v935 = vunpack.c.h.b16 %v733
      %v936 = vunpack.c.l.b16 %v734
      %v937 = vunpack.c.h.b16 %v734
      %v938 = vunpack.c.l.b16 %v735
      %v939 = vunpack.c.h.b16 %v735
      %v940 = vunpack.c.l.b16 %v736
      %v941 = vunpack.c.h.b16 %v736
      %v942 = vunpack.c.l.b16 %v737
      %v943 = vunpack.c.h.b16 %v737
      %v944 = vunpack.c.l.b16 %v738
      %v945 = vunpack.c.h.b16 %v738
      %v946 = vunpack.c.l.b16 %v739
      %v947 = vunpack.c.h.b16 %v739
      %v948 = vunpack.c.l.b16 %v740
      %v949 = vunpack.c.h.b16 %v740
      %v950 = vunpack.c.l.b16 %v741
      %v951 = vunpack.c.h.b16 %v741
      %v952 = vunpack.c.l.b16 %v742
      %v953 = vunpack.c.h.b16 %v742
      %v954 = vunpack.c.l.b16 %v743
      %v955 = vunpack.c.h.b16 %v743
      %v956 = vunpack.c.l.b16 %v744
      %v957 = vunpack.c.h.b16 %v744
      %v958 = vunpack.c.l.b16 %v745
      %v959 = vunpack.c.h.b16 %v745
      %v960 = vunpack.c.l.b16 %v746
      %v961 = vunpack.c.h.b16 %v746
      %v962 = vunpack.c.l.b16 %v747
      %v963 = vunpack.c.h.b16 %v747
      %v964 = vpack.c.b16 %v822, %v820
      %v965 = vpack.c.b16 %v823, %v821
      %v966 = vpack.c.b16 %v826, %v824
      %v967 = vpack.c.b16 %v827, %v825
      %v968 = vpack.c.b16 %v830, %v828
      %v969 = vpack.c.b16 %v831, %v829
      %v970 = vpack.c.b16 %v834, %v832
      %v971 = vpack.c.b16 %v835, %v833
      %v972 = vpack.c.b16 %v838, %v836
      %v973 = vpack.c.b16 %v839, %v837
      %v974 = vpack.c.b16 %v842, %v840
      %v975 = vpack.c.b16 %v843, %v841
      %v976 = vpack.c.b16 %v846, %v844
      %v977 = vpack.c.b16 %v847, %v845
      %v978 = vpack.c.b16 %v850, %v848
      %v979 = vpack.c.b16 %v851, %v849
      %v980 = vpack.c.b16 %v854, %v852
      %v981 = vpack.c.b16 %v855, %v853
      %v982 = vpack.c.b16 %v858, %v856
      %v983 = vpack.c.b16 %v859, %v857
      %v984 = vpack.c.b16 %v862, %v860
      %v985 = vpack.c.b16 %v863, %v861
      %v986 = vpack.c.b16 %v866, %v864
      %v987 = vpack.c.b16 %v867, %v865
      %v988 = vpack.c.b16 %v870, %v868
      %v989 = vpack.c.b16 %v871, %v869
      %v990 = vpack.c.b16 %v874, %v872
      %v991 = vpack.c.b16 %v875, %v873
      %v992 = vpack.c.b16 %v878, %v876
      %v993 = vpack.c.b16 %v879, %v877
      %v994 = vpack.c.b16 %v882, %v880
      %v995 = vpack.c.b16 %v883, %v881
      %v996 = vpack.c.b16 %v886, %v884
      %v997 = vpack.c.b16 %v887, %v885
      %v998 = vpack.c.b16 %v890, %v888
      %v999 = vpack.c.b16 %v891, %v889
      %v1000 = vpack.c.b16 %v894, %v892
      %v1001 = vpack.c.b16 %v895, %v893
      %v1002 = vpack.c.b16 %v898, %v896
      %v1003 = vpack.c.b16 %v899, %v897
      %v1004 = vpack.c.b16 %v902, %v900
      %v1005 = vpack.c.b16 %v903, %v901
      %v1006 = vpack.c.b16 %v906, %v904
      %v1007 = vpack.c.b16 %v907, %v905
      %v1008 = vpack.c.b16 %v910, %v908
      %v1009 = vpack.c.b16 %v911, %v909
      %v1010 = vpack.c.b16 %v914, %v912
      %v1011 = vpack.c.b16 %v915, %v913
      %v1012 = vpack.c.b16 %v918, %v916
      %v1013 = vpack.c.b16 %v919, %v917
      %v1014 = vpack.c.b16 %v922, %v920
      %v1015 = vpack.c.b16 %v923, %v921
      %v1016 = vpack.c.b16 %v926, %v924
      %v1017 = vpack.c.b16 %v927, %v925
      %v1018 = vpack.c.b16 %v930, %v928
      %v1019 = vpack.c.b16 %v931, %v929
      %v1020 = vpack.c.b16 %v934, %v932
      %v1021 = vpack.c.b16 %v935, %v933
      %v1022 = vpack.c.b16 %v938, %v936
      %v1023 = vpack.c.b16 %v939, %v937
      %v1024 = vpack.c.b16 %v942, %v940
      %v1025 = vpack.c.b16 %v943, %v941
      %v1026 = vpack.c.b16 %v946, %v944
      %v1027 = vpack.c.b16 %v947, %v945
      %v1028 = vpack.c.b16 %v950, %v948
      %v1029 = vpack.c.b16 %v951, %v949
      %v1030 = vpack.c.b16 %v954, %v952
      %v1031 = vpack.c.b16 %v955, %v953
      %v1032 = vpack.c.b16 %v958, %v956
      %v1033 = vpack.c.b16 %v959, %v957
      %v1034 = vpack.c.b16 %v962, %v960
      %v1035 = vpack.c.b16 %v963, %v961
      %v1140 = vunpack.c.l.b16 %v644
      %v1141 = vunpack.c.l.b16 %v645
      %v1142 = vunpack.c.l.b16 %v646
      %v1143 = vunpack.c.l.b16 %v647
      %v1144 = vunpack.c.l.b16 %v648
      %v1145 = vunpack.c.l.b16 %v649
      %v1146 = vunpack.c.l.b16 %v650
      %v1147 = vunpack.c.l.b16 %v651
      %v1148 = vunpack.c.l.b16 %v652
      %v1149 = vunpack.c.l.b16 %v653
      %v1150 = vunpack.c.l.b16 %v654
      %v1151 = vunpack.c.l.b16 %v655
      %v1152 = vunpack.c.l.b16 %v656
      %v1153 = vunpack.c.l.b16 %v657
      %v1154 = vunpack.c.l.b16 %v658
      %v1155 = vunpack.c.l.b16 %v659
      %v1156 = vunpack.c.l.b16 %v660
      %v1157 = vunpack.c.l.b16 %v661
      %v1158 = vunpack.c.l.b16 %v662
      %v1159 = vunpack.c.l.b16 %v663
      %v1160 = vunpack.c.l.b16 %v664
      %v1161 = vunpack.c.l.b16 %v665
      %v1162 = vunpack.c.l.b16 %v666
      %v1163 = vunpack.c.l.b16 %v667
      %v1164 = vunpack.c.l.b16 %v668
      %v1165 = vunpack.c.l.b16 %v669
      %v1166 = vunpack.c.l.b16 %v670
      %v1167 = vunpack.c.l.b16 %v671
      %v1168 = vunpack.c.l.b16 %v672
      %v1169 = vunpack.c.l.b16 %v673
      %v1170 = vunpack.c.l.b16 %v674
      %v1171 = vunpack.c.l.b16 %v675
      %v1172 = vpack.c.b16 %v1141, %v1140
      %v1173 = vpack.c.b16 %v1143, %v1142
      %v1174 = vpack.c.b16 %v1145, %v1144
      %v1175 = vpack.c.b16 %v1147, %v1146
      %v1176 = vpack.c.b16 %v1149, %v1148
      %v1177 = vpack.c.b16 %v1151, %v1150
      %v1178 = vpack.c.b16 %v1153, %v1152
      %v1179 = vpack.c.b16 %v1155, %v1154
      %v1180 = vpack.c.b16 %v1157, %v1156
      %v1181 = vpack.c.b16 %v1159, %v1158
      %v1182 = vpack.c.b16 %v1161, %v1160
      %v1183 = vpack.c.b16 %v1163, %v1162
      %v1184 = vpack.c.b16 %v1165, %v1164
      %v1185 = vpack.c.b16 %v1167, %v1166
      %v1186 = vpack.c.b16 %v1169, %v1168
      %v1187 = vpack.c.b16 %v1171, %v1170
      %1204 = vmatprep.subr.bf16.mxu0 0
      %1205 = vmatpush1.bf16.msra.mxu0 %v1172
      %1206 = vmatprep.subr.bf16.mxu0 0
      %1207 = vmatpush1.bf16.msra.mxu0 %v1173
      %1208 = vmatprep.subr.bf16.mxu0 0
      %1209 = vmatpush1.bf16.msra.mxu0 %v1174
      %1210 = vmatprep.subr.bf16.mxu0 0
      %1211 = vmatpush1.bf16.msra.mxu0 %v1175
      %1212 = vmatprep.subr.bf16.mxu0 0
      %1213 = vmatpush1.bf16.msra.mxu0 %v1176
      %1214 = vmatprep.subr.bf16.mxu0 0
      %1215 = vmatpush1.bf16.msra.mxu0 %v1177
      %1216 = vmatprep.subr.bf16.mxu0 0
      %1217 = vmatpush1.bf16.msra.mxu0 %v1178
      %1218 = vmatprep.subr.bf16.mxu0 0
      %1219 = vmatpush1.bf16.msra.mxu0 %v1179
      %1220 = vmatprep.subr.bf16.mxu0 0
      %1221 = vmatpush1.bf16.msra.mxu0 %v1180
      %1222 = vmatprep.subr.bf16.mxu0 0
      %1223 = vmatpush1.bf16.msra.mxu0 %v1181
      %1224 = vmatprep.subr.bf16.mxu0 0
      %1225 = vmatpush1.bf16.msra.mxu0 %v1182
      %1226 = vmatprep.subr.bf16.mxu0 0
      %1227 = vmatpush1.bf16.msra.mxu0 %v1183
      %1228 = vmatprep.subr.bf16.mxu0 0
      %1229 = vmatpush1.bf16.msra.mxu0 %v1184
      %1230 = vmatprep.subr.bf16.mxu0 0
      %1231 = vmatpush1.bf16.msra.mxu0 %v1185
      %1232 = vmatprep.subr.bf16.mxu0 0
      %1233 = vmatpush1.bf16.msra.mxu0 %v1186
      %1234 = vmatprep.subr.bf16.mxu0 0
      %1235 = vmatpush1.bf16.msra.mxu0 %v1187
      %1236 = vmatprep.mubr.bf16.mxu0 %v965
      %1237 = vmatmul.mubr.bf16.gmra.mrb[0].mxu0 %v964
      %v1238 = vpop.f32.mrb[0].mxu0
      %v1239 = vadd.f32 0.0, %v1238
      %v1240 = vpop.f32.mrb[0].mxu0
      %v1241 = vpop.f32.mrb[0].mxu0
      %v1242 = vadd.f32 0.0, %v1241
      %v1243 = vpop.f32.mrb[0].mxu0
      %1244 = vmatprep.mubr.bf16.mxu0 %v967
      %1245 = vmatmul.mubr.bf16.gmra.mrb[0].mxu0 %v966
      %v1246 = vpop.f32.mrb[0].mxu0
      %v1247 = vadd.f32 0.0, %v1246
      %v1248 = vpop.f32.mrb[0].mxu0
      %v1249 = vpop.f32.mrb[0].mxu0
      %v1250 = vadd.f32 0.0, %v1249
      %v1251 = vpop.f32.mrb[0].mxu0
      %1252 = vmatprep.mubr.bf16.mxu0 %v969
      %1253 = vmatmul.mubr.bf16.gmra.mrb[0].mxu0 %v968
      %v1254 = vpop.f32.mrb[0].mxu0
      %v1255 = vadd.f32 0.0, %v1254
      %v1256 = vpop.f32.mrb[0].mxu0
      %v1257 = vpop.f32.mrb[0].mxu0
      %v1258 = vadd.f32 0.0, %v1257
      %v1259 = vpop.f32.mrb[0].mxu0
      %1260 = vmatprep.mubr.bf16.mxu0 %v971
      %1261 = vmatmul.mubr.bf16.gmra.mrb[0].mxu0 %v970
      %v1262 = vpop.f32.mrb[0].mxu0
      %v1263 = vadd.f32 0.0, %v1262
      %v1264 = vpop.f32.mrb[0].mxu0
      %v1265 = vpop.f32.mrb[0].mxu0
      %v1266 = vadd.f32 0.0, %v1265
      %v1267 = vpop.f32.mrb[0].mxu0
      %1268 = vmatprep.mubr.bf16.mxu0 %v973
      %1269 = vmatmul.mubr.bf16.gmra.mrb[0].mxu0 %v972
      %v1270 = vpop.f32.mrb[0].mxu0
      %v1271 = vadd.f32 0.0, %v1270
      %v1272 = vpop.f32.mrb[0].mxu0
      %v1273 = vpop.f32.mrb[0].mxu0
      %v1274 = vadd.f32 0.0, %v1273
      %v1275 = vpop.f32.mrb[0].mxu0
      %1276 = vmatprep.mubr.bf16.mxu0 %v975
      %1277 = vmatmul.mubr.bf16.gmra.mrb[0].mxu0 %v974
      %v1278 = vpop.f32.mrb[0].mxu0
      %v1279 = vadd.f32 0.0, %v1278
      %v1280 = vpop.f32.mrb[0].mxu0
      %v1281 = vpop.f32.mrb[0].mxu0
      %v1282 = vadd.f32 0.0, %v1281
      %v1283 = vpop.f32.mrb[0].mxu0
      %1284 = vmatprep.mubr.bf16.mxu0 %v977
      %1285 = vmatmul.mubr.bf16.gmra.mrb[0].mxu0 %v976
      %v1286 = vpop.f32.mrb[0].mxu0
      %v1287 = vadd.f32 0.0, %v1286
      %v1288 = vpop.f32.mrb[0].mxu0
      %v1289 = vpop.f32.mrb[0].mxu0
      %v1290 = vadd.f32 0.0, %v1289
      %v1291 = vpop.f32.mrb[0].mxu0
      %1292 = vmatprep.mubr.bf16.mxu0 %v979
      %1293 = vmatmul.mubr.bf16.gmra.mrb[0].mxu0 %v978
      %v1294 = vpop.f32.mrb[0].mxu0
      %v1295 = vadd.f32 0.0, %v1294
      %v1296 = vpop.f32.mrb[0].mxu0
      %v1297 = vpop.f32.mrb[0].mxu0
      %v1298 = vadd.f32 0.0, %v1297
      %v1299 = vpop.f32.mrb[0].mxu0
      %1300 = vmatprep.mubr.bf16.mxu0 %v981
      %1301 = vmatmul.mubr.bf16.gmra.mrb[0].mxu0 %v980
      %v1302 = vpop.f32.mrb[0].mxu0
      %v1303 = vadd.f32 0.0, %v1302
      %v1304 = vpop.f32.mrb[0].mxu0
      %v1305 = vpop.f32.mrb[0].mxu0
      %v1306 = vadd.f32 0.0, %v1305
      %v1307 = vpop.f32.mrb[0].mxu0
      %1308 = vmatprep.mubr.bf16.mxu0 %v983
      %1309 = vmatmul.mubr.bf16.gmra.mrb[0].mxu0 %v982
      %v1310 = vpop.f32.mrb[0].mxu0
      %v1311 = vadd.f32 0.0, %v1310
      %v1312 = vpop.f32.mrb[0].mxu0
      %v1313 = vpop.f32.mrb[0].mxu0
      %v1314 = vadd.f32 0.0, %v1313
      %v1315 = vpop.f32.mrb[0].mxu0
      %1316 = vmatprep.mubr.bf16.mxu0 %v985
      %1317 = vmatmul.mubr.bf16.gmra.mrb[0].mxu0 %v984
      %v1318 = vpop.f32.mrb[0].mxu0
      %v1319 = vadd.f32 0.0, %v1318
      %v1320 = vpop.f32.mrb[0].mxu0
      %v1321 = vpop.f32.mrb[0].mxu0
      %v1322 = vadd.f32 0.0, %v1321
      %v1323 = vpop.f32.mrb[0].mxu0
      %1324 = vmatprep.mubr.bf16.mxu0 %v987
      %1325 = vmatmul.mubr.bf16.gmra.mrb[0].mxu0 %v986
      %v1326 = vpop.f32.mrb[0].mxu0
      %v1327 = vadd.f32 0.0, %v1326
      %v1328 = vpop.f32.mrb[0].mxu0
      %v1329 = vpop.f32.mrb[0].mxu0
      %v1330 = vadd.f32 0.0, %v1329
      %v1331 = vpop.f32.mrb[0].mxu0
      %1332 = vmatprep.mubr.bf16.mxu0 %v989
      %1333 = vmatmul.mubr.bf16.gmra.mrb[0].mxu0 %v988
      %v1334 = vpop.f32.mrb[0].mxu0
      %v1335 = vadd.f32 0.0, %v1334
      %v1336 = vpop.f32.mrb[0].mxu0
      %v1337 = vpop.f32.mrb[0].mxu0
      %v1338 = vadd.f32 0.0, %v1337
      %v1339 = vpop.f32.mrb[0].mxu0
      %1340 = vmatprep.mubr.bf16.mxu0 %v991
      %1341 = vmatmul.mubr.bf16.gmra.mrb[0].mxu0 %v990
      %v1342 = vpop.f32.mrb[0].mxu0
      %v1343 = vadd.f32 0.0, %v1342
      %v1344 = vpop.f32.mrb[0].mxu0
      %v1345 = vpop.f32.mrb[0].mxu0
      %v1346 = vadd.f32 0.0, %v1345
      %v1347 = vpop.f32.mrb[0].mxu0
      %1348 = vmatprep.mubr.bf16.mxu0 %v993
      %1349 = vmatmul.mubr.bf16.gmra.mrb[0].mxu0 %v992
      %v1350 = vpop.f32.mrb[0].mxu0
      %v1351 = vadd.f32 0.0, %v1350
      %v1352 = vpop.f32.mrb[0].mxu0
      %v1353 = vpop.f32.mrb[0].mxu0
      %v1354 = vadd.f32 0.0, %v1353
      %v1355 = vpop.f32.mrb[0].mxu0
      %1356 = vmatprep.mubr.bf16.mxu0 %v995
      %1357 = vmatmul.mubr.bf16.gmra.mrb[0].mxu0 %v994
      %v1358 = vpop.f32.mrb[0].mxu0
      %v1359 = vadd.f32 0.0, %v1358
      %v1360 = vpop.f32.mrb[0].mxu0
      %v1361 = vpop.f32.mrb[0].mxu0
      %v1362 = vadd.f32 0.0, %v1361
      %v1363 = vpop.f32.mrb[0].mxu0
      %1364 = vmatprep.mubr.bf16.mxu0 %v997
      %1365 = vmatmul.mubr.bf16.gmra.mrb[0].mxu0 %v996
      %v1366 = vpop.f32.mrb[0].mxu0
      %v1367 = vadd.f32 0.0, %v1366
      %v1368 = vpop.f32.mrb[0].mxu0
      %v1369 = vpop.f32.mrb[0].mxu0
      %v1370 = vadd.f32 0.0, %v1369
      %v1371 = vpop.f32.mrb[0].mxu0
      %1372 = vmatprep.mubr.bf16.mxu0 %v999
      %1373 = vmatmul.mubr.bf16.gmra.mrb[0].mxu0 %v998
      %v1374 = vpop.f32.mrb[0].mxu0
      %v1375 = vadd.f32 0.0, %v1374
      %v1376 = vpop.f32.mrb[0].mxu0
      %v1377 = vpop.f32.mrb[0].mxu0
      %v1378 = vadd.f32 0.0, %v1377
      %v1379 = vpop.f32.mrb[0].mxu0
      %1380 = vmatprep.mubr.bf16.mxu0 %v1001
      %1381 = vmatmul.mubr.bf16.gmra.mrb[0].mxu0 %v1000
      %v1382 = vpop.f32.mrb[0].mxu0
      %v1383 = vadd.f32 0.0, %v1382
      %v1384 = vpop.f32.mrb[0].mxu0
      %v1385 = vpop.f32.mrb[0].mxu0
      %v1386 = vadd.f32 0.0, %v1385
      %v1387 = vpop.f32.mrb[0].mxu0
      %1388 = vmatprep.mubr.bf16.mxu0 %v1003
      %1389 = vmatmul.mubr.bf16.gmra.mrb[0].mxu0 %v1002
      %v1390 = vpop.f32.mrb[0].mxu0
      %v1391 = vadd.f32 0.0, %v1390
      %v1392 = vpop.f32.mrb[0].mxu0
      %v1393 = vpop.f32.mrb[0].mxu0
      %v1394 = vadd.f32 0.0, %v1393
      %v1395 = vpop.f32.mrb[0].mxu0
      %1396 = vmatprep.mubr.bf16.mxu0 %v1005
      %1397 = vmatmul.mubr.bf16.gmra.mrb[0].mxu0 %v1004
      %v1398 = vpop.f32.mrb[0].mxu0
      %v1399 = vadd.f32 0.0, %v1398
      %v1400 = vpop.f32.mrb[0].mxu0
      %v1401 = vpop.f32.mrb[0].mxu0
      %v1402 = vadd.f32 0.0, %v1401
      %v1403 = vpop.f32.mrb[0].mxu0
      %1404 = vmatprep.mubr.bf16.mxu0 %v1007
      %1405 = vmatmul.mubr.bf16.gmra.mrb[0].mxu0 %v1006
      %v1406 = vpop.f32.mrb[0].mxu0
      %v1407 = vadd.f32 0.0, %v1406
      %v1408 = vpop.f32.mrb[0].mxu0
      %v1409 = vpop.f32.mrb[0].mxu0
      %v1410 = vadd.f32 0.0, %v1409
      %v1411 = vpop.f32.mrb[0].mxu0
      %1412 = vmatprep.mubr.bf16.mxu0 %v1009
      %1413 = vmatmul.mubr.bf16.gmra.mrb[0].mxu0 %v1008
      %v1414 = vpop.f32.mrb[0].mxu0
      %v1415 = vadd.f32 0.0, %v1414
      %v1416 = vpop.f32.mrb[0].mxu0
      %v1417 = vpop.f32.mrb[0].mxu0
      %v1418 = vadd.f32 0.0, %v1417
      %v1419 = vpop.f32.mrb[0].mxu0
      %1420 = vmatprep.mubr.bf16.mxu0 %v1011
      %1421 = vmatmul.mubr.bf16.gmra.mrb[0].mxu0 %v1010
      %v1422 = vpop.f32.mrb[0].mxu0
      %v1423 = vadd.f32 0.0, %v1422
      %v1424 = vpop.f32.mrb[0].mxu0
      %v1425 = vpop.f32.mrb[0].mxu0
      %v1426 = vadd.f32 0.0, %v1425
      %v1427 = vpop.f32.mrb[0].mxu0
      %1428 = vmatprep.mubr.bf16.mxu0 %v1013
      %1429 = vmatmul.mubr.bf16.gmra.mrb[0].mxu0 %v1012
      %v1430 = vpop.f32.mrb[0].mxu0
      %v1431 = vadd.f32 0.0, %v1430
      %v1432 = vpop.f32.mrb[0].mxu0
      %v1433 = vpop.f32.mrb[0].mxu0
      %v1434 = vadd.f32 0.0, %v1433
      %v1435 = vpop.f32.mrb[0].mxu0
      %1436 = vmatprep.mubr.bf16.mxu0 %v1015
      %1437 = vmatmul.mubr.bf16.gmra.mrb[0].mxu0 %v1014
      %v1438 = vpop.f32.mrb[0].mxu0
      %v1439 = vadd.f32 0.0, %v1438
      %v1440 = vpop.f32.mrb[0].mxu0
      %v1441 = vpop.f32.mrb[0].mxu0
      %v1442 = vadd.f32 0.0, %v1441
      %v1443 = vpop.f32.mrb[0].mxu0
      %1444 = vmatprep.mubr.bf16.mxu0 %v1017
      %1445 = vmatmul.mubr.bf16.gmra.mrb[0].mxu0 %v1016
      %v1446 = vpop.f32.mrb[0].mxu0
      %v1447 = vadd.f32 0.0, %v1446
      %v1448 = vpop.f32.mrb[0].mxu0
      %v1449 = vpop.f32.mrb[0].mxu0
      %v1450 = vadd.f32 0.0, %v1449
      %v1451 = vpop.f32.mrb[0].mxu0
      %1452 = vmatprep.mubr.bf16.mxu0 %v1019
      %1453 = vmatmul.mubr.bf16.gmra.mrb[0].mxu0 %v1018
      %v1454 = vpop.f32.mrb[0].mxu0
      %v1455 = vadd.f32 0.0, %v1454
      %v1456 = vpop.f32.mrb[0].mxu0
      %v1457 = vpop.f32.mrb[0].mxu0
      %v1458 = vadd.f32 0.0, %v1457
      %v1459 = vpop.f32.mrb[0].mxu0
      %1460 = vmatprep.mubr.bf16.mxu0 %v1021
      %1461 = vmatmul.mubr.bf16.gmra.mrb[0].mxu0 %v1020
      %v1462 = vpop.f32.mrb[0].mxu0
      %v1463 = vadd.f32 0.0, %v1462
      %v1464 = vpop.f32.mrb[0].mxu0
      %v1465 = vpop.f32.mrb[0].mxu0
      %v1466 = vadd.f32 0.0, %v1465
      %v1467 = vpop.f32.mrb[0].mxu0
      %1468 = vmatprep.mubr.bf16.mxu0 %v1023
      %1469 = vmatmul.mubr.bf16.gmra.mrb[0].mxu0 %v1022
      %v1470 = vpop.f32.mrb[0].mxu0
      %v1471 = vadd.f32 0.0, %v1470
      %v1472 = vpop.f32.mrb[0].mxu0
      %v1473 = vpop.f32.mrb[0].mxu0
      %v1474 = vadd.f32 0.0, %v1473
      %v1475 = vpop.f32.mrb[0].mxu0
      %1476 = vmatprep.mubr.bf16.mxu0 %v1025
      %1477 = vmatmul.mubr.bf16.gmra.mrb[0].mxu0 %v1024
      %v1478 = vpop.f32.mrb[0].mxu0
      %v1479 = vadd.f32 0.0, %v1478
      %v1480 = vpop.f32.mrb[0].mxu0
      %v1481 = vpop.f32.mrb[0].mxu0
      %v1482 = vadd.f32 0.0, %v1481
      %v1483 = vpop.f32.mrb[0].mxu0
      %1484 = vmatprep.mubr.bf16.mxu0 %v1027
      %1485 = vmatmul.mubr.bf16.gmra.mrb[0].mxu0 %v1026
      %v1486 = vpop.f32.mrb[0].mxu0
      %v1487 = vadd.f32 0.0, %v1486
      %v1488 = vpop.f32.mrb[0].mxu0
      %v1489 = vpop.f32.mrb[0].mxu0
      %v1490 = vadd.f32 0.0, %v1489
      %v1491 = vpop.f32.mrb[0].mxu0
      %1492 = vmatprep.mubr.bf16.mxu0 %v1029
      %1493 = vmatmul.mubr.bf16.gmra.mrb[0].mxu0 %v1028
      %v1494 = vpop.f32.mrb[0].mxu0
      %v1495 = vadd.f32 0.0, %v1494
      %v1496 = vpop.f32.mrb[0].mxu0
      %v1497 = vpop.f32.mrb[0].mxu0
      %v1498 = vadd.f32 0.0, %v1497
      %v1499 = vpop.f32.mrb[0].mxu0
      %1500 = vmatprep.mubr.bf16.mxu0 %v1031
      %1501 = vmatmul.mubr.bf16.gmra.mrb[0].mxu0 %v1030
      %v1502 = vpop.f32.mrb[0].mxu0
      %v1503 = vadd.f32 0.0, %v1502
      %v1504 = vpop.f32.mrb[0].mxu0
      %v1505 = vpop.f32.mrb[0].mxu0
      %v1506 = vadd.f32 0.0, %v1505
      %v1507 = vpop.f32.mrb[0].mxu0
      %1508 = vmatprep.mubr.bf16.mxu0 %v1033
      %1509 = vmatmul.mubr.bf16.gmra.mrb[0].mxu0 %v1032
      %v1510 = vpop.f32.mrb[0].mxu0
      %v1511 = vadd.f32 0.0, %v1510
      %v1512 = vpop.f32.mrb[0].mxu0
      %v1513 = vpop.f32.mrb[0].mxu0
      %v1514 = vadd.f32 0.0, %v1513
      %v1515 = vpop.f32.mrb[0].mxu0
      %1516 = vmatprep.mubr.bf16.mxu0 %v1035
      %1517 = vmatmul.mubr.bf16.gmra.mrb[0].mxu0 %v1034
      %v1518 = vpop.f32.mrb[0].mxu0
      %v1519 = vadd.f32 0.0, %v1518
      %v1520 = vpop.f32.mrb[0].mxu0
      %v1521 = vpop.f32.mrb[0].mxu0
      %v1522 = vadd.f32 0.0, %v1521
      %v1523 = vpop.f32.mrb[0].mxu0
      %1524 = vdwg.mxu0
      %v1525 = vpack.c.bf16 %v1242, %v1239
      %v1526 = vpack.c.bf16 %v1250, %v1247
      %v1527 = vpack.c.bf16 %v1258, %v1255
      %v1528 = vpack.c.bf16 %v1266, %v1263
      %v1529 = vpack.c.bf16 %v1274, %v1271
      %v1530 = vpack.c.bf16 %v1282, %v1279
      %v1531 = vpack.c.bf16 %v1290, %v1287
      %v1532 = vpack.c.bf16 %v1298, %v1295
      %v1533 = vpack.c.bf16 %v1306, %v1303
      %v1534 = vpack.c.bf16 %v1314, %v1311
      %v1535 = vpack.c.bf16 %v1322, %v1319
      %v1536 = vpack.c.bf16 %v1330, %v1327
      %v1537 = vpack.c.bf16 %v1338, %v1335
      %v1538 = vpack.c.bf16 %v1346, %v1343
      %v1539 = vpack.c.bf16 %v1354, %v1351
      %v1540 = vpack.c.bf16 %v1362, %v1359
      %v1541 = vpack.c.bf16 %v1370, %v1367
      %v1542 = vpack.c.bf16 %v1378, %v1375
      %v1543 = vpack.c.bf16 %v1386, %v1383
      %v1544 = vpack.c.bf16 %v1394, %v1391
      %v1545 = vpack.c.bf16 %v1402, %v1399
      %v1546 = vpack.c.bf16 %v1410, %v1407
      %v1547 = vpack.c.bf16 %v1418, %v1415
      %v1548 = vpack.c.bf16 %v1426, %v1423
      %v1549 = vpack.c.bf16 %v1434, %v1431
      %v1550 = vpack.c.bf16 %v1442, %v1439
      %v1551 = vpack.c.bf16 %v1450, %v1447
      %v1552 = vpack.c.bf16 %v1458, %v1455
      %v1553 = vpack.c.bf16 %v1466, %v1463
      %v1554 = vpack.c.bf16 %v1474, %v1471
      %v1555 = vpack.c.bf16 %v1482, %v1479
      %v1556 = vpack.c.bf16 %v1490, %v1487
      %v1557 = vpack.c.bf16 %v1498, %v1495
      %v1558 = vpack.c.bf16 %v1506, %v1503
      %v1559 = vpack.c.bf16 %v1514, %v1511
      %v1560 = vpack.c.bf16 %v1522, %v1519
      %v1561 = vld [vmem:[%s5] sm:$0xf]
      %v1562 = vld [vmem:[%s5 + $0x4] sm:$0xf]
      %v1563 = vld [vmem:[%s5 + $0x8] sm:$0xf]
      %v1564 = vld [vmem:[%s5 + $0xc] sm:$0xf]
      %s1565 = scalar_lea.vmem %s5, 16
      %v1566 = vld [vmem:[%s1565] sm:$0xf]
      %v1567 = vld [vmem:[%s1565 + $0x4] sm:$0xf]
      %v1568 = vld [vmem:[%s1565 + $0x8] sm:$0xf]
      %v1569 = vld [vmem:[%s1565 + $0xc] sm:$0xf]
      %v1574 = vunpack.c.l.b16 %v1566
      %v1575 = vunpack.c.l.b16 %v1567
      %v1576 = vunpack.c.l.b16 %v1568
      %v1577 = vunpack.c.l.b16 %v1569
      %v1578 = vpack.c.b16 %v1575, %v1574
      %v1579 = vpack.c.b16 %v1577, %v1576
      %vm1582 = vcmask 261120
      %v1584 = vsel %vm1582, %v1529, 0
      %v1587 = vsel %vm1582, %v1530, 0
      %v1590 = vsel %vm1582, %v1531, 0
      %v1593 = vsel %vm1582, %v1532, 0
      %1595 = vmatprep.subr.bf16.mxu0 0
      %1596 = vmatpush1.bf16.msra.mxu0 %v1578
      %1597 = vmatprep.subr.bf16.mxu0 0
      %1598 = vmatpush1.bf16.msra.mxu0 %v1579
      %1599 = vmatprep.subr.bf16.mxu0 0
      %1600 = vmatpush1.bf16.msra.mxu0 0
      %1601 = vmatprep.subr.bf16.mxu0 0
      %1602 = vmatpush1.bf16.msra.mxu0 0
      %1603 = vmatprep.subr.bf16.mxu0 0
      %1604 = vmatpush1.bf16.msra.mxu0 0
      %1605 = vmatprep.subr.bf16.mxu0 0
      %1606 = vmatpush1.bf16.msra.mxu0 0
      %1607 = vmatprep.subr.bf16.mxu0 0
      %1608 = vmatpush1.bf16.msra.mxu0 0
      %1609 = vmatprep.subr.bf16.mxu0 0
      %1610 = vmatpush1.bf16.msra.mxu0 0
      %1611 = vmatprep.subr.bf16.mxu0 0
      %1612 = vmatpush1.bf16.msra.mxu0 0
      %1613 = vmatprep.subr.bf16.mxu0 0
      %1614 = vmatpush1.bf16.msra.mxu0 0
      %1615 = vmatprep.subr.bf16.mxu0 0
      %1616 = vmatpush1.bf16.msra.mxu0 0
      %1617 = vmatprep.subr.bf16.mxu0 0
      %1618 = vmatpush1.bf16.msra.mxu0 0
      %1619 = vmatprep.subr.bf16.mxu0 0
      %1620 = vmatpush1.bf16.msra.mxu0 0
      %1621 = vmatprep.subr.bf16.mxu0 0
      %1622 = vmatpush1.bf16.msra.mxu0 0
      %1623 = vmatprep.subr.bf16.mxu0 0
      %1624 = vmatpush1.bf16.msra.mxu0 0
      %1625 = vmatprep.subr.bf16.mxu0 0
      %1626 = vmatpush1.bf16.msra.mxu0 0
      %1627 = vmatprep.mubr.bf16.mxu0 0
      %1628 = vmatmul.mubr.bf16.gmra.mrb[0].mxu0 %v1584
      %v1629 = vpop.f32.mrb[0].mxu0
      %v1630 = vadd.f32 0.0, %v1629
      %v1631 = vpop.f32.mrb[0].mxu0
      %v1632 = vpop.f32.mrb[0].mxu0
      %v1633 = vadd.f32 0.0, %v1632
      %v1634 = vpop.f32.mrb[0].mxu0
      %1635 = vmatprep.mubr.bf16.mxu0 0
      %1636 = vmatmul.mubr.bf16.gmra.mrb[0].mxu0 %v1587
      %v1637 = vpop.f32.mrb[0].mxu0
      %v1638 = vadd.f32 0.0, %v1637
      %v1639 = vpop.f32.mrb[0].mxu0
      %v1640 = vpop.f32.mrb[0].mxu0
      %v1641 = vadd.f32 0.0, %v1640
      %v1642 = vpop.f32.mrb[0].mxu0
      %1643 = vmatprep.mubr.bf16.mxu0 0
      %1644 = vmatmul.mubr.bf16.gmra.mrb[0].mxu0 %v1590
      %v1645 = vpop.f32.mrb[0].mxu0
      %v1646 = vadd.f32 0.0, %v1645
      %v1647 = vpop.f32.mrb[0].mxu0
      %v1648 = vpop.f32.mrb[0].mxu0
      %v1649 = vadd.f32 0.0, %v1648
      %v1650 = vpop.f32.mrb[0].mxu0
      %1651 = vmatprep.mubr.bf16.mxu0 0
      %1652 = vmatmul.mubr.bf16.gmra.mrb[0].mxu0 %v1593
      %v1653 = vpop.f32.mrb[0].mxu0
      %v1654 = vadd.f32 0.0, %v1653
      %v1655 = vpop.f32.mrb[0].mxu0
      %v1656 = vpop.f32.mrb[0].mxu0
      %v1657 = vadd.f32 0.0, %v1656
      %v1658 = vpop.f32.mrb[0].mxu0
      %1659 = vdwg.mxu0
      %v1664 = vunpack.c.l.b16 %v1561
      %v1665 = vunpack.c.l.b16 %v1562
      %v1666 = vunpack.c.l.b16 %v1563
      %v1667 = vunpack.c.l.b16 %v1564
      %v1668 = vpack.c.b16 %v1665, %v1664
      %v1669 = vpack.c.b16 %v1667, %v1666
      %v1673 = vsel %vm1582, %v1525, 0
      %v1676 = vsel %vm1582, %v1526, 0
      %v1679 = vsel %vm1582, %v1527, 0
      %v1682 = vsel %vm1582, %v1528, 0
      %1684 = vmatprep.subr.bf16.mxu0 0
      %1685 = vmatpush1.bf16.msra.mxu0 %v1668
      %1686 = vmatprep.subr.bf16.mxu0 0
      %1687 = vmatpush1.bf16.msra.mxu0 %v1669
      %1688 = vmatprep.subr.bf16.mxu0 0
      %1689 = vmatpush1.bf16.msra.mxu0 0
      %1690 = vmatprep.subr.bf16.mxu0 0
      %1691 = vmatpush1.bf16.msra.mxu0 0
      %1692 = vmatprep.subr.bf16.mxu0 0
      %1693 = vmatpush1.bf16.msra.mxu0 0
      %1694 = vmatprep.subr.bf16.mxu0 0
      %1695 = vmatpush1.bf16.msra.mxu0 0
      %1696 = vmatprep.subr.bf16.mxu0 0
      %1697 = vmatpush1.bf16.msra.mxu0 0
      %1698 = vmatprep.subr.bf16.mxu0 0
      %1699 = vmatpush1.bf16.msra.mxu0 0
      %1700 = vmatprep.subr.bf16.mxu0 0
      %1701 = vmatpush1.bf16.msra.mxu0 0
      %1702 = vmatprep.subr.bf16.mxu0 0
      %1703 = vmatpush1.bf16.msra.mxu0 0
      %1704 = vmatprep.subr.bf16.mxu0 0
      %1705 = vmatpush1.bf16.msra.mxu0 0
      %1706 = vmatprep.subr.bf16.mxu0 0
      %1707 = vmatpush1.bf16.msra.mxu0 0
      %1708 = vmatprep.subr.bf16.mxu0 0
      %1709 = vmatpush1.bf16.msra.mxu0 0
      %1710 = vmatprep.subr.bf16.mxu0 0
      %1711 = vmatpush1.bf16.msra.mxu0 0
      %1712 = vmatprep.subr.bf16.mxu0 0
      %1713 = vmatpush1.bf16.msra.mxu0 0
      %1714 = vmatprep.subr.bf16.mxu0 0
      %1715 = vmatpush1.bf16.msra.mxu0 0
      %1716 = vmatprep.mubr.bf16.mxu0 0
      %1717 = vmatmul.mubr.bf16.gmra.mrb[0].mxu0 %v1673
      %v1718 = vpop.f32.mrb[0].mxu0
      %v1719 = vadd.f32 %v1630, %v1718
      %v1720 = vpop.f32.mrb[0].mxu0
      %v1721 = vpop.f32.mrb[0].mxu0
      %v1722 = vadd.f32 %v1633, %v1721
      %v1723 = vpop.f32.mrb[0].mxu0
      %1724 = vmatprep.mubr.bf16.mxu0 0
      %1725 = vmatmul.mubr.bf16.gmra.mrb[0].mxu0 %v1676
      %v1726 = vpop.f32.mrb[0].mxu0
      %v1727 = vadd.f32 %v1638, %v1726
      %v1728 = vpop.f32.mrb[0].mxu0
      %v1729 = vpop.f32.mrb[0].mxu0
      %v1730 = vadd.f32 %v1641, %v1729
      %v1731 = vpop.f32.mrb[0].mxu0
      %1732 = vmatprep.mubr.bf16.mxu0 0
      %1733 = vmatmul.mubr.bf16.gmra.mrb[0].mxu0 %v1679
      %v1734 = vpop.f32.mrb[0].mxu0
      %v1735 = vadd.f32 %v1646, %v1734
      %v1736 = vpop.f32.mrb[0].mxu0
      %v1737 = vpop.f32.mrb[0].mxu0
      %v1738 = vadd.f32 %v1649, %v1737
      %v1739 = vpop.f32.mrb[0].mxu0
      %1740 = vmatprep.mubr.bf16.mxu0 0
      %1741 = vmatmul.mubr.bf16.gmra.mrb[0].mxu0 %v1682
      %v1742 = vpop.f32.mrb[0].mxu0
      %v1743 = vadd.f32 %v1654, %v1742
      %v1744 = vpop.f32.mrb[0].mxu0
      %v1745 = vpop.f32.mrb[0].mxu0
      %v1746 = vadd.f32 %v1657, %v1745
      %v1747 = vpop.f32.mrb[0].mxu0
      %1748 = vdwg.mxu0
      %s1749 = scalar_lea.vmem %s5, 32
      %v1750 = vld [vmem:[%s1749] sm:$0xf]
      %v1751 = vld [vmem:[%s1749 + $0x4] sm:$0xf]
      %v1752 = vld [vmem:[%s1749 + $0x8] sm:$0xf]
      %v1753 = vld [vmem:[%s1749 + $0xc] sm:$0xf]
      %v1758 = vunpack.c.l.b16 %v1750
      %v1759 = vunpack.c.l.b16 %v1751
      %v1760 = vunpack.c.l.b16 %v1752
      %v1761 = vunpack.c.l.b16 %v1753
      %v1762 = vpack.c.b16 %v1759, %v1758
      %v1763 = vpack.c.b16 %v1761, %v1760
      %v1767 = vsel %vm1582, %v1533, 0
      %v1770 = vsel %vm1582, %v1534, 0
      %v1773 = vsel %vm1582, %v1535, 0
      %v1776 = vsel %vm1582, %v1536, 0
      %1778 = vmatprep.subr.bf16.mxu0 0
      %1779 = vmatpush1.bf16.msra.mxu0 %v1762
      %1780 = vmatprep.subr.bf16.mxu0 0
      %1781 = vmatpush1.bf16.msra.mxu0 %v1763
      %1782 = vmatprep.subr.bf16.mxu0 0
      %1783 = vmatpush1.bf16.msra.mxu0 0
      %1784 = vmatprep.subr.bf16.mxu0 0
      %1785 = vmatpush1.bf16.msra.mxu0 0
      %1786 = vmatprep.subr.bf16.mxu0 0
      %1787 = vmatpush1.bf16.msra.mxu0 0
      %1788 = vmatprep.subr.bf16.mxu0 0
      %1789 = vmatpush1.bf16.msra.mxu0 0
      %1790 = vmatprep.subr.bf16.mxu0 0
      %1791 = vmatpush1.bf16.msra.mxu0 0
      %1792 = vmatprep.subr.bf16.mxu0 0
      %1793 = vmatpush1.bf16.msra.mxu0 0
      %1794 = vmatprep.subr.bf16.mxu0 0
      %1795 = vmatpush1.bf16.msra.mxu0 0
      %1796 = vmatprep.subr.bf16.mxu0 0
      %1797 = vmatpush1.bf16.msra.mxu0 0
      %1798 = vmatprep.subr.bf16.mxu0 0
      %1799 = vmatpush1.bf16.msra.mxu0 0
      %1800 = vmatprep.subr.bf16.mxu0 0
      %1801 = vmatpush1.bf16.msra.mxu0 0
      %1802 = vmatprep.subr.bf16.mxu0 0
      %1803 = vmatpush1.bf16.msra.mxu0 0
      %1804 = vmatprep.subr.bf16.mxu0 0
      %1805 = vmatpush1.bf16.msra.mxu0 0
      %1806 = vmatprep.subr.bf16.mxu0 0
      %1807 = vmatpush1.bf16.msra.mxu0 0
      %1808 = vmatprep.subr.bf16.mxu0 0
      %1809 = vmatpush1.bf16.msra.mxu0 0
      %1810 = vmatprep.mubr.bf16.mxu0 0
      %1811 = vmatmul.mubr.bf16.gmra.mrb[0].mxu0 %v1767
      %v1812 = vpop.f32.mrb[0].mxu0
      %v1813 = vadd.f32 0.0, %v1812
      %v1814 = vpop.f32.mrb[0].mxu0
      %v1815 = vpop.f32.mrb[0].mxu0
      %v1816 = vadd.f32 0.0, %v1815
      %v1817 = vpop.f32.mrb[0].mxu0
      %1818 = vmatprep.mubr.bf16.mxu0 0
      %1819 = vmatmul.mubr.bf16.gmra.mrb[0].mxu0 %v1770
      %v1820 = vpop.f32.mrb[0].mxu0
      %v1821 = vadd.f32 0.0, %v1820
      %v1822 = vpop.f32.mrb[0].mxu0
      %v1823 = vpop.f32.mrb[0].mxu0
      %v1824 = vadd.f32 0.0, %v1823
      %v1825 = vpop.f32.mrb[0].mxu0
      %1826 = vmatprep.mubr.bf16.mxu0 0
      %1827 = vmatmul.mubr.bf16.gmra.mrb[0].mxu0 %v1773
      %v1828 = vpop.f32.mrb[0].mxu0
      %v1829 = vadd.f32 0.0, %v1828
      %v1830 = vpop.f32.mrb[0].mxu0
      %v1831 = vpop.f32.mrb[0].mxu0
      %v1832 = vadd.f32 0.0, %v1831
      %v1833 = vpop.f32.mrb[0].mxu0
      %1834 = vmatprep.mubr.bf16.mxu0 0
      %1835 = vmatmul.mubr.bf16.gmra.mrb[0].mxu0 %v1776
      %v1836 = vpop.f32.mrb[0].mxu0
      %v1837 = vadd.f32 0.0, %v1836
      %v1838 = vpop.f32.mrb[0].mxu0
      %v1839 = vpop.f32.mrb[0].mxu0
      %v1840 = vadd.f32 0.0, %v1839
      %v1841 = vpop.f32.mrb[0].mxu0
      %1842 = vdwg.mxu0
      %v1843 = vadd.f32 %v1719, %v1813
      %v1844 = vadd.f32 %v1722, %v1816
      %v1845 = vadd.f32 %v1727, %v1821
      %v1846 = vadd.f32 %v1730, %v1824
      %v1847 = vadd.f32 %v1735, %v1829
      %v1848 = vadd.f32 %v1738, %v1832
      %v1849 = vadd.f32 %v1743, %v1837
      %v1850 = vadd.f32 %v1746, %v1840
      %s1851 = scalar_lea.vmem %s5, 48
      %v1852 = vld [vmem:[%s1851] sm:$0xf]
      %v1853 = vld [vmem:[%s1851 + $0x4] sm:$0xf]
      %v1854 = vld [vmem:[%s1851 + $0x8] sm:$0xf]
      %v1855 = vld [vmem:[%s1851 + $0xc] sm:$0xf]
      %v1860 = vunpack.c.l.b16 %v1852
      %v1861 = vunpack.c.l.b16 %v1853
      %v1862 = vunpack.c.l.b16 %v1854
      %v1863 = vunpack.c.l.b16 %v1855
      %v1864 = vpack.c.b16 %v1861, %v1860
      %v1865 = vpack.c.b16 %v1863, %v1862
      %v1869 = vsel %vm1582, %v1537, 0
      %v1872 = vsel %vm1582, %v1538, 0
      %v1875 = vsel %vm1582, %v1539, 0
      %v1878 = vsel %vm1582, %v1540, 0
      %1880 = vmatprep.subr.bf16.mxu0 0
      %1881 = vmatpush1.bf16.msra.mxu0 %v1864
      %1882 = vmatprep.subr.bf16.mxu0 0
      %1883 = vmatpush1.bf16.msra.mxu0 %v1865
      %1884 = vmatprep.subr.bf16.mxu0 0
      %1885 = vmatpush1.bf16.msra.mxu0 0
      %1886 = vmatprep.subr.bf16.mxu0 0
      %1887 = vmatpush1.bf16.msra.mxu0 0
      %1888 = vmatprep.subr.bf16.mxu0 0
      %1889 = vmatpush1.bf16.msra.mxu0 0
      %1890 = vmatprep.subr.bf16.mxu0 0
      %1891 = vmatpush1.bf16.msra.mxu0 0
      %1892 = vmatprep.subr.bf16.mxu0 0
      %1893 = vmatpush1.bf16.msra.mxu0 0
      %1894 = vmatprep.subr.bf16.mxu0 0
      %1895 = vmatpush1.bf16.msra.mxu0 0
      %1896 = vmatprep.subr.bf16.mxu0 0
      %1897 = vmatpush1.bf16.msra.mxu0 0
      %1898 = vmatprep.subr.bf16.mxu0 0
      %1899 = vmatpush1.bf16.msra.mxu0 0
      %1900 = vmatprep.subr.bf16.mxu0 0
      %1901 = vmatpush1.bf16.msra.mxu0 0
      %1902 = vmatprep.subr.bf16.mxu0 0
      %1903 = vmatpush1.bf16.msra.mxu0 0
      %1904 = vmatprep.subr.bf16.mxu0 0
      %1905 = vmatpush1.bf16.msra.mxu0 0
      %1906 = vmatprep.subr.bf16.mxu0 0
      %1907 = vmatpush1.bf16.msra.mxu0 0
      %1908 = vmatprep.subr.bf16.mxu0 0
      %1909 = vmatpush1.bf16.msra.mxu0 0
      %1910 = vmatprep.subr.bf16.mxu0 0
      %1911 = vmatpush1.bf16.msra.mxu0 0
      %1912 = vmatprep.mubr.bf16.mxu0 0
      %1913 = vmatmul.mubr.bf16.gmra.mrb[0].mxu0 %v1869
      %v1914 = vpop.f32.mrb[0].mxu0
      %v1915 = vadd.f32 0.0, %v1914
      %v1916 = vpop.f32.mrb[0].mxu0
      %v1917 = vpop.f32.mrb[0].mxu0
      %v1918 = vadd.f32 0.0, %v1917
      %v1919 = vpop.f32.mrb[0].mxu0
      %1920 = vmatprep.mubr.bf16.mxu0 0
      %1921 = vmatmul.mubr.bf16.gmra.mrb[0].mxu0 %v1872
      %v1922 = vpop.f32.mrb[0].mxu0
      %v1923 = vadd.f32 0.0, %v1922
      %v1924 = vpop.f32.mrb[0].mxu0
      %v1925 = vpop.f32.mrb[0].mxu0
      %v1926 = vadd.f32 0.0, %v1925
      %v1927 = vpop.f32.mrb[0].mxu0
      %1928 = vmatprep.mubr.bf16.mxu0 0
      %1929 = vmatmul.mubr.bf16.gmra.mrb[0].mxu0 %v1875
      %v1930 = vpop.f32.mrb[0].mxu0
      %v1931 = vadd.f32 0.0, %v1930
      %v1932 = vpop.f32.mrb[0].mxu0
      %v1933 = vpop.f32.mrb[0].mxu0
      %v1934 = vadd.f32 0.0, %v1933
      %v1935 = vpop.f32.mrb[0].mxu0
      %1936 = vmatprep.mubr.bf16.mxu0 0
      %1937 = vmatmul.mubr.bf16.gmra.mrb[0].mxu0 %v1878
      %v1938 = vpop.f32.mrb[0].mxu0
      %v1939 = vadd.f32 0.0, %v1938
      %v1940 = vpop.f32.mrb[0].mxu0
      %v1941 = vpop.f32.mrb[0].mxu0
      %v1942 = vadd.f32 0.0, %v1941
      %v1943 = vpop.f32.mrb[0].mxu0
      %1944 = vdwg.mxu0
      %v1945 = vadd.f32 %v1843, %v1915
      %v1946 = vadd.f32 %v1844, %v1918
      %v1947 = vadd.f32 %v1845, %v1923
      %v1948 = vadd.f32 %v1846, %v1926
      %v1949 = vadd.f32 %v1847, %v1931
      %v1950 = vadd.f32 %v1848, %v1934
      %v1951 = vadd.f32 %v1849, %v1939
      %v1952 = vadd.f32 %v1850, %v1942
      %s1953 = scalar_lea.vmem %s5, 64
      %v1954 = vld [vmem:[%s1953] sm:$0xf]
      %v1955 = vld [vmem:[%s1953 + $0x4] sm:$0xf]
      %v1956 = vld [vmem:[%s1953 + $0x8] sm:$0xf]
      %v1957 = vld [vmem:[%s1953 + $0xc] sm:$0xf]
      %v1962 = vunpack.c.l.b16 %v1954
      %v1963 = vunpack.c.l.b16 %v1955
      %v1964 = vunpack.c.l.b16 %v1956
      %v1965 = vunpack.c.l.b16 %v1957
      %v1966 = vpack.c.b16 %v1963, %v1962
      %v1967 = vpack.c.b16 %v1965, %v1964
      %v1971 = vsel %vm1582, %v1541, 0
      %v1974 = vsel %vm1582, %v1542, 0
      %v1977 = vsel %vm1582, %v1543, 0
      %v1980 = vsel %vm1582, %v1544, 0
      %1982 = vmatprep.subr.bf16.mxu0 0
      %1983 = vmatpush1.bf16.msra.mxu0 %v1966
      %1984 = vmatprep.subr.bf16.mxu0 0
      %1985 = vmatpush1.bf16.msra.mxu0 %v1967
      %1986 = vmatprep.subr.bf16.mxu0 0
      %1987 = vmatpush1.bf16.msra.mxu0 0
      %1988 = vmatprep.subr.bf16.mxu0 0
      %1989 = vmatpush1.bf16.msra.mxu0 0
      %1990 = vmatprep.subr.bf16.mxu0 0
      %1991 = vmatpush1.bf16.msra.mxu0 0
      %1992 = vmatprep.subr.bf16.mxu0 0
      %1993 = vmatpush1.bf16.msra.mxu0 0
      %1994 = vmatprep.subr.bf16.mxu0 0
      %1995 = vmatpush1.bf16.msra.mxu0 0
      %1996 = vmatprep.subr.bf16.mxu0 0
      %1997 = vmatpush1.bf16.msra.mxu0 0
      %1998 = vmatprep.subr.bf16.mxu0 0
      %1999 = vmatpush1.bf16.msra.mxu0 0
      %2000 = vmatprep.subr.bf16.mxu0 0
      %2001 = vmatpush1.bf16.msra.mxu0 0
      %2002 = vmatprep.subr.bf16.mxu0 0
      %2003 = vmatpush1.bf16.msra.mxu0 0
      %2004 = vmatprep.subr.bf16.mxu0 0
      %2005 = vmatpush1.bf16.msra.mxu0 0
      %2006 = vmatprep.subr.bf16.mxu0 0
      %2007 = vmatpush1.bf16.msra.mxu0 0
      %2008 = vmatprep.subr.bf16.mxu0 0
      %2009 = vmatpush1.bf16.msra.mxu0 0
      %2010 = vmatprep.subr.bf16.mxu0 0
      %2011 = vmatpush1.bf16.msra.mxu0 0
      %2012 = vmatprep.subr.bf16.mxu0 0
      %2013 = vmatpush1.bf16.msra.mxu0 0
      %2014 = vmatprep.mubr.bf16.mxu0 0
      %2015 = vmatmul.mubr.bf16.gmra.mrb[0].mxu0 %v1971
      %v2016 = vpop.f32.mrb[0].mxu0
      %v2017 = vadd.f32 0.0, %v2016
      %v2018 = vpop.f32.mrb[0].mxu0
      %v2019 = vpop.f32.mrb[0].mxu0
      %v2020 = vadd.f32 0.0, %v2019
      %v2021 = vpop.f32.mrb[0].mxu0
      %2022 = vmatprep.mubr.bf16.mxu0 0
      %2023 = vmatmul.mubr.bf16.gmra.mrb[0].mxu0 %v1974
      %v2024 = vpop.f32.mrb[0].mxu0
      %v2025 = vadd.f32 0.0, %v2024
      %v2026 = vpop.f32.mrb[0].mxu0
      %v2027 = vpop.f32.mrb[0].mxu0
      %v2028 = vadd.f32 0.0, %v2027
      %v2029 = vpop.f32.mrb[0].mxu0
      %2030 = vmatprep.mubr.bf16.mxu0 0
      %2031 = vmatmul.mubr.bf16.gmra.mrb[0].mxu0 %v1977
      %v2032 = vpop.f32.mrb[0].mxu0
      %v2033 = vadd.f32 0.0, %v2032
      %v2034 = vpop.f32.mrb[0].mxu0
      %v2035 = vpop.f32.mrb[0].mxu0
      %v2036 = vadd.f32 0.0, %v2035
      %v2037 = vpop.f32.mrb[0].mxu0
      %2038 = vmatprep.mubr.bf16.mxu0 0
      %2039 = vmatmul.mubr.bf16.gmra.mrb[0].mxu0 %v1980
      %v2040 = vpop.f32.mrb[0].mxu0
      %v2041 = vadd.f32 0.0, %v2040
      %v2042 = vpop.f32.mrb[0].mxu0
      %v2043 = vpop.f32.mrb[0].mxu0
      %v2044 = vadd.f32 0.0, %v2043
      %v2045 = vpop.f32.mrb[0].mxu0
      %2046 = vdwg.mxu0
      %v2047 = vadd.f32 %v1945, %v2017
      %v2048 = vadd.f32 %v1946, %v2020
      %v2049 = vadd.f32 %v1947, %v2025
      %v2050 = vadd.f32 %v1948, %v2028
      %v2051 = vadd.f32 %v1949, %v2033
      %v2052 = vadd.f32 %v1950, %v2036
      %v2053 = vadd.f32 %v1951, %v2041
      %v2054 = vadd.f32 %v1952, %v2044
      %s2055 = scalar_lea.vmem %s5, 80
      %v2056 = vld [vmem:[%s2055] sm:$0xf]
      %v2057 = vld [vmem:[%s2055 + $0x4] sm:$0xf]
      %v2058 = vld [vmem:[%s2055 + $0x8] sm:$0xf]
      %v2059 = vld [vmem:[%s2055 + $0xc] sm:$0xf]
      %v2064 = vunpack.c.l.b16 %v2056
      %v2065 = vunpack.c.l.b16 %v2057
      %v2066 = vunpack.c.l.b16 %v2058
      %v2067 = vunpack.c.l.b16 %v2059
      %v2068 = vpack.c.b16 %v2065, %v2064
      %v2069 = vpack.c.b16 %v2067, %v2066
      %v2073 = vsel %vm1582, %v1545, 0
      %v2076 = vsel %vm1582, %v1546, 0
      %v2079 = vsel %vm1582, %v1547, 0
      %v2082 = vsel %vm1582, %v1548, 0
      %2084 = vmatprep.subr.bf16.mxu0 0
      %2085 = vmatpush1.bf16.msra.mxu0 %v2068
      %2086 = vmatprep.subr.bf16.mxu0 0
      %2087 = vmatpush1.bf16.msra.mxu0 %v2069
      %2088 = vmatprep.subr.bf16.mxu0 0
      %2089 = vmatpush1.bf16.msra.mxu0 0
      %2090 = vmatprep.subr.bf16.mxu0 0
      %2091 = vmatpush1.bf16.msra.mxu0 0
      %2092 = vmatprep.subr.bf16.mxu0 0
      %2093 = vmatpush1.bf16.msra.mxu0 0
      %2094 = vmatprep.subr.bf16.mxu0 0
      %2095 = vmatpush1.bf16.msra.mxu0 0
      %2096 = vmatprep.subr.bf16.mxu0 0
      %2097 = vmatpush1.bf16.msra.mxu0 0
      %2098 = vmatprep.subr.bf16.mxu0 0
      %2099 = vmatpush1.bf16.msra.mxu0 0
      %2100 = vmatprep.subr.bf16.mxu0 0
      %2101 = vmatpush1.bf16.msra.mxu0 0
      %2102 = vmatprep.subr.bf16.mxu0 0
      %2103 = vmatpush1.bf16.msra.mxu0 0
      %2104 = vmatprep.subr.bf16.mxu0 0
      %2105 = vmatpush1.bf16.msra.mxu0 0
      %2106 = vmatprep.subr.bf16.mxu0 0
      %2107 = vmatpush1.bf16.msra.mxu0 0
      %2108 = vmatprep.subr.bf16.mxu0 0
      %2109 = vmatpush1.bf16.msra.mxu0 0
      %2110 = vmatprep.subr.bf16.mxu0 0
      %2111 = vmatpush1.bf16.msra.mxu0 0
      %2112 = vmatprep.subr.bf16.mxu0 0
      %2113 = vmatpush1.bf16.msra.mxu0 0
      %2114 = vmatprep.subr.bf16.mxu0 0
      %2115 = vmatpush1.bf16.msra.mxu0 0
      %2116 = vmatprep.mubr.bf16.mxu0 0
      %2117 = vmatmul.mubr.bf16.gmra.mrb[0].mxu0 %v2073
      %v2118 = vpop.f32.mrb[0].mxu0
      %v2119 = vadd.f32 0.0, %v2118
      %v2120 = vpop.f32.mrb[0].mxu0
      %v2121 = vpop.f32.mrb[0].mxu0
      %v2122 = vadd.f32 0.0, %v2121
      %v2123 = vpop.f32.mrb[0].mxu0
      %2124 = vmatprep.mubr.bf16.mxu0 0
      %2125 = vmatmul.mubr.bf16.gmra.mrb[0].mxu0 %v2076
      %v2126 = vpop.f32.mrb[0].mxu0
      %v2127 = vadd.f32 0.0, %v2126
      %v2128 = vpop.f32.mrb[0].mxu0
      %v2129 = vpop.f32.mrb[0].mxu0
      %v2130 = vadd.f32 0.0, %v2129
      %v2131 = vpop.f32.mrb[0].mxu0
      %2132 = vmatprep.mubr.bf16.mxu0 0
      %2133 = vmatmul.mubr.bf16.gmra.mrb[0].mxu0 %v2079
      %v2134 = vpop.f32.mrb[0].mxu0
      %v2135 = vadd.f32 0.0, %v2134
      %v2136 = vpop.f32.mrb[0].mxu0
      %v2137 = vpop.f32.mrb[0].mxu0
      %v2138 = vadd.f32 0.0, %v2137
      %v2139 = vpop.f32.mrb[0].mxu0
      %2140 = vmatprep.mubr.bf16.mxu0 0
      %2141 = vmatmul.mubr.bf16.gmra.mrb[0].mxu0 %v2082
      %v2142 = vpop.f32.mrb[0].mxu0
      %v2143 = vadd.f32 0.0, %v2142
      %v2144 = vpop.f32.mrb[0].mxu0
      %v2145 = vpop.f32.mrb[0].mxu0
      %v2146 = vadd.f32 0.0, %v2145
      %v2147 = vpop.f32.mrb[0].mxu0
      %2148 = vdwg.mxu0
      %v2149 = vadd.f32 %v2047, %v2119
      %v2150 = vadd.f32 %v2048, %v2122
      %v2151 = vadd.f32 %v2049, %v2127
      %v2152 = vadd.f32 %v2050, %v2130
      %v2153 = vadd.f32 %v2051, %v2135
      %v2154 = vadd.f32 %v2052, %v2138
      %v2155 = vadd.f32 %v2053, %v2143
      %v2156 = vadd.f32 %v2054, %v2146
      %s2157 = scalar_lea.vmem %s5, 96
      %v2158 = vld [vmem:[%s2157] sm:$0xf]
      %v2159 = vld [vmem:[%s2157 + $0x4] sm:$0xf]
      %v2160 = vld [vmem:[%s2157 + $0x8] sm:$0xf]
      %v2161 = vld [vmem:[%s2157 + $0xc] sm:$0xf]
      %v2166 = vunpack.c.l.b16 %v2158
      %v2167 = vunpack.c.l.b16 %v2159
      %v2168 = vunpack.c.l.b16 %v2160
      %v2169 = vunpack.c.l.b16 %v2161
      %v2170 = vpack.c.b16 %v2167, %v2166
      %v2171 = vpack.c.b16 %v2169, %v2168
      %v2175 = vsel %vm1582, %v1549, 0
      %v2178 = vsel %vm1582, %v1550, 0
      %v2181 = vsel %vm1582, %v1551, 0
      %v2184 = vsel %vm1582, %v1552, 0
      %2186 = vmatprep.subr.bf16.mxu0 0
      %2187 = vmatpush1.bf16.msra.mxu0 %v2170
      %2188 = vmatprep.subr.bf16.mxu0 0
      %2189 = vmatpush1.bf16.msra.mxu0 %v2171
      %2190 = vmatprep.subr.bf16.mxu0 0
      %2191 = vmatpush1.bf16.msra.mxu0 0
      %2192 = vmatprep.subr.bf16.mxu0 0
      %2193 = vmatpush1.bf16.msra.mxu0 0
      %2194 = vmatprep.subr.bf16.mxu0 0
      %2195 = vmatpush1.bf16.msra.mxu0 0
      %2196 = vmatprep.subr.bf16.mxu0 0
      %2197 = vmatpush1.bf16.msra.mxu0 0
      %2198 = vmatprep.subr.bf16.mxu0 0
      %2199 = vmatpush1.bf16.msra.mxu0 0
      %2200 = vmatprep.subr.bf16.mxu0 0
      %2201 = vmatpush1.bf16.msra.mxu0 0
      %2202 = vmatprep.subr.bf16.mxu0 0
      %2203 = vmatpush1.bf16.msra.mxu0 0
      %2204 = vmatprep.subr.bf16.mxu0 0
      %2205 = vmatpush1.bf16.msra.mxu0 0
      %2206 = vmatprep.subr.bf16.mxu0 0
      %2207 = vmatpush1.bf16.msra.mxu0 0
      %2208 = vmatprep.subr.bf16.mxu0 0
      %2209 = vmatpush1.bf16.msra.mxu0 0
      %2210 = vmatprep.subr.bf16.mxu0 0
      %2211 = vmatpush1.bf16.msra.mxu0 0
      %2212 = vmatprep.subr.bf16.mxu0 0
      %2213 = vmatpush1.bf16.msra.mxu0 0
      %2214 = vmatprep.subr.bf16.mxu0 0
      %2215 = vmatpush1.bf16.msra.mxu0 0
      %2216 = vmatprep.subr.bf16.mxu0 0
      %2217 = vmatpush1.bf16.msra.mxu0 0
      %2218 = vmatprep.mubr.bf16.mxu0 0
      %2219 = vmatmul.mubr.bf16.gmra.mrb[0].mxu0 %v2175
      %v2220 = vpop.f32.mrb[0].mxu0
      %v2221 = vadd.f32 0.0, %v2220
      %v2222 = vpop.f32.mrb[0].mxu0
      %v2223 = vpop.f32.mrb[0].mxu0
      %v2224 = vadd.f32 0.0, %v2223
      %v2225 = vpop.f32.mrb[0].mxu0
      %2226 = vmatprep.mubr.bf16.mxu0 0
      %2227 = vmatmul.mubr.bf16.gmra.mrb[0].mxu0 %v2178
      %v2228 = vpop.f32.mrb[0].mxu0
      %v2229 = vadd.f32 0.0, %v2228
      %v2230 = vpop.f32.mrb[0].mxu0
      %v2231 = vpop.f32.mrb[0].mxu0
      %v2232 = vadd.f32 0.0, %v2231
      %v2233 = vpop.f32.mrb[0].mxu0
      %2234 = vmatprep.mubr.bf16.mxu0 0
      %2235 = vmatmul.mubr.bf16.gmra.mrb[0].mxu0 %v2181
      %v2236 = vpop.f32.mrb[0].mxu0
      %v2237 = vadd.f32 0.0, %v2236
      %v2238 = vpop.f32.mrb[0].mxu0
      %v2239 = vpop.f32.mrb[0].mxu0
      %v2240 = vadd.f32 0.0, %v2239
      %v2241 = vpop.f32.mrb[0].mxu0
      %2242 = vmatprep.mubr.bf16.mxu0 0
      %2243 = vmatmul.mubr.bf16.gmra.mrb[0].mxu0 %v2184
      %v2244 = vpop.f32.mrb[0].mxu0
      %v2245 = vadd.f32 0.0, %v2244
      %v2246 = vpop.f32.mrb[0].mxu0
      %v2247 = vpop.f32.mrb[0].mxu0
      %v2248 = vadd.f32 0.0, %v2247
      %v2249 = vpop.f32.mrb[0].mxu0
      %2250 = vdwg.mxu0
      %v2251 = vadd.f32 %v2149, %v2221
      %v2252 = vadd.f32 %v2150, %v2224
      %v2253 = vadd.f32 %v2151, %v2229
      %v2254 = vadd.f32 %v2152, %v2232
      %v2255 = vadd.f32 %v2153, %v2237
      %v2256 = vadd.f32 %v2154, %v2240
      %v2257 = vadd.f32 %v2155, %v2245
      %v2258 = vadd.f32 %v2156, %v2248
      %s2259 = scalar_lea.vmem %s5, 112
      %v2260 = vld [vmem:[%s2259] sm:$0xf]
      %v2261 = vld [vmem:[%s2259 + $0x4] sm:$0xf]
      %v2262 = vld [vmem:[%s2259 + $0x8] sm:$0xf]
      %v2263 = vld [vmem:[%s2259 + $0xc] sm:$0xf]
      %v2268 = vunpack.c.l.b16 %v2260
      %v2269 = vunpack.c.l.b16 %v2261
      %v2270 = vunpack.c.l.b16 %v2262
      %v2271 = vunpack.c.l.b16 %v2263
      %v2272 = vpack.c.b16 %v2269, %v2268
      %v2273 = vpack.c.b16 %v2271, %v2270
      %v2277 = vsel %vm1582, %v1553, 0
      %v2280 = vsel %vm1582, %v1554, 0
      %v2283 = vsel %vm1582, %v1555, 0
      %v2286 = vsel %vm1582, %v1556, 0
      %2288 = vmatprep.subr.bf16.mxu0 0
      %2289 = vmatpush1.bf16.msra.mxu0 %v2272
      %2290 = vmatprep.subr.bf16.mxu0 0
      %2291 = vmatpush1.bf16.msra.mxu0 %v2273
      %2292 = vmatprep.subr.bf16.mxu0 0
      %2293 = vmatpush1.bf16.msra.mxu0 0
      %2294 = vmatprep.subr.bf16.mxu0 0
      %2295 = vmatpush1.bf16.msra.mxu0 0
      %2296 = vmatprep.subr.bf16.mxu0 0
      %2297 = vmatpush1.bf16.msra.mxu0 0
      %2298 = vmatprep.subr.bf16.mxu0 0
      %2299 = vmatpush1.bf16.msra.mxu0 0
      %2300 = vmatprep.subr.bf16.mxu0 0
      %2301 = vmatpush1.bf16.msra.mxu0 0
      %2302 = vmatprep.subr.bf16.mxu0 0
      %2303 = vmatpush1.bf16.msra.mxu0 0
      %2304 = vmatprep.subr.bf16.mxu0 0
      %2305 = vmatpush1.bf16.msra.mxu0 0
      %2306 = vmatprep.subr.bf16.mxu0 0
      %2307 = vmatpush1.bf16.msra.mxu0 0
      %2308 = vmatprep.subr.bf16.mxu0 0
      %2309 = vmatpush1.bf16.msra.mxu0 0
      %2310 = vmatprep.subr.bf16.mxu0 0
      %2311 = vmatpush1.bf16.msra.mxu0 0
      %2312 = vmatprep.subr.bf16.mxu0 0
      %2313 = vmatpush1.bf16.msra.mxu0 0
      %2314 = vmatprep.subr.bf16.mxu0 0
      %2315 = vmatpush1.bf16.msra.mxu0 0
      %2316 = vmatprep.subr.bf16.mxu0 0
      %2317 = vmatpush1.bf16.msra.mxu0 0
      %2318 = vmatprep.subr.bf16.mxu0 0
      %2319 = vmatpush1.bf16.msra.mxu0 0
      %2320 = vmatprep.mubr.bf16.mxu0 0
      %2321 = vmatmul.mubr.bf16.gmra.mrb[0].mxu0 %v2277
      %v2322 = vpop.f32.mrb[0].mxu0
      %v2323 = vadd.f32 0.0, %v2322
      %v2324 = vpop.f32.mrb[0].mxu0
      %v2325 = vpop.f32.mrb[0].mxu0
      %v2326 = vadd.f32 0.0, %v2325
      %v2327 = vpop.f32.mrb[0].mxu0
      %2328 = vmatprep.mubr.bf16.mxu0 0
      %2329 = vmatmul.mubr.bf16.gmra.mrb[0].mxu0 %v2280
      %v2330 = vpop.f32.mrb[0].mxu0
      %v2331 = vadd.f32 0.0, %v2330
      %v2332 = vpop.f32.mrb[0].mxu0
      %v2333 = vpop.f32.mrb[0].mxu0
      %v2334 = vadd.f32 0.0, %v2333
      %v2335 = vpop.f32.mrb[0].mxu0
      %2336 = vmatprep.mubr.bf16.mxu0 0
      %2337 = vmatmul.mubr.bf16.gmra.mrb[0].mxu0 %v2283
      %v2338 = vpop.f32.mrb[0].mxu0
      %v2339 = vadd.f32 0.0, %v2338
      %v2340 = vpop.f32.mrb[0].mxu0
      %v2341 = vpop.f32.mrb[0].mxu0
      %v2342 = vadd.f32 0.0, %v2341
      %v2343 = vpop.f32.mrb[0].mxu0
      %2344 = vmatprep.mubr.bf16.mxu0 0
      %2345 = vmatmul.mubr.bf16.gmra.mrb[0].mxu0 %v2286
      %v2346 = vpop.f32.mrb[0].mxu0
      %v2347 = vadd.f32 0.0, %v2346
      %v2348 = vpop.f32.mrb[0].mxu0
      %v2349 = vpop.f32.mrb[0].mxu0
      %v2350 = vadd.f32 0.0, %v2349
      %v2351 = vpop.f32.mrb[0].mxu0
      %2352 = vdwg.mxu0
      %v2353 = vadd.f32 %v2251, %v2323
      %v2354 = vadd.f32 %v2252, %v2326
      %v2355 = vadd.f32 %v2253, %v2331
      %v2356 = vadd.f32 %v2254, %v2334
      %v2357 = vadd.f32 %v2255, %v2339
      %v2358 = vadd.f32 %v2256, %v2342
      %v2359 = vadd.f32 %v2257, %v2347
      %v2360 = vadd.f32 %v2258, %v2350
      %s2361 = scalar_lea.vmem %s5, 128
      %v2362 = vld [vmem:[%s2361] sm:$0xf]
      %v2363 = vld [vmem:[%s2361 + $0x4] sm:$0xf]
      %v2364 = vld [vmem:[%s2361 + $0x8] sm:$0xf]
      %v2365 = vld [vmem:[%s2361 + $0xc] sm:$0xf]
      %v2370 = vunpack.c.l.b16 %v2362
      %v2371 = vunpack.c.l.b16 %v2363
      %v2372 = vunpack.c.l.b16 %v2364
      %v2373 = vunpack.c.l.b16 %v2365
      %v2374 = vpack.c.b16 %v2371, %v2370
      %v2375 = vpack.c.b16 %v2373, %v2372
      %v2379 = vsel %vm1582, %v1557, 0
      %v2382 = vsel %vm1582, %v1558, 0
      %v2385 = vsel %vm1582, %v1559, 0
      %v2388 = vsel %vm1582, %v1560, 0
      %2390 = vmatprep.subr.bf16.mxu0 0
      %2391 = vmatpush1.bf16.msra.mxu0 %v2374
      %2392 = vmatprep.subr.bf16.mxu0 0
      %2393 = vmatpush1.bf16.msra.mxu0 %v2375
      %2394 = vmatprep.subr.bf16.mxu0 0
      %2395 = vmatpush1.bf16.msra.mxu0 0
      %2396 = vmatprep.subr.bf16.mxu0 0
      %2397 = vmatpush1.bf16.msra.mxu0 0
      %2398 = vmatprep.subr.bf16.mxu0 0
      %2399 = vmatpush1.bf16.msra.mxu0 0
      %2400 = vmatprep.subr.bf16.mxu0 0
      %2401 = vmatpush1.bf16.msra.mxu0 0
      %2402 = vmatprep.subr.bf16.mxu0 0
      %2403 = vmatpush1.bf16.msra.mxu0 0
      %2404 = vmatprep.subr.bf16.mxu0 0
      %2405 = vmatpush1.bf16.msra.mxu0 0
      %2406 = vmatprep.subr.bf16.mxu0 0
      %2407 = vmatpush1.bf16.msra.mxu0 0
      %2408 = vmatprep.subr.bf16.mxu0 0
      %2409 = vmatpush1.bf16.msra.mxu0 0
      %2410 = vmatprep.subr.bf16.mxu0 0
      %2411 = vmatpush1.bf16.msra.mxu0 0
      %2412 = vmatprep.subr.bf16.mxu0 0
      %2413 = vmatpush1.bf16.msra.mxu0 0
      %2414 = vmatprep.subr.bf16.mxu0 0
      %2415 = vmatpush1.bf16.msra.mxu0 0
      %2416 = vmatprep.subr.bf16.mxu0 0
      %2417 = vmatpush1.bf16.msra.mxu0 0
      %2418 = vmatprep.subr.bf16.mxu0 0
      %2419 = vmatpush1.bf16.msra.mxu0 0
      %2420 = vmatprep.subr.bf16.mxu0 0
      %2421 = vmatpush1.bf16.msra.mxu0 0
      %2422 = vmatprep.mubr.bf16.mxu0 0
      %2423 = vmatmul.mubr.bf16.gmra.mrb[0].mxu0 %v2379
      %v2424 = vpop.f32.mrb[0].mxu0
      %v2425 = vadd.f32 0.0, %v2424
      %v2426 = vpop.f32.mrb[0].mxu0
      %v2427 = vpop.f32.mrb[0].mxu0
      %v2428 = vadd.f32 0.0, %v2427
      %v2429 = vpop.f32.mrb[0].mxu0
      %2430 = vmatprep.mubr.bf16.mxu0 0
      %2431 = vmatmul.mubr.bf16.gmra.mrb[0].mxu0 %v2382
      %v2432 = vpop.f32.mrb[0].mxu0
      %v2433 = vadd.f32 0.0, %v2432
      %v2434 = vpop.f32.mrb[0].mxu0
      %v2435 = vpop.f32.mrb[0].mxu0
      %v2436 = vadd.f32 0.0, %v2435
      %v2437 = vpop.f32.mrb[0].mxu0
      %2438 = vmatprep.mubr.bf16.mxu0 0
      %2439 = vmatmul.mubr.bf16.gmra.mrb[0].mxu0 %v2385
      %v2440 = vpop.f32.mrb[0].mxu0
      %v2441 = vadd.f32 0.0, %v2440
      %v2442 = vpop.f32.mrb[0].mxu0
      %v2443 = vpop.f32.mrb[0].mxu0
      %v2444 = vadd.f32 0.0, %v2443
      %v2445 = vpop.f32.mrb[0].mxu0
      %2446 = vmatprep.mubr.bf16.mxu0 0
      %2447 = vmatmul.mubr.bf16.gmra.mrb[0].mxu0 %v2388
      %v2448 = vpop.f32.mrb[0].mxu0
      %v2449 = vadd.f32 0.0, %v2448
      %v2450 = vpop.f32.mrb[0].mxu0
      %v2451 = vpop.f32.mrb[0].mxu0
      %v2452 = vadd.f32 0.0, %v2451
      %v2453 = vpop.f32.mrb[0].mxu0
      %2454 = vdwg.mxu0
      %v2455 = vadd.f32 %v2353, %v2425
      %v2456 = vadd.f32 %v2354, %v2428
      %v2457 = vadd.f32 %v2355, %v2433
      %v2458 = vadd.f32 %v2356, %v2436
      %v2459 = vadd.f32 %v2357, %v2441
      %v2460 = vadd.f32 %v2358, %v2444
      %v2461 = vadd.f32 %v2359, %v2449
      %v2462 = vadd.f32 %v2360, %v2452
      %v2463 = vld [vmem:[%s6] sm:$0x1]
      %v2465 = vlaneseq
      %v2466 = vshrl.u32 %v2465, 7
      %v2467 = vsub.s32 0, %v2466
      %v2468 = vrot.slane %v2463, %v2467
      %v2470 = vadd.f32 %v2455, %v2468
      %v2471 = vadd.f32 %v2456, %v2468
      %v2472 = vadd.f32 %v2457, %v2468
      %v2473 = vadd.f32 %v2458, %v2468
      %v2474 = vadd.f32 %v2459, %v2468
      %v2475 = vadd.f32 %v2460, %v2468
      %v2476 = vadd.f32 %v2461, %v2468
      %v2477 = vadd.f32 %v2462, %v2468
      %v2478 = vsel %vm1582, %v2470, 0.0
      %v2479 = vsel %vm1582, %v2471, 0.0
      %v2480 = vadd.f32 %v2478, %v2479
      %v2481 = vsel %vm1582, %v2472, 0.0
      %v2482 = vadd.f32 %v2480, %v2481
      %v2483 = vsel %vm1582, %v2473, 0.0
      %v2484 = vadd.f32 %v2482, %v2483
      %v2485 = vsel %vm1582, %v2474, 0.0
      %v2486 = vadd.f32 %v2484, %v2485
      %v2487 = vsel %vm1582, %v2475, 0.0
      %v2488 = vadd.f32 %v2486, %v2487
      %v2489 = vsel %vm1582, %v2476, 0.0
      %v2490 = vadd.f32 %v2488, %v2489
      %v2491 = vsel %vm1582, %v2477, 0.0
      %v2492 = vadd.f32 %v2490, %v2491
      %v2493 = vrot.slane %v2492, 4
      %v2494 = vadd.f32 %v2492, %v2493
      %v2495 = vrot.slane %v2494, 2
      %v2496 = vadd.f32 %v2494, %v2495
      %v2497 = vrot.slane %v2496, 1
      %v2498 = vadd.f32 %v2496, %v2497
      %v2499 = vmul.f32 %v2470, %v2470
      %v2500 = vmul.f32 %v2471, %v2471
      %v2501 = vmul.f32 %v2472, %v2472
      %v2502 = vmul.f32 %v2473, %v2473
      %v2503 = vmul.f32 %v2474, %v2474
      %v2504 = vmul.f32 %v2475, %v2475
      %v2505 = vmul.f32 %v2476, %v2476
      %v2506 = vmul.f32 %v2477, %v2477
      %v2507 = vsel %vm1582, %v2499, 0.0
      %v2508 = vsel %vm1582, %v2500, 0.0
      %v2509 = vadd.f32 %v2507, %v2508
      %v2510 = vsel %vm1582, %v2501, 0.0
      %v2511 = vadd.f32 %v2509, %v2510
      %v2512 = vsel %vm1582, %v2502, 0.0
      %v2513 = vadd.f32 %v2511, %v2512
      %v2514 = vsel %vm1582, %v2503, 0.0
      %v2515 = vadd.f32 %v2513, %v2514
      %v2516 = vsel %vm1582, %v2504, 0.0
      %v2517 = vadd.f32 %v2515, %v2516
      %v2518 = vsel %vm1582, %v2505, 0.0
      %v2519 = vadd.f32 %v2517, %v2518
      %v2520 = vsel %vm1582, %v2506, 0.0
      %v2521 = vadd.f32 %v2519, %v2520
      %v2522 = vrot.slane %v2521, 4
      %v2523 = vadd.f32 %v2521, %v2522
      %v2524 = vrot.slane %v2523, 2
      %v2525 = vadd.f32 %v2523, %v2524
      %v2526 = vrot.slane %v2525, 1
      %v2527 = vadd.f32 %v2525, %v2526
      %vm2528 = vcmask 1040384
      %v2529 = vsel %vm2528, %v2498, %v2527
      %v2530 = vld [vmem:[%s7] sm:$0xff]
      %v2531 = vld [vmem:[%s7 + $0x8] sm:$0xff]
      %v2532 = vld [vmem:[%s7 + $0x10] sm:$0xff]
      %v2533 = vld [vmem:[%s7 + $0x18] sm:$0xff]
      %v2535 = vsel %vm1582, %v2529, 0
      %2537 = vmatprep.subr.mxu0 0.0
      %2538 = vmatpush1.msra.mxu0 %v2530
      %2539 = vmatprep.subr.mxu0 0.0
      %2540 = vmatpush1.msra.mxu0 %v2531
      %2541 = vmatprep.subr.mxu0 0.0
      %2542 = vmatpush1.msra.mxu0 %v2532
      %2543 = vmatprep.subr.mxu0 0.0
      %2544 = vmatpush1.msra.mxu0 %v2533
      %2545 = vmatprep.subr.mxu0 0.0
      %2546 = vmatpush1.msra.mxu0 0.0
      %2547 = vmatprep.subr.mxu0 0.0
      %2548 = vmatpush1.msra.mxu0 0.0
      %2549 = vmatprep.subr.mxu0 0.0
      %2550 = vmatpush1.msra.mxu0 0.0
      %2551 = vmatprep.subr.mxu0 0.0
      %2552 = vmatpush1.msra.mxu0 0.0
      %2553 = vmatprep.subr.mxu0 0.0
      %2554 = vmatpush1.msra.mxu0 0.0
      %2555 = vmatprep.subr.mxu0 0.0
      %2556 = vmatpush1.msra.mxu0 0.0
      %2557 = vmatprep.subr.mxu0 0.0
      %2558 = vmatpush1.msra.mxu0 0.0
      %2559 = vmatprep.subr.mxu0 0.0
      %2560 = vmatpush1.msra.mxu0 0.0
      %2561 = vmatprep.subr.mxu0 0.0
      %2562 = vmatpush1.msra.mxu0 0.0
      %2563 = vmatprep.subr.mxu0 0.0
      %2564 = vmatpush1.msra.mxu0 0.0
      %2565 = vmatprep.subr.mxu0 0.0
      %2566 = vmatpush1.msra.mxu0 0.0
      %2567 = vmatprep.subr.mxu0 0.0
      %2568 = vmatpush1.msra.mxu0 0.0
      %2569 = vmatprep.subr.mxu0 0.0
      %2570 = vmatpush1.msra.mxu0 0.0
      %2571 = vmatprep.subr.mxu0 0.0
      %2572 = vmatpush1.msra.mxu0 0.0
      %2573 = vmatprep.subr.mxu0 0.0
      %2574 = vmatpush1.msra.mxu0 0.0
      %2575 = vmatprep.subr.mxu0 0.0
      %2576 = vmatpush1.msra.mxu0 0.0
      %2577 = vmatprep.subr.mxu0 0.0
      %2578 = vmatpush1.msra.mxu0 0.0
      %2579 = vmatprep.subr.mxu0 0.0
      %2580 = vmatpush1.msra.mxu0 0.0
      %2581 = vmatprep.subr.mxu0 0.0
      %2582 = vmatpush1.msra.mxu0 0.0
      %2583 = vmatprep.subr.mxu0 0.0
      %2584 = vmatpush1.msra.mxu0 0.0
      %2585 = vmatprep.subr.mxu0 0.0
      %2586 = vmatpush1.msra.mxu0 0.0
      %2587 = vmatprep.subr.mxu0 0.0
      %2588 = vmatpush1.msra.mxu0 0.0
      %2589 = vmatprep.subr.mxu0 0.0
      %2590 = vmatpush1.msra.mxu0 0.0
      %2591 = vmatprep.subr.mxu0 0.0
      %2592 = vmatpush1.msra.mxu0 0.0
      %2593 = vmatprep.subr.mxu0 0.0
      %2594 = vmatpush1.msra.mxu0 0.0
      %2595 = vmatprep.subr.mxu0 0.0
      %2596 = vmatpush1.msra.mxu0 0.0
      %2597 = vmatprep.subr.mxu0 0.0
      %2598 = vmatpush1.msra.mxu0 0.0
      %2599 = vmatprep.subr.mxu0 0.0
      %2600 = vmatpush1.msra.mxu0 0.0
      %2601 = vmatprep.mubr.f32.mxu0 0.0
      %2602 = vmatmul.mubr.f32.gmra.mrb[0].mxu0 %v2535
      %v2603 = vpop.f32.mrb[0].mxu0
      %v2604 = vadd.f32 0.0, %v2603
      %v2605 = vpop.f32.mrb[0].mxu0
      %2606 = vdwg.mxu0
      %v2607 = vmul.f32 %v2604, 0.0078125
      %v2608 = vmul.f32 %v2607, %v2607
      %v2610 = vrot.slane %v2608, 7
      %v2612 = vsub.f32 %v2607, %v2610
      %v2613 = vmax.f32 %v2612, 0.0
      %v2614 = vlaneseq
      %v2615 = vshrl.u32 %v2614, 7
      %v2616 = vsub.s32 0, %v2615
      %v2617 = vrot.slane %v2607, %v2616
      %v2618 = vsub.f32 %v2470, %v2617
      %v2619 = vsub.f32 %v2471, %v2617
      %v2620 = vsub.f32 %v2472, %v2617
      %v2621 = vsub.f32 %v2473, %v2617
      %v2622 = vsub.f32 %v2474, %v2617
      %v2623 = vsub.f32 %v2475, %v2617
      %v2624 = vsub.f32 %v2476, %v2617
      %v2625 = vsub.f32 %v2477, %v2617
      %v2626 = vadd.f32 %v2613, 1e-05
      %v2627 = vrsqrt.pop %v2626
      %v2628 = vlaneseq
      %v2629 = vshrl.u32 %v2628, 7
      %v2630 = vsub.s32 1, %v2629
      %v2631 = vrot.slane %v2627, %v2630
      %v2632 = vmul.f32 %v2618, %v2631
      %v2633 = vmul.f32 %v2619, %v2631
      %v2634 = vmul.f32 %v2620, %v2631
      %v2635 = vmul.f32 %v2621, %v2631
      %v2636 = vmul.f32 %v2622, %v2631
      %v2637 = vmul.f32 %v2623, %v2631
      %v2638 = vmul.f32 %v2624, %v2631
      %v2639 = vmul.f32 %v2625, %v2631
      %v2640 = vld [vmem:[%s8] sm:$0x1]
      %v2642 = vlaneseq
      %v2643 = vshrl.u32 %v2642, 7
      %v2644 = vsub.s32 0, %v2643
      %v2645 = vrot.slane %v2640, %v2644
      %v2647 = vmul.f32 %v2632, %v2645
      %v2648 = vmul.f32 %v2633, %v2645
      %v2649 = vmul.f32 %v2634, %v2645
      %v2650 = vmul.f32 %v2635, %v2645
      %v2651 = vmul.f32 %v2636, %v2645
      %v2652 = vmul.f32 %v2637, %v2645
      %v2653 = vmul.f32 %v2638, %v2645
      %v2654 = vmul.f32 %v2639, %v2645
      %v2655 = vld [vmem:[%s9] sm:$0x1]
      %v2657 = vlaneseq
      %v2658 = vshrl.u32 %v2657, 7
      %v2659 = vsub.s32 0, %v2658
      %v2660 = vrot.slane %v2655, %v2659
      %v2662 = vadd.f32 %v2647, %v2660
      %v2663 = vadd.f32 %v2648, %v2660
      %v2664 = vadd.f32 %v2649, %v2660
      %v2665 = vadd.f32 %v2650, %v2660
      %v2666 = vadd.f32 %v2651, %v2660
      %v2667 = vadd.f32 %v2652, %v2660
      %v2668 = vadd.f32 %v2653, %v2660
      %v2669 = vadd.f32 %v2654, %v2660
      %v2670 = vmax.f32 %v2662, 0.0
      %v2671 = vmax.f32 %v2663, 0.0
      %v2672 = vmax.f32 %v2664, 0.0
      %v2673 = vmax.f32 %v2665, 0.0
      %v2674 = vmax.f32 %v2666, 0.0
      %v2675 = vmax.f32 %v2667, 0.0
      %v2676 = vmax.f32 %v2668, 0.0
      %v2677 = vmax.f32 %v2669, 0.0
      %v2678 = vpack.c.bf16 %v2671, %v2670
      %v2679 = vpack.c.bf16 %v2673, %v2672
      %v2680 = vpack.c.bf16 %v2675, %v2674
      %v2681 = vpack.c.bf16 %v2677, %v2676
      %v2682 = vld [vmem:[%s4] sm:$0xf]
      %v2683 = vld [vmem:[%s4 + $0x4] sm:$0xf]
      %v2684 = vld [vmem:[%s4 + $0x8] sm:$0xf]
      %v2685 = vld [vmem:[%s4 + $0xc] sm:$0xf]
      %v2686 = vld [vmem:[%s4 + $0x10] sm:$0xf]
      %v2687 = vld [vmem:[%s4 + $0x14] sm:$0xf]
      %v2688 = vld [vmem:[%s4 + $0x18] sm:$0xf]
      %v2689 = vld [vmem:[%s4 + $0x1c] sm:$0xf]
      %v2690 = vld [vmem:[%s4 + $0x20] sm:$0xf]
      %v2691 = vld [vmem:[%s4 + $0x24] sm:$0xf]
      %v2692 = vld [vmem:[%s4 + $0x28] sm:$0xf]
      %v2693 = vld [vmem:[%s4 + $0x2c] sm:$0xf]
      %v2694 = vld [vmem:[%s4 + $0x30] sm:$0xf]
      %v2695 = vld [vmem:[%s4 + $0x34] sm:$0xf]
      %v2696 = vld [vmem:[%s4 + $0x38] sm:$0xf]
      %v2697 = vld [vmem:[%s4 + $0x3c] sm:$0xf]
      %v2698 = vld [vmem:[%s4 + $0x40] sm:$0xf]
      %v2699 = vld [vmem:[%s4 + $0x44] sm:$0xf]
      %v2718 = vunpack.c.l.b16 %v2682
      %v2719 = vunpack.c.l.b16 %v2683
      %v2720 = vunpack.c.l.b16 %v2684
      %v2721 = vunpack.c.l.b16 %v2685
      %v2722 = vunpack.c.l.b16 %v2686
      %v2723 = vunpack.c.l.b16 %v2687
      %v2724 = vunpack.c.l.b16 %v2688
      %v2725 = vunpack.c.l.b16 %v2689
      %v2726 = vunpack.c.l.b16 %v2690
      %v2727 = vunpack.c.l.b16 %v2691
      %v2728 = vunpack.c.l.b16 %v2692
      %v2729 = vunpack.c.l.b16 %v2693
      %v2730 = vunpack.c.l.b16 %v2694
      %v2731 = vunpack.c.l.b16 %v2695
      %v2732 = vunpack.c.l.b16 %v2696
      %v2733 = vunpack.c.l.b16 %v2697
      %v2734 = vunpack.c.l.b16 %v2698
      %v2735 = vunpack.c.l.b16 %v2699
      %v2736 = vpack.c.b16 %v2719, %v2718
      %v2737 = vpack.c.b16 %v2721, %v2720
      %v2738 = vpack.c.b16 %v2723, %v2722
      %v2739 = vpack.c.b16 %v2725, %v2724
      %v2740 = vpack.c.b16 %v2727, %v2726
      %v2741 = vpack.c.b16 %v2729, %v2728
      %v2742 = vpack.c.b16 %v2731, %v2730
      %v2743 = vpack.c.b16 %v2733, %v2732
      %v2744 = vpack.c.b16 %v2735, %v2734
      %vm2745 = vcmask 523264
      %v2747 = vsel %vm2745, %v2736, 0
      %v2750 = vsel %vm2745, %v2737, 0
      %v2753 = vsel %vm2745, %v2738, 0
      %v2756 = vsel %vm2745, %v2739, 0
      %v2759 = vsel %vm2745, %v2740, 0
      %v2762 = vsel %vm2745, %v2741, 0
      %v2765 = vsel %vm2745, %v2742, 0
      %v2768 = vsel %vm2745, %v2743, 0
      %v2771 = vsel %vm2745, %v2744, 0
      %2773 = vmatprep.subr.bf16.mxu0 0
      %2774 = vmatpush1.bf16.msra.mxu0 %v2678
      %2775 = vmatprep.subr.bf16.mxu0 0
      %2776 = vmatpush1.bf16.msra.mxu0 %v2679
      %2777 = vmatprep.subr.bf16.mxu0 0
      %2778 = vmatpush1.bf16.msra.mxu0 %v2680
      %2779 = vmatprep.subr.bf16.mxu0 0
      %2780 = vmatpush1.bf16.msra.mxu0 %v2681
      %2781 = vmatprep.subr.bf16.mxu0 0
      %2782 = vmatpush1.bf16.msra.mxu0 0
      %2783 = vmatprep.subr.bf16.mxu0 0
      %2784 = vmatpush1.bf16.msra.mxu0 0
      %2785 = vmatprep.subr.bf16.mxu0 0
      %2786 = vmatpush1.bf16.msra.mxu0 0
      %2787 = vmatprep.subr.bf16.mxu0 0
      %2788 = vmatpush1.bf16.msra.mxu0 0
      %2789 = vmatprep.subr.bf16.mxu0 0
      %2790 = vmatpush1.bf16.msra.mxu0 0
      %2791 = vmatprep.subr.bf16.mxu0 0
      %2792 = vmatpush1.bf16.msra.mxu0 0
      %2793 = vmatprep.subr.bf16.mxu0 0
      %2794 = vmatpush1.bf16.msra.mxu0 0
      %2795 = vmatprep.subr.bf16.mxu0 0
      %2796 = vmatpush1.bf16.msra.mxu0 0
      %2797 = vmatprep.subr.bf16.mxu0 0
      %2798 = vmatpush1.bf16.msra.mxu0 0
      %2799 = vmatprep.subr.bf16.mxu0 0
      %2800 = vmatpush1.bf16.msra.mxu0 0
      %2801 = vmatprep.subr.bf16.mxu0 0
      %2802 = vmatpush1.bf16.msra.mxu0 0
      %2803 = vmatprep.subr.bf16.mxu0 0
      %2804 = vmatpush1.bf16.msra.mxu0 0
      %2805 = vmatprep.mubr.bf16.mxu0 0
      %2806 = vmatmul.mubr.bf16.gmra.mrb[0].mxu0 %v2747
      %v2807 = vpop.f32.mrb[0].mxu0
      %v2808 = vadd.f32 0.0, %v2807
      %v2809 = vpop.f32.mrb[0].mxu0
      %v2810 = vpop.f32.mrb[0].mxu0
      %v2811 = vadd.f32 0.0, %v2810
      %v2812 = vpop.f32.mrb[0].mxu0
      %2813 = vmatprep.mubr.bf16.mxu0 0
      %2814 = vmatmul.mubr.bf16.gmra.mrb[0].mxu0 %v2750
      %v2815 = vpop.f32.mrb[0].mxu0
      %v2816 = vadd.f32 0.0, %v2815
      %v2817 = vpop.f32.mrb[0].mxu0
      %v2818 = vpop.f32.mrb[0].mxu0
      %v2819 = vadd.f32 0.0, %v2818
      %v2820 = vpop.f32.mrb[0].mxu0
      %2821 = vmatprep.mubr.bf16.mxu0 0
      %2822 = vmatmul.mubr.bf16.gmra.mrb[0].mxu0 %v2753
      %v2823 = vpop.f32.mrb[0].mxu0
      %v2824 = vadd.f32 0.0, %v2823
      %v2825 = vpop.f32.mrb[0].mxu0
      %v2826 = vpop.f32.mrb[0].mxu0
      %v2827 = vadd.f32 0.0, %v2826
      %v2828 = vpop.f32.mrb[0].mxu0
      %2829 = vmatprep.mubr.bf16.mxu0 0
      %2830 = vmatmul.mubr.bf16.gmra.mrb[0].mxu0 %v2756
      %v2831 = vpop.f32.mrb[0].mxu0
      %v2832 = vadd.f32 0.0, %v2831
      %v2833 = vpop.f32.mrb[0].mxu0
      %v2834 = vpop.f32.mrb[0].mxu0
      %v2835 = vadd.f32 0.0, %v2834
      %v2836 = vpop.f32.mrb[0].mxu0
      %2837 = vmatprep.mubr.bf16.mxu0 0
      %2838 = vmatmul.mubr.bf16.gmra.mrb[0].mxu0 %v2759
      %v2839 = vpop.f32.mrb[0].mxu0
      %v2840 = vadd.f32 0.0, %v2839
      %v2841 = vpop.f32.mrb[0].mxu0
      %v2842 = vpop.f32.mrb[0].mxu0
      %v2843 = vadd.f32 0.0, %v2842
      %v2844 = vpop.f32.mrb[0].mxu0
      %2845 = vmatprep.mubr.bf16.mxu0 0
      %2846 = vmatmul.mubr.bf16.gmra.mrb[0].mxu0 %v2762
      %v2847 = vpop.f32.mrb[0].mxu0
      %v2848 = vadd.f32 0.0, %v2847
      %v2849 = vpop.f32.mrb[0].mxu0
      %v2850 = vpop.f32.mrb[0].mxu0
      %v2851 = vadd.f32 0.0, %v2850
      %v2852 = vpop.f32.mrb[0].mxu0
      %2853 = vmatprep.mubr.bf16.mxu0 0
      %2854 = vmatmul.mubr.bf16.gmra.mrb[0].mxu0 %v2765
      %v2855 = vpop.f32.mrb[0].mxu0
      %v2856 = vadd.f32 0.0, %v2855
      %v2857 = vpop.f32.mrb[0].mxu0
      %v2858 = vpop.f32.mrb[0].mxu0
      %v2859 = vadd.f32 0.0, %v2858
      %v2860 = vpop.f32.mrb[0].mxu0
      %2861 = vmatprep.mubr.bf16.mxu0 0
      %2862 = vmatmul.mubr.bf16.gmra.mrb[0].mxu0 %v2768
      %v2863 = vpop.f32.mrb[0].mxu0
      %v2864 = vadd.f32 0.0, %v2863
      %v2865 = vpop.f32.mrb[0].mxu0
      %v2866 = vpop.f32.mrb[0].mxu0
      %v2867 = vadd.f32 0.0, %v2866
      %v2868 = vpop.f32.mrb[0].mxu0
      %2869 = vmatprep.mubr.bf16.mxu0 0
      %2870 = vmatmul.mubr.bf16.gmra.mrb[0].mxu0 %v2771
      %v2871 = vpop.f32.mrb[0].mxu0
      %v2872 = vadd.f32 0.0, %v2871
      %v2873 = vpop.f32.mrb[0].mxu0
      %v2874 = vpop.f32.mrb[0].mxu0
      %v2875 = vadd.f32 0.0, %v2874
      %v2876 = vpop.f32.mrb[0].mxu0
      %2877 = vdwg.mxu0
      %v2878 = vpack.c.bf16 %v2811, %v2808
      %v2879 = vpack.c.bf16 %v2819, %v2816
      %v2880 = vpack.c.bf16 %v2827, %v2824
      %v2881 = vpack.c.bf16 %v2835, %v2832
      %v2882 = vpack.c.bf16 %v2843, %v2840
      %v2883 = vpack.c.bf16 %v2851, %v2848
      %v2884 = vpack.c.bf16 %v2859, %v2856
      %v2885 = vpack.c.bf16 %v2867, %v2864
      %v2886 = vpack.c.bf16 %v2875, %v2872
      %v2887 = vld [vmem:[%s10] sm:$0xf]
      %v2888 = vld [vmem:[%s10 + $0x4] sm:$0xf]
      %v2889 = vld [vmem:[%s10 + $0x8] sm:$0xf]
      %v2890 = vld [vmem:[%s10 + $0xc] sm:$0xf]
      %s2891 = scalar_lea.vmem %s10, 16
      %v2892 = vld [vmem:[%s2891] sm:$0xf]
      %v2893 = vld [vmem:[%s2891 + $0x4] sm:$0xf]
      %v2894 = vld [vmem:[%s2891 + $0x8] sm:$0xf]
      %v2895 = vld [vmem:[%s2891 + $0xc] sm:$0xf]
      %v2900 = vunpack.c.l.b16 %v2892
      %v2901 = vunpack.c.l.b16 %v2893
      %v2902 = vunpack.c.l.b16 %v2894
      %v2903 = vunpack.c.l.b16 %v2895
      %v2904 = vpack.c.b16 %v2901, %v2900
      %v2905 = vpack.c.b16 %v2903, %v2902
      %v2909 = vsel %vm1582, %v2879, 0
      %2911 = vmatprep.subr.bf16.mxu0 0
      %2912 = vmatpush1.bf16.msra.mxu0 %v2904
      %2913 = vmatprep.subr.bf16.mxu0 0
      %2914 = vmatpush1.bf16.msra.mxu0 %v2905
      %2915 = vmatprep.subr.bf16.mxu0 0
      %2916 = vmatpush1.bf16.msra.mxu0 0
      %2917 = vmatprep.subr.bf16.mxu0 0
      %2918 = vmatpush1.bf16.msra.mxu0 0
      %2919 = vmatprep.subr.bf16.mxu0 0
      %2920 = vmatpush1.bf16.msra.mxu0 0
      %2921 = vmatprep.subr.bf16.mxu0 0
      %2922 = vmatpush1.bf16.msra.mxu0 0
      %2923 = vmatprep.subr.bf16.mxu0 0
      %2924 = vmatpush1.bf16.msra.mxu0 0
      %2925 = vmatprep.subr.bf16.mxu0 0
      %2926 = vmatpush1.bf16.msra.mxu0 0
      %2927 = vmatprep.subr.bf16.mxu0 0
      %2928 = vmatpush1.bf16.msra.mxu0 0
      %2929 = vmatprep.subr.bf16.mxu0 0
      %2930 = vmatpush1.bf16.msra.mxu0 0
      %2931 = vmatprep.subr.bf16.mxu0 0
      %2932 = vmatpush1.bf16.msra.mxu0 0
      %2933 = vmatprep.subr.bf16.mxu0 0
      %2934 = vmatpush1.bf16.msra.mxu0 0
      %2935 = vmatprep.subr.bf16.mxu0 0
      %2936 = vmatpush1.bf16.msra.mxu0 0
      %2937 = vmatprep.subr.bf16.mxu0 0
      %2938 = vmatpush1.bf16.msra.mxu0 0
      %2939 = vmatprep.subr.bf16.mxu0 0
      %2940 = vmatpush1.bf16.msra.mxu0 0
      %2941 = vmatprep.subr.bf16.mxu0 0
      %2942 = vmatpush1.bf16.msra.mxu0 0
      %2943 = vmatprep.mubr.bf16.mxu0 0
      %2944 = vmatmul.mubr.bf16.gmra.mrb[0].mxu0 %v2909
      %v2945 = vpop.f32.mrb[0].mxu0
      %v2946 = vadd.f32 0.0, %v2945
      %v2947 = vpop.f32.mrb[0].mxu0
      %v2948 = vpop.f32.mrb[0].mxu0
      %v2949 = vadd.f32 0.0, %v2948
      %v2950 = vpop.f32.mrb[0].mxu0
      %2951 = vdwg.mxu0
      %v2956 = vunpack.c.l.b16 %v2887
      %v2957 = vunpack.c.l.b16 %v2888
      %v2958 = vunpack.c.l.b16 %v2889
      %v2959 = vunpack.c.l.b16 %v2890
      %v2960 = vpack.c.b16 %v2957, %v2956
      %v2961 = vpack.c.b16 %v2959, %v2958
      %v2965 = vsel %vm1582, %v2878, 0
      %2967 = vmatprep.subr.bf16.mxu0 0
      %2968 = vmatpush1.bf16.msra.mxu0 %v2960
      %2969 = vmatprep.subr.bf16.mxu0 0
      %2970 = vmatpush1.bf16.msra.mxu0 %v2961
      %2971 = vmatprep.subr.bf16.mxu0 0
      %2972 = vmatpush1.bf16.msra.mxu0 0
      %2973 = vmatprep.subr.bf16.mxu0 0
      %2974 = vmatpush1.bf16.msra.mxu0 0
      %2975 = vmatprep.subr.bf16.mxu0 0
      %2976 = vmatpush1.bf16.msra.mxu0 0
      %2977 = vmatprep.subr.bf16.mxu0 0
      %2978 = vmatpush1.bf16.msra.mxu0 0
      %2979 = vmatprep.subr.bf16.mxu0 0
      %2980 = vmatpush1.bf16.msra.mxu0 0
      %2981 = vmatprep.subr.bf16.mxu0 0
      %2982 = vmatpush1.bf16.msra.mxu0 0
      %2983 = vmatprep.subr.bf16.mxu0 0
      %2984 = vmatpush1.bf16.msra.mxu0 0
      %2985 = vmatprep.subr.bf16.mxu0 0
      %2986 = vmatpush1.bf16.msra.mxu0 0
      %2987 = vmatprep.subr.bf16.mxu0 0
      %2988 = vmatpush1.bf16.msra.mxu0 0
      %2989 = vmatprep.subr.bf16.mxu0 0
      %2990 = vmatpush1.bf16.msra.mxu0 0
      %2991 = vmatprep.subr.bf16.mxu0 0
      %2992 = vmatpush1.bf16.msra.mxu0 0
      %2993 = vmatprep.subr.bf16.mxu0 0
      %2994 = vmatpush1.bf16.msra.mxu0 0
      %2995 = vmatprep.subr.bf16.mxu0 0
      %2996 = vmatpush1.bf16.msra.mxu0 0
      %2997 = vmatprep.subr.bf16.mxu0 0
      %2998 = vmatpush1.bf16.msra.mxu0 0
      %2999 = vmatprep.mubr.bf16.mxu0 0
      %3000 = vmatmul.mubr.bf16.gmra.mrb[0].mxu0 %v2965
      %v3001 = vpop.f32.mrb[0].mxu0
      %v3002 = vadd.f32 %v2946, %v3001
      %v3003 = vpop.f32.mrb[0].mxu0
      %v3004 = vpop.f32.mrb[0].mxu0
      %v3005 = vadd.f32 %v2949, %v3004
      %v3006 = vpop.f32.mrb[0].mxu0
      %3007 = vdwg.mxu0
      %s3008 = scalar_lea.vmem %s10, 32
      %v3009 = vld [vmem:[%s3008] sm:$0xf]
      %v3010 = vld [vmem:[%s3008 + $0x4] sm:$0xf]
      %v3011 = vld [vmem:[%s3008 + $0x8] sm:$0xf]
      %v3012 = vld [vmem:[%s3008 + $0xc] sm:$0xf]
      %v3017 = vunpack.c.l.b16 %v3009
      %v3018 = vunpack.c.l.b16 %v3010
      %v3019 = vunpack.c.l.b16 %v3011
      %v3020 = vunpack.c.l.b16 %v3012
      %v3021 = vpack.c.b16 %v3018, %v3017
      %v3022 = vpack.c.b16 %v3020, %v3019
      %v3026 = vsel %vm1582, %v2880, 0
      %3028 = vmatprep.subr.bf16.mxu0 0
      %3029 = vmatpush1.bf16.msra.mxu0 %v3021
      %3030 = vmatprep.subr.bf16.mxu0 0
      %3031 = vmatpush1.bf16.msra.mxu0 %v3022
      %3032 = vmatprep.subr.bf16.mxu0 0
      %3033 = vmatpush1.bf16.msra.mxu0 0
      %3034 = vmatprep.subr.bf16.mxu0 0
      %3035 = vmatpush1.bf16.msra.mxu0 0
      %3036 = vmatprep.subr.bf16.mxu0 0
      %3037 = vmatpush1.bf16.msra.mxu0 0
      %3038 = vmatprep.subr.bf16.mxu0 0
      %3039 = vmatpush1.bf16.msra.mxu0 0
      %3040 = vmatprep.subr.bf16.mxu0 0
      %3041 = vmatpush1.bf16.msra.mxu0 0
      %3042 = vmatprep.subr.bf16.mxu0 0
      %3043 = vmatpush1.bf16.msra.mxu0 0
      %3044 = vmatprep.subr.bf16.mxu0 0
      %3045 = vmatpush1.bf16.msra.mxu0 0
      %3046 = vmatprep.subr.bf16.mxu0 0
      %3047 = vmatpush1.bf16.msra.mxu0 0
      %3048 = vmatprep.subr.bf16.mxu0 0
      %3049 = vmatpush1.bf16.msra.mxu0 0
      %3050 = vmatprep.subr.bf16.mxu0 0
      %3051 = vmatpush1.bf16.msra.mxu0 0
      %3052 = vmatprep.subr.bf16.mxu0 0
      %3053 = vmatpush1.bf16.msra.mxu0 0
      %3054 = vmatprep.subr.bf16.mxu0 0
      %3055 = vmatpush1.bf16.msra.mxu0 0
      %3056 = vmatprep.subr.bf16.mxu0 0
      %3057 = vmatpush1.bf16.msra.mxu0 0
      %3058 = vmatprep.subr.bf16.mxu0 0
      %3059 = vmatpush1.bf16.msra.mxu0 0
      %3060 = vmatprep.mubr.bf16.mxu0 0
      %3061 = vmatmul.mubr.bf16.gmra.mrb[0].mxu0 %v3026
      %v3062 = vpop.f32.mrb[0].mxu0
      %v3063 = vadd.f32 0.0, %v3062
      %v3064 = vpop.f32.mrb[0].mxu0
      %v3065 = vpop.f32.mrb[0].mxu0
      %v3066 = vadd.f32 0.0, %v3065
      %v3067 = vpop.f32.mrb[0].mxu0
      %3068 = vdwg.mxu0
      %v3069 = vadd.f32 %v3002, %v3063
      %v3070 = vadd.f32 %v3005, %v3066
      %s3071 = scalar_lea.vmem %s10, 48
      %v3072 = vld [vmem:[%s3071] sm:$0xf]
      %v3073 = vld [vmem:[%s3071 + $0x4] sm:$0xf]
      %v3074 = vld [vmem:[%s3071 + $0x8] sm:$0xf]
      %v3075 = vld [vmem:[%s3071 + $0xc] sm:$0xf]
      %v3080 = vunpack.c.l.b16 %v3072
      %v3081 = vunpack.c.l.b16 %v3073
      %v3082 = vunpack.c.l.b16 %v3074
      %v3083 = vunpack.c.l.b16 %v3075
      %v3084 = vpack.c.b16 %v3081, %v3080
      %v3085 = vpack.c.b16 %v3083, %v3082
      %v3089 = vsel %vm1582, %v2881, 0
      %3091 = vmatprep.subr.bf16.mxu0 0
      %3092 = vmatpush1.bf16.msra.mxu0 %v3084
      %3093 = vmatprep.subr.bf16.mxu0 0
      %3094 = vmatpush1.bf16.msra.mxu0 %v3085
      %3095 = vmatprep.subr.bf16.mxu0 0
      %3096 = vmatpush1.bf16.msra.mxu0 0
      %3097 = vmatprep.subr.bf16.mxu0 0
      %3098 = vmatpush1.bf16.msra.mxu0 0
      %3099 = vmatprep.subr.bf16.mxu0 0
      %3100 = vmatpush1.bf16.msra.mxu0 0
      %3101 = vmatprep.subr.bf16.mxu0 0
      %3102 = vmatpush1.bf16.msra.mxu0 0
      %3103 = vmatprep.subr.bf16.mxu0 0
      %3104 = vmatpush1.bf16.msra.mxu0 0
      %3105 = vmatprep.subr.bf16.mxu0 0
      %3106 = vmatpush1.bf16.msra.mxu0 0
      %3107 = vmatprep.subr.bf16.mxu0 0
      %3108 = vmatpush1.bf16.msra.mxu0 0
      %3109 = vmatprep.subr.bf16.mxu0 0
      %3110 = vmatpush1.bf16.msra.mxu0 0
      %3111 = vmatprep.subr.bf16.mxu0 0
      %3112 = vmatpush1.bf16.msra.mxu0 0
      %3113 = vmatprep.subr.bf16.mxu0 0
      %3114 = vmatpush1.bf16.msra.mxu0 0
      %3115 = vmatprep.subr.bf16.mxu0 0
      %3116 = vmatpush1.bf16.msra.mxu0 0
      %3117 = vmatprep.subr.bf16.mxu0 0
      %3118 = vmatpush1.bf16.msra.mxu0 0
      %3119 = vmatprep.subr.bf16.mxu0 0
      %3120 = vmatpush1.bf16.msra.mxu0 0
      %3121 = vmatprep.subr.bf16.mxu0 0
      %3122 = vmatpush1.bf16.msra.mxu0 0
      %3123 = vmatprep.mubr.bf16.mxu0 0
      %3124 = vmatmul.mubr.bf16.gmra.mrb[0].mxu0 %v3089
      %v3125 = vpop.f32.mrb[0].mxu0
      %v3126 = vadd.f32 0.0, %v3125
      %v3127 = vpop.f32.mrb[0].mxu0
      %v3128 = vpop.f32.mrb[0].mxu0
      %v3129 = vadd.f32 0.0, %v3128
      %v3130 = vpop.f32.mrb[0].mxu0
      %3131 = vdwg.mxu0
      %v3132 = vadd.f32 %v3069, %v3126
      %v3133 = vadd.f32 %v3070, %v3129
      %s3134 = scalar_lea.vmem %s10, 64
      %v3135 = vld [vmem:[%s3134] sm:$0xf]
      %v3136 = vld [vmem:[%s3134 + $0x4] sm:$0xf]
      %v3137 = vld [vmem:[%s3134 + $0x8] sm:$0xf]
      %v3138 = vld [vmem:[%s3134 + $0xc] sm:$0xf]
      %v3143 = vunpack.c.l.b16 %v3135
      %v3144 = vunpack.c.l.b16 %v3136
      %v3145 = vunpack.c.l.b16 %v3137
      %v3146 = vunpack.c.l.b16 %v3138
      %v3147 = vpack.c.b16 %v3144, %v3143
      %v3148 = vpack.c.b16 %v3146, %v3145
      %v3152 = vsel %vm1582, %v2882, 0
      %3154 = vmatprep.subr.bf16.mxu0 0
      %3155 = vmatpush1.bf16.msra.mxu0 %v3147
      %3156 = vmatprep.subr.bf16.mxu0 0
      %3157 = vmatpush1.bf16.msra.mxu0 %v3148
      %3158 = vmatprep.subr.bf16.mxu0 0
      %3159 = vmatpush1.bf16.msra.mxu0 0
      %3160 = vmatprep.subr.bf16.mxu0 0
      %3161 = vmatpush1.bf16.msra.mxu0 0
      %3162 = vmatprep.subr.bf16.mxu0 0
      %3163 = vmatpush1.bf16.msra.mxu0 0
      %3164 = vmatprep.subr.bf16.mxu0 0
      %3165 = vmatpush1.bf16.msra.mxu0 0
      %3166 = vmatprep.subr.bf16.mxu0 0
      %3167 = vmatpush1.bf16.msra.mxu0 0
      %3168 = vmatprep.subr.bf16.mxu0 0
      %3169 = vmatpush1.bf16.msra.mxu0 0
      %3170 = vmatprep.subr.bf16.mxu0 0
      %3171 = vmatpush1.bf16.msra.mxu0 0
      %3172 = vmatprep.subr.bf16.mxu0 0
      %3173 = vmatpush1.bf16.msra.mxu0 0
      %3174 = vmatprep.subr.bf16.mxu0 0
      %3175 = vmatpush1.bf16.msra.mxu0 0
      %3176 = vmatprep.subr.bf16.mxu0 0
      %3177 = vmatpush1.bf16.msra.mxu0 0
      %3178 = vmatprep.subr.bf16.mxu0 0
      %3179 = vmatpush1.bf16.msra.mxu0 0
      %3180 = vmatprep.subr.bf16.mxu0 0
      %3181 = vmatpush1.bf16.msra.mxu0 0
      %3182 = vmatprep.subr.bf16.mxu0 0
      %3183 = vmatpush1.bf16.msra.mxu0 0
      %3184 = vmatprep.subr.bf16.mxu0 0
      %3185 = vmatpush1.bf16.msra.mxu0 0
      %3186 = vmatprep.mubr.bf16.mxu0 0
      %3187 = vmatmul.mubr.bf16.gmra.mrb[0].mxu0 %v3152
      %v3188 = vpop.f32.mrb[0].mxu0
      %v3189 = vadd.f32 0.0, %v3188
      %v3190 = vpop.f32.mrb[0].mxu0
      %v3191 = vpop.f32.mrb[0].mxu0
      %v3192 = vadd.f32 0.0, %v3191
      %v3193 = vpop.f32.mrb[0].mxu0
      %3194 = vdwg.mxu0
      %v3195 = vadd.f32 %v3132, %v3189
      %v3196 = vadd.f32 %v3133, %v3192
      %s3197 = scalar_lea.vmem %s10, 80
      %v3198 = vld [vmem:[%s3197] sm:$0xf]
      %v3199 = vld [vmem:[%s3197 + $0x4] sm:$0xf]
      %v3200 = vld [vmem:[%s3197 + $0x8] sm:$0xf]
      %v3201 = vld [vmem:[%s3197 + $0xc] sm:$0xf]
      %v3206 = vunpack.c.l.b16 %v3198
      %v3207 = vunpack.c.l.b16 %v3199
      %v3208 = vunpack.c.l.b16 %v3200
      %v3209 = vunpack.c.l.b16 %v3201
      %v3210 = vpack.c.b16 %v3207, %v3206
      %v3211 = vpack.c.b16 %v3209, %v3208
      %v3215 = vsel %vm1582, %v2883, 0
      %3217 = vmatprep.subr.bf16.mxu0 0
      %3218 = vmatpush1.bf16.msra.mxu0 %v3210
      %3219 = vmatprep.subr.bf16.mxu0 0
      %3220 = vmatpush1.bf16.msra.mxu0 %v3211
      %3221 = vmatprep.subr.bf16.mxu0 0
      %3222 = vmatpush1.bf16.msra.mxu0 0
      %3223 = vmatprep.subr.bf16.mxu0 0
      %3224 = vmatpush1.bf16.msra.mxu0 0
      %3225 = vmatprep.subr.bf16.mxu0 0
      %3226 = vmatpush1.bf16.msra.mxu0 0
      %3227 = vmatprep.subr.bf16.mxu0 0
      %3228 = vmatpush1.bf16.msra.mxu0 0
      %3229 = vmatprep.subr.bf16.mxu0 0
      %3230 = vmatpush1.bf16.msra.mxu0 0
      %3231 = vmatprep.subr.bf16.mxu0 0
      %3232 = vmatpush1.bf16.msra.mxu0 0
      %3233 = vmatprep.subr.bf16.mxu0 0
      %3234 = vmatpush1.bf16.msra.mxu0 0
      %3235 = vmatprep.subr.bf16.mxu0 0
      %3236 = vmatpush1.bf16.msra.mxu0 0
      %3237 = vmatprep.subr.bf16.mxu0 0
      %3238 = vmatpush1.bf16.msra.mxu0 0
      %3239 = vmatprep.subr.bf16.mxu0 0
      %3240 = vmatpush1.bf16.msra.mxu0 0
      %3241 = vmatprep.subr.bf16.mxu0 0
      %3242 = vmatpush1.bf16.msra.mxu0 0
      %3243 = vmatprep.subr.bf16.mxu0 0
      %3244 = vmatpush1.bf16.msra.mxu0 0
      %3245 = vmatprep.subr.bf16.mxu0 0
      %3246 = vmatpush1.bf16.msra.mxu0 0
      %3247 = vmatprep.subr.bf16.mxu0 0
      %3248 = vmatpush1.bf16.msra.mxu0 0
      %3249 = vmatprep.mubr.bf16.mxu0 0
      %3250 = vmatmul.mubr.bf16.gmra.mrb[0].mxu0 %v3215
      %v3251 = vpop.f32.mrb[0].mxu0
      %v3252 = vadd.f32 0.0, %v3251
      %v3253 = vpop.f32.mrb[0].mxu0
      %v3254 = vpop.f32.mrb[0].mxu0
      %v3255 = vadd.f32 0.0, %v3254
      %v3256 = vpop.f32.mrb[0].mxu0
      %3257 = vdwg.mxu0
      %v3258 = vadd.f32 %v3195, %v3252
      %v3259 = vadd.f32 %v3196, %v3255
      %s3260 = scalar_lea.vmem %s10, 96
      %v3261 = vld [vmem:[%s3260] sm:$0xf]
      %v3262 = vld [vmem:[%s3260 + $0x4] sm:$0xf]
      %v3263 = vld [vmem:[%s3260 + $0x8] sm:$0xf]
      %v3264 = vld [vmem:[%s3260 + $0xc] sm:$0xf]
      %v3269 = vunpack.c.l.b16 %v3261
      %v3270 = vunpack.c.l.b16 %v3262
      %v3271 = vunpack.c.l.b16 %v3263
      %v3272 = vunpack.c.l.b16 %v3264
      %v3273 = vpack.c.b16 %v3270, %v3269
      %v3274 = vpack.c.b16 %v3272, %v3271
      %v3278 = vsel %vm1582, %v2884, 0
      %3280 = vmatprep.subr.bf16.mxu0 0
      %3281 = vmatpush1.bf16.msra.mxu0 %v3273
      %3282 = vmatprep.subr.bf16.mxu0 0
      %3283 = vmatpush1.bf16.msra.mxu0 %v3274
      %3284 = vmatprep.subr.bf16.mxu0 0
      %3285 = vmatpush1.bf16.msra.mxu0 0
      %3286 = vmatprep.subr.bf16.mxu0 0
      %3287 = vmatpush1.bf16.msra.mxu0 0
      %3288 = vmatprep.subr.bf16.mxu0 0
      %3289 = vmatpush1.bf16.msra.mxu0 0
      %3290 = vmatprep.subr.bf16.mxu0 0
      %3291 = vmatpush1.bf16.msra.mxu0 0
      %3292 = vmatprep.subr.bf16.mxu0 0
      %3293 = vmatpush1.bf16.msra.mxu0 0
      %3294 = vmatprep.subr.bf16.mxu0 0
      %3295 = vmatpush1.bf16.msra.mxu0 0
      %3296 = vmatprep.subr.bf16.mxu0 0
      %3297 = vmatpush1.bf16.msra.mxu0 0
      %3298 = vmatprep.subr.bf16.mxu0 0
      %3299 = vmatpush1.bf16.msra.mxu0 0
      %3300 = vmatprep.subr.bf16.mxu0 0
      %3301 = vmatpush1.bf16.msra.mxu0 0
      %3302 = vmatprep.subr.bf16.mxu0 0
      %3303 = vmatpush1.bf16.msra.mxu0 0
      %3304 = vmatprep.subr.bf16.mxu0 0
      %3305 = vmatpush1.bf16.msra.mxu0 0
      %3306 = vmatprep.subr.bf16.mxu0 0
      %3307 = vmatpush1.bf16.msra.mxu0 0
      %3308 = vmatprep.subr.bf16.mxu0 0
      %3309 = vmatpush1.bf16.msra.mxu0 0
      %3310 = vmatprep.subr.bf16.mxu0 0
      %3311 = vmatpush1.bf16.msra.mxu0 0
      %3312 = vmatprep.mubr.bf16.mxu0 0
      %3313 = vmatmul.mubr.bf16.gmra.mrb[0].mxu0 %v3278
      %v3314 = vpop.f32.mrb[0].mxu0
      %v3315 = vadd.f32 0.0, %v3314
      %v3316 = vpop.f32.mrb[0].mxu0
      %v3317 = vpop.f32.mrb[0].mxu0
      %v3318 = vadd.f32 0.0, %v3317
      %v3319 = vpop.f32.mrb[0].mxu0
      %3320 = vdwg.mxu0
      %v3321 = vadd.f32 %v3258, %v3315
      %v3322 = vadd.f32 %v3259, %v3318
      %s3323 = scalar_lea.vmem %s10, 112
      %v3324 = vld [vmem:[%s3323] sm:$0xf]
      %v3325 = vld [vmem:[%s3323 + $0x4] sm:$0xf]
      %v3326 = vld [vmem:[%s3323 + $0x8] sm:$0xf]
      %v3327 = vld [vmem:[%s3323 + $0xc] sm:$0xf]
      %v3332 = vunpack.c.l.b16 %v3324
      %v3333 = vunpack.c.l.b16 %v3325
      %v3334 = vunpack.c.l.b16 %v3326
      %v3335 = vunpack.c.l.b16 %v3327
      %v3336 = vpack.c.b16 %v3333, %v3332
      %v3337 = vpack.c.b16 %v3335, %v3334
      %v3341 = vsel %vm1582, %v2885, 0
      %3343 = vmatprep.subr.bf16.mxu0 0
      %3344 = vmatpush1.bf16.msra.mxu0 %v3336
      %3345 = vmatprep.subr.bf16.mxu0 0
      %3346 = vmatpush1.bf16.msra.mxu0 %v3337
      %3347 = vmatprep.subr.bf16.mxu0 0
      %3348 = vmatpush1.bf16.msra.mxu0 0
      %3349 = vmatprep.subr.bf16.mxu0 0
      %3350 = vmatpush1.bf16.msra.mxu0 0
      %3351 = vmatprep.subr.bf16.mxu0 0
      %3352 = vmatpush1.bf16.msra.mxu0 0
      %3353 = vmatprep.subr.bf16.mxu0 0
      %3354 = vmatpush1.bf16.msra.mxu0 0
      %3355 = vmatprep.subr.bf16.mxu0 0
      %3356 = vmatpush1.bf16.msra.mxu0 0
      %3357 = vmatprep.subr.bf16.mxu0 0
      %3358 = vmatpush1.bf16.msra.mxu0 0
      %3359 = vmatprep.subr.bf16.mxu0 0
      %3360 = vmatpush1.bf16.msra.mxu0 0
      %3361 = vmatprep.subr.bf16.mxu0 0
      %3362 = vmatpush1.bf16.msra.mxu0 0
      %3363 = vmatprep.subr.bf16.mxu0 0
      %3364 = vmatpush1.bf16.msra.mxu0 0
      %3365 = vmatprep.subr.bf16.mxu0 0
      %3366 = vmatpush1.bf16.msra.mxu0 0
      %3367 = vmatprep.subr.bf16.mxu0 0
      %3368 = vmatpush1.bf16.msra.mxu0 0
      %3369 = vmatprep.subr.bf16.mxu0 0
      %3370 = vmatpush1.bf16.msra.mxu0 0
      %3371 = vmatprep.subr.bf16.mxu0 0
      %3372 = vmatpush1.bf16.msra.mxu0 0
      %3373 = vmatprep.subr.bf16.mxu0 0
      %3374 = vmatpush1.bf16.msra.mxu0 0
      %3375 = vmatprep.mubr.bf16.mxu0 0
      %3376 = vmatmul.mubr.bf16.gmra.mrb[0].mxu0 %v3341
      %v3377 = vpop.f32.mrb[0].mxu0
      %v3378 = vadd.f32 0.0, %v3377
      %v3379 = vpop.f32.mrb[0].mxu0
      %v3380 = vpop.f32.mrb[0].mxu0
      %v3381 = vadd.f32 0.0, %v3380
      %v3382 = vpop.f32.mrb[0].mxu0
      %3383 = vdwg.mxu0
      %v3384 = vadd.f32 %v3321, %v3378
      %v3385 = vadd.f32 %v3322, %v3381
      %s3386 = scalar_lea.vmem %s10, 128
      %v3387 = vld [vmem:[%s3386] sm:$0xf]
      %v3388 = vld [vmem:[%s3386 + $0x4] sm:$0xf]
      %v3389 = vld [vmem:[%s3386 + $0x8] sm:$0xf]
      %v3390 = vld [vmem:[%s3386 + $0xc] sm:$0xf]
      %v3395 = vunpack.c.l.b16 %v3387
      %v3396 = vunpack.c.l.b16 %v3388
      %v3397 = vunpack.c.l.b16 %v3389
      %v3398 = vunpack.c.l.b16 %v3390
      %v3399 = vpack.c.b16 %v3396, %v3395
      %v3400 = vpack.c.b16 %v3398, %v3397
      %v3404 = vsel %vm1582, %v2886, 0
      %3406 = vmatprep.subr.bf16.mxu0 0
      %3407 = vmatpush1.bf16.msra.mxu0 %v3399
      %3408 = vmatprep.subr.bf16.mxu0 0
      %3409 = vmatpush1.bf16.msra.mxu0 %v3400
      %3410 = vmatprep.subr.bf16.mxu0 0
      %3411 = vmatpush1.bf16.msra.mxu0 0
      %3412 = vmatprep.subr.bf16.mxu0 0
      %3413 = vmatpush1.bf16.msra.mxu0 0
      %3414 = vmatprep.subr.bf16.mxu0 0
      %3415 = vmatpush1.bf16.msra.mxu0 0
      %3416 = vmatprep.subr.bf16.mxu0 0
      %3417 = vmatpush1.bf16.msra.mxu0 0
      %3418 = vmatprep.subr.bf16.mxu0 0
      %3419 = vmatpush1.bf16.msra.mxu0 0
      %3420 = vmatprep.subr.bf16.mxu0 0
      %3421 = vmatpush1.bf16.msra.mxu0 0
      %3422 = vmatprep.subr.bf16.mxu0 0
      %3423 = vmatpush1.bf16.msra.mxu0 0
      %3424 = vmatprep.subr.bf16.mxu0 0
      %3425 = vmatpush1.bf16.msra.mxu0 0
      %3426 = vmatprep.subr.bf16.mxu0 0
      %3427 = vmatpush1.bf16.msra.mxu0 0
      %3428 = vmatprep.subr.bf16.mxu0 0
      %3429 = vmatpush1.bf16.msra.mxu0 0
      %3430 = vmatprep.subr.bf16.mxu0 0
      %3431 = vmatpush1.bf16.msra.mxu0 0
      %3432 = vmatprep.subr.bf16.mxu0 0
      %3433 = vmatpush1.bf16.msra.mxu0 0
      %3434 = vmatprep.subr.bf16.mxu0 0
      %3435 = vmatpush1.bf16.msra.mxu0 0
      %3436 = vmatprep.subr.bf16.mxu0 0
      %3437 = vmatpush1.bf16.msra.mxu0 0
      %3438 = vmatprep.mubr.bf16.mxu0 0
      %3439 = vmatmul.mubr.bf16.gmra.mrb[0].mxu0 %v3404
      %v3440 = vpop.f32.mrb[0].mxu0
      %v3441 = vadd.f32 0.0, %v3440
      %v3442 = vpop.f32.mrb[0].mxu0
      %v3443 = vpop.f32.mrb[0].mxu0
      %v3444 = vadd.f32 0.0, %v3443
      %v3445 = vpop.f32.mrb[0].mxu0
      %3446 = vdwg.mxu0
      %v3447 = vadd.f32 %v3384, %v3441
      %v3448 = vadd.f32 %v3385, %v3444
      %v3449 = vld [vmem:[%s11] sm:$0x1]
      %v3451 = vlaneseq
      %v3452 = vshrl.u32 %v3451, 7
      %v3453 = vsub.s32 0, %v3452
      %v3454 = vrot.slane %v3449, %v3453
      %v3456 = vadd.f32 %v3447, %v3454
      %v3457 = vadd.f32 %v3448, %v3454
      %v3458 = vld [vmem:[%s632] sm:$0xf]
      %v3459 = vld [vmem:[%s632 + $0x4] sm:$0xf]
      %v3460 = vld [vmem:[%s632 + $0x8] sm:$0xf]
      %v3461 = vld [vmem:[%s632 + $0xc] sm:$0xf]
      %v3462 = vld [vmem:[%s632 + $0x10] sm:$0xf]
      %v3463 = vld [vmem:[%s632 + $0x14] sm:$0xf]
      %v3464 = vld [vmem:[%s632 + $0x18] sm:$0xf]
      %v3465 = vld [vmem:[%s632 + $0x1c] sm:$0xf]
      %v3474 = vunpack.c.l.b16 %v3458
      %v3475 = vunpack.c.l.b16 %v3459
      %v3476 = vunpack.c.l.b16 %v3460
      %v3477 = vunpack.c.l.b16 %v3461
      %v3478 = vunpack.c.l.b16 %v3462
      %v3479 = vunpack.c.l.b16 %v3463
      %v3480 = vunpack.c.l.b16 %v3464
      %v3481 = vunpack.c.l.b16 %v3465
      %v3482 = vpack.c.b16 %v3475, %v3474
      %v3483 = vpack.c.b16 %v3477, %v3476
      %v3484 = vpack.c.b16 %v3479, %v3478
      %v3485 = vpack.c.b16 %v3481, %v3480
      %3490 = vmatprep.subr.bf16.mxu0 0
      %3491 = vmatpush1.bf16.msra.mxu0 %v3482
      %3492 = vmatprep.subr.bf16.mxu0 0
      %3493 = vmatpush1.bf16.msra.mxu0 %v3483
      %3494 = vmatprep.subr.bf16.mxu0 0
      %3495 = vmatpush1.bf16.msra.mxu0 %v3484
      %3496 = vmatprep.subr.bf16.mxu0 0
      %3497 = vmatpush1.bf16.msra.mxu0 %v3485
      %3498 = vmatprep.subr.bf16.mxu0 0
      %3499 = vmatpush1.bf16.msra.mxu0 0
      %3500 = vmatprep.subr.bf16.mxu0 0
      %3501 = vmatpush1.bf16.msra.mxu0 0
      %3502 = vmatprep.subr.bf16.mxu0 0
      %3503 = vmatpush1.bf16.msra.mxu0 0
      %3504 = vmatprep.subr.bf16.mxu0 0
      %3505 = vmatpush1.bf16.msra.mxu0 0
      %3506 = vmatprep.subr.bf16.mxu0 0
      %3507 = vmatpush1.bf16.msra.mxu0 0
      %3508 = vmatprep.subr.bf16.mxu0 0
      %3509 = vmatpush1.bf16.msra.mxu0 0
      %3510 = vmatprep.subr.bf16.mxu0 0
      %3511 = vmatpush1.bf16.msra.mxu0 0
      %3512 = vmatprep.subr.bf16.mxu0 0
      %3513 = vmatpush1.bf16.msra.mxu0 0
      %3514 = vmatprep.subr.bf16.mxu0 0
      %3515 = vmatpush1.bf16.msra.mxu0 0
      %3516 = vmatprep.subr.bf16.mxu0 0
      %3517 = vmatpush1.bf16.msra.mxu0 0
      %3518 = vmatprep.subr.bf16.mxu0 0
      %3519 = vmatpush1.bf16.msra.mxu0 0
      %3520 = vmatprep.subr.bf16.mxu0 0
      %3521 = vmatpush1.bf16.msra.mxu0 0
      %3522 = vmatprep.mubr.bf16.mxu0 0
      %3523 = vmatmul.mubr.bf16.gmra.mrb[0].mxu0 %v2747
      %v3524 = vpop.f32.mrb[0].mxu0
      %v3525 = vadd.f32 0.0, %v3524
      %v3526 = vpop.f32.mrb[0].mxu0
      %v3527 = vpop.f32.mrb[0].mxu0
      %v3528 = vadd.f32 0.0, %v3527
      %v3529 = vpop.f32.mrb[0].mxu0
      %3530 = vmatprep.mubr.bf16.mxu0 0
      %3531 = vmatmul.mubr.bf16.gmra.mrb[0].mxu0 %v2750
      %v3532 = vpop.f32.mrb[0].mxu0
      %v3533 = vadd.f32 0.0, %v3532
      %v3534 = vpop.f32.mrb[0].mxu0
      %v3535 = vpop.f32.mrb[0].mxu0
      %v3536 = vadd.f32 0.0, %v3535
      %v3537 = vpop.f32.mrb[0].mxu0
      %3538 = vmatprep.mubr.bf16.mxu0 0
      %3539 = vmatmul.mubr.bf16.gmra.mrb[0].mxu0 %v2753
      %v3540 = vpop.f32.mrb[0].mxu0
      %v3541 = vadd.f32 0.0, %v3540
      %v3542 = vpop.f32.mrb[0].mxu0
      %v3543 = vpop.f32.mrb[0].mxu0
      %v3544 = vadd.f32 0.0, %v3543
      %v3545 = vpop.f32.mrb[0].mxu0
      %3546 = vmatprep.mubr.bf16.mxu0 0
      %3547 = vmatmul.mubr.bf16.gmra.mrb[0].mxu0 %v2756
      %v3548 = vpop.f32.mrb[0].mxu0
      %v3549 = vadd.f32 0.0, %v3548
      %v3550 = vpop.f32.mrb[0].mxu0
      %v3551 = vpop.f32.mrb[0].mxu0
      %v3552 = vadd.f32 0.0, %v3551
      %v3553 = vpop.f32.mrb[0].mxu0
      %3554 = vmatprep.mubr.bf16.mxu0 0
      %3555 = vmatmul.mubr.bf16.gmra.mrb[0].mxu0 %v2759
      %v3556 = vpop.f32.mrb[0].mxu0
      %v3557 = vadd.f32 0.0, %v3556
      %v3558 = vpop.f32.mrb[0].mxu0
      %v3559 = vpop.f32.mrb[0].mxu0
      %v3560 = vadd.f32 0.0, %v3559
      %v3561 = vpop.f32.mrb[0].mxu0
      %3562 = vmatprep.mubr.bf16.mxu0 0
      %3563 = vmatmul.mubr.bf16.gmra.mrb[0].mxu0 %v2762
      %v3564 = vpop.f32.mrb[0].mxu0
      %v3565 = vadd.f32 0.0, %v3564
      %v3566 = vpop.f32.mrb[0].mxu0
      %v3567 = vpop.f32.mrb[0].mxu0
      %v3568 = vadd.f32 0.0, %v3567
      %v3569 = vpop.f32.mrb[0].mxu0
      %3570 = vmatprep.mubr.bf16.mxu0 0
      %3571 = vmatmul.mubr.bf16.gmra.mrb[0].mxu0 %v2765
      %v3572 = vpop.f32.mrb[0].mxu0
      %v3573 = vadd.f32 0.0, %v3572
      %v3574 = vpop.f32.mrb[0].mxu0
      %v3575 = vpop.f32.mrb[0].mxu0
      %v3576 = vadd.f32 0.0, %v3575
      %v3577 = vpop.f32.mrb[0].mxu0
      %3578 = vmatprep.mubr.bf16.mxu0 0
      %3579 = vmatmul.mubr.bf16.gmra.mrb[0].mxu0 %v2768
      %v3580 = vpop.f32.mrb[0].mxu0
      %v3581 = vadd.f32 0.0, %v3580
      %v3582 = vpop.f32.mrb[0].mxu0
      %v3583 = vpop.f32.mrb[0].mxu0
      %v3584 = vadd.f32 0.0, %v3583
      %v3585 = vpop.f32.mrb[0].mxu0
      %3586 = vmatprep.mubr.bf16.mxu0 0
      %3587 = vmatmul.mubr.bf16.gmra.mrb[0].mxu0 %v2771
      %v3588 = vpop.f32.mrb[0].mxu0
      %v3589 = vadd.f32 0.0, %v3588
      %v3590 = vpop.f32.mrb[0].mxu0
      %v3591 = vpop.f32.mrb[0].mxu0
      %v3592 = vadd.f32 0.0, %v3591
      %v3593 = vpop.f32.mrb[0].mxu0
      %3594 = vdwg.mxu0
      %v3595 = vpack.c.bf16 %v3528, %v3525
      %v3596 = vpack.c.bf16 %v3536, %v3533
      %v3597 = vpack.c.bf16 %v3544, %v3541
      %v3598 = vpack.c.bf16 %v3552, %v3549
      %v3599 = vpack.c.bf16 %v3560, %v3557
      %v3600 = vpack.c.bf16 %v3568, %v3565
      %v3601 = vpack.c.bf16 %v3576, %v3573
      %v3602 = vpack.c.bf16 %v3584, %v3581
      %v3603 = vpack.c.bf16 %v3592, %v3589
      %v3604 = vld [vmem:[%s12] sm:$0xf]
      %v3605 = vld [vmem:[%s12 + $0x4] sm:$0xf]
      %v3606 = vld [vmem:[%s12 + $0x8] sm:$0xf]
      %v3607 = vld [vmem:[%s12 + $0xc] sm:$0xf]
      %v3608 = vld [vmem:[%s12 + $0x10] sm:$0xf]
      %v3609 = vld [vmem:[%s12 + $0x14] sm:$0xf]
      %v3610 = vld [vmem:[%s12 + $0x18] sm:$0xf]
      %v3611 = vld [vmem:[%s12 + $0x1c] sm:$0xf]
      %s3612 = scalar_lea.vmem %s12, 32
      %v3613 = vld [vmem:[%s3612] sm:$0xf]
      %v3614 = vld [vmem:[%s3612 + $0x4] sm:$0xf]
      %v3615 = vld [vmem:[%s3612 + $0x8] sm:$0xf]
      %v3616 = vld [vmem:[%s3612 + $0xc] sm:$0xf]
      %v3617 = vld [vmem:[%s3612 + $0x10] sm:$0xf]
      %v3618 = vld [vmem:[%s3612 + $0x14] sm:$0xf]
      %v3619 = vld [vmem:[%s3612 + $0x18] sm:$0xf]
      %v3620 = vld [vmem:[%s3612 + $0x1c] sm:$0xf]
      %v3629 = vunpack.c.l.b16 %v3613
      %v3630 = vunpack.c.l.b16 %v3614
      %v3631 = vunpack.c.l.b16 %v3615
      %v3632 = vunpack.c.l.b16 %v3616
      %v3633 = vunpack.c.l.b16 %v3617
      %v3634 = vunpack.c.l.b16 %v3618
      %v3635 = vunpack.c.l.b16 %v3619
      %v3636 = vunpack.c.l.b16 %v3620
      %v3637 = vpack.c.b16 %v3630, %v3629
      %v3638 = vpack.c.b16 %v3632, %v3631
      %v3639 = vpack.c.b16 %v3634, %v3633
      %v3640 = vpack.c.b16 %v3636, %v3635
      %v3646 = vsel %vm2745, %v3596, 0
      %3648 = vmatprep.subr.bf16.mxu0 0
      %3649 = vmatpush1.bf16.msra.mxu0 %v3637
      %3650 = vmatprep.subr.bf16.mxu0 0
      %3651 = vmatpush1.bf16.msra.mxu0 %v3638
      %3652 = vmatprep.subr.bf16.mxu0 0
      %3653 = vmatpush1.bf16.msra.mxu0 %v3639
      %3654 = vmatprep.subr.bf16.mxu0 0
      %3655 = vmatpush1.bf16.msra.mxu0 %v3640
      %3656 = vmatprep.subr.bf16.mxu0 0
      %3657 = vmatpush1.bf16.msra.mxu0 0
      %3658 = vmatprep.subr.bf16.mxu0 0
      %3659 = vmatpush1.bf16.msra.mxu0 0
      %3660 = vmatprep.subr.bf16.mxu0 0
      %3661 = vmatpush1.bf16.msra.mxu0 0
      %3662 = vmatprep.subr.bf16.mxu0 0
      %3663 = vmatpush1.bf16.msra.mxu0 0
      %3664 = vmatprep.subr.bf16.mxu0 0
      %3665 = vmatpush1.bf16.msra.mxu0 0
      %3666 = vmatprep.subr.bf16.mxu0 0
      %3667 = vmatpush1.bf16.msra.mxu0 0
      %3668 = vmatprep.subr.bf16.mxu0 0
      %3669 = vmatpush1.bf16.msra.mxu0 0
      %3670 = vmatprep.subr.bf16.mxu0 0
      %3671 = vmatpush1.bf16.msra.mxu0 0
      %3672 = vmatprep.subr.bf16.mxu0 0
      %3673 = vmatpush1.bf16.msra.mxu0 0
      %3674 = vmatprep.subr.bf16.mxu0 0
      %3675 = vmatpush1.bf16.msra.mxu0 0
      %3676 = vmatprep.subr.bf16.mxu0 0
      %3677 = vmatpush1.bf16.msra.mxu0 0
      %3678 = vmatprep.subr.bf16.mxu0 0
      %3679 = vmatpush1.bf16.msra.mxu0 0
      %3680 = vmatprep.mubr.bf16.mxu0 0
      %3681 = vmatmul.mubr.bf16.gmra.mrb[0].mxu0 %v3646
      %v3682 = vpop.f32.mrb[0].mxu0
      %v3683 = vadd.f32 0.0, %v3682
      %v3684 = vpop.f32.mrb[0].mxu0
      %v3685 = vpop.f32.mrb[0].mxu0
      %v3686 = vadd.f32 0.0, %v3685
      %v3687 = vpop.f32.mrb[0].mxu0
      %3688 = vdwg.mxu0
      %v3697 = vunpack.c.l.b16 %v3604
      %v3698 = vunpack.c.l.b16 %v3605
      %v3699 = vunpack.c.l.b16 %v3606
      %v3700 = vunpack.c.l.b16 %v3607
      %v3701 = vunpack.c.l.b16 %v3608
      %v3702 = vunpack.c.l.b16 %v3609
      %v3703 = vunpack.c.l.b16 %v3610
      %v3704 = vunpack.c.l.b16 %v3611
      %v3705 = vpack.c.b16 %v3698, %v3697
      %v3706 = vpack.c.b16 %v3700, %v3699
      %v3707 = vpack.c.b16 %v3702, %v3701
      %v3708 = vpack.c.b16 %v3704, %v3703
      %v3714 = vsel %vm2745, %v3595, 0
      %3716 = vmatprep.subr.bf16.mxu0 0
      %3717 = vmatpush1.bf16.msra.mxu0 %v3705
      %3718 = vmatprep.subr.bf16.mxu0 0
      %3719 = vmatpush1.bf16.msra.mxu0 %v3706
      %3720 = vmatprep.subr.bf16.mxu0 0
      %3721 = vmatpush1.bf16.msra.mxu0 %v3707
      %3722 = vmatprep.subr.bf16.mxu0 0
      %3723 = vmatpush1.bf16.msra.mxu0 %v3708
      %3724 = vmatprep.subr.bf16.mxu0 0
      %3725 = vmatpush1.bf16.msra.mxu0 0
      %3726 = vmatprep.subr.bf16.mxu0 0
      %3727 = vmatpush1.bf16.msra.mxu0 0
      %3728 = vmatprep.subr.bf16.mxu0 0
      %3729 = vmatpush1.bf16.msra.mxu0 0
      %3730 = vmatprep.subr.bf16.mxu0 0
      %3731 = vmatpush1.bf16.msra.mxu0 0
      %3732 = vmatprep.subr.bf16.mxu0 0
      %3733 = vmatpush1.bf16.msra.mxu0 0
      %3734 = vmatprep.subr.bf16.mxu0 0
      %3735 = vmatpush1.bf16.msra.mxu0 0
      %3736 = vmatprep.subr.bf16.mxu0 0
      %3737 = vmatpush1.bf16.msra.mxu0 0
      %3738 = vmatprep.subr.bf16.mxu0 0
      %3739 = vmatpush1.bf16.msra.mxu0 0
      %3740 = vmatprep.subr.bf16.mxu0 0
      %3741 = vmatpush1.bf16.msra.mxu0 0
      %3742 = vmatprep.subr.bf16.mxu0 0
      %3743 = vmatpush1.bf16.msra.mxu0 0
      %3744 = vmatprep.subr.bf16.mxu0 0
      %3745 = vmatpush1.bf16.msra.mxu0 0
      %3746 = vmatprep.subr.bf16.mxu0 0
      %3747 = vmatpush1.bf16.msra.mxu0 0
      %3748 = vmatprep.mubr.bf16.mxu0 0
      %3749 = vmatmul.mubr.bf16.gmra.mrb[0].mxu0 %v3714
      %v3750 = vpop.f32.mrb[0].mxu0
      %v3751 = vadd.f32 %v3683, %v3750
      %v3752 = vpop.f32.mrb[0].mxu0
      %v3753 = vpop.f32.mrb[0].mxu0
      %v3754 = vadd.f32 %v3686, %v3753
      %v3755 = vpop.f32.mrb[0].mxu0
      %3756 = vdwg.mxu0
      %s3757 = scalar_lea.vmem %s12, 64
      %v3758 = vld [vmem:[%s3757] sm:$0xf]
      %v3759 = vld [vmem:[%s3757 + $0x4] sm:$0xf]
      %v3760 = vld [vmem:[%s3757 + $0x8] sm:$0xf]
      %v3761 = vld [vmem:[%s3757 + $0xc] sm:$0xf]
      %v3762 = vld [vmem:[%s3757 + $0x10] sm:$0xf]
      %v3763 = vld [vmem:[%s3757 + $0x14] sm:$0xf]
      %v3764 = vld [vmem:[%s3757 + $0x18] sm:$0xf]
      %v3765 = vld [vmem:[%s3757 + $0x1c] sm:$0xf]
      %v3774 = vunpack.c.l.b16 %v3758
      %v3775 = vunpack.c.l.b16 %v3759
      %v3776 = vunpack.c.l.b16 %v3760
      %v3777 = vunpack.c.l.b16 %v3761
      %v3778 = vunpack.c.l.b16 %v3762
      %v3779 = vunpack.c.l.b16 %v3763
      %v3780 = vunpack.c.l.b16 %v3764
      %v3781 = vunpack.c.l.b16 %v3765
      %v3782 = vpack.c.b16 %v3775, %v3774
      %v3783 = vpack.c.b16 %v3777, %v3776
      %v3784 = vpack.c.b16 %v3779, %v3778
      %v3785 = vpack.c.b16 %v3781, %v3780
      %v3791 = vsel %vm2745, %v3597, 0
      %3793 = vmatprep.subr.bf16.mxu0 0
      %3794 = vmatpush1.bf16.msra.mxu0 %v3782
      %3795 = vmatprep.subr.bf16.mxu0 0
      %3796 = vmatpush1.bf16.msra.mxu0 %v3783
      %3797 = vmatprep.subr.bf16.mxu0 0
      %3798 = vmatpush1.bf16.msra.mxu0 %v3784
      %3799 = vmatprep.subr.bf16.mxu0 0
      %3800 = vmatpush1.bf16.msra.mxu0 %v3785
      %3801 = vmatprep.subr.bf16.mxu0 0
      %3802 = vmatpush1.bf16.msra.mxu0 0
      %3803 = vmatprep.subr.bf16.mxu0 0
      %3804 = vmatpush1.bf16.msra.mxu0 0
      %3805 = vmatprep.subr.bf16.mxu0 0
      %3806 = vmatpush1.bf16.msra.mxu0 0
      %3807 = vmatprep.subr.bf16.mxu0 0
      %3808 = vmatpush1.bf16.msra.mxu0 0
      %3809 = vmatprep.subr.bf16.mxu0 0
      %3810 = vmatpush1.bf16.msra.mxu0 0
      %3811 = vmatprep.subr.bf16.mxu0 0
      %3812 = vmatpush1.bf16.msra.mxu0 0
      %3813 = vmatprep.subr.bf16.mxu0 0
      %3814 = vmatpush1.bf16.msra.mxu0 0
      %3815 = vmatprep.subr.bf16.mxu0 0
      %3816 = vmatpush1.bf16.msra.mxu0 0
      %3817 = vmatprep.subr.bf16.mxu0 0
      %3818 = vmatpush1.bf16.msra.mxu0 0
      %3819 = vmatprep.subr.bf16.mxu0 0
      %3820 = vmatpush1.bf16.msra.mxu0 0
      %3821 = vmatprep.subr.bf16.mxu0 0
      %3822 = vmatpush1.bf16.msra.mxu0 0
      %3823 = vmatprep.subr.bf16.mxu0 0
      %3824 = vmatpush1.bf16.msra.mxu0 0
      %3825 = vmatprep.mubr.bf16.mxu0 0
      %3826 = vmatmul.mubr.bf16.gmra.mrb[0].mxu0 %v3791
      %v3827 = vpop.f32.mrb[0].mxu0
      %v3828 = vadd.f32 0.0, %v3827
      %v3829 = vpop.f32.mrb[0].mxu0
      %v3830 = vpop.f32.mrb[0].mxu0
      %v3831 = vadd.f32 0.0, %v3830
      %v3832 = vpop.f32.mrb[0].mxu0
      %3833 = vdwg.mxu0
      %v3834 = vadd.f32 %v3751, %v3828
      %v3835 = vadd.f32 %v3754, %v3831
      %s3836 = scalar_lea.vmem %s12, 96
      %v3837 = vld [vmem:[%s3836] sm:$0xf]
      %v3838 = vld [vmem:[%s3836 + $0x4] sm:$0xf]
      %v3839 = vld [vmem:[%s3836 + $0x8] sm:$0xf]
      %v3840 = vld [vmem:[%s3836 + $0xc] sm:$0xf]
      %v3841 = vld [vmem:[%s3836 + $0x10] sm:$0xf]
      %v3842 = vld [vmem:[%s3836 + $0x14] sm:$0xf]
      %v3843 = vld [vmem:[%s3836 + $0x18] sm:$0xf]
      %v3844 = vld [vmem:[%s3836 + $0x1c] sm:$0xf]
      %v3853 = vunpack.c.l.b16 %v3837
      %v3854 = vunpack.c.l.b16 %v3838
      %v3855 = vunpack.c.l.b16 %v3839
      %v3856 = vunpack.c.l.b16 %v3840
      %v3857 = vunpack.c.l.b16 %v3841
      %v3858 = vunpack.c.l.b16 %v3842
      %v3859 = vunpack.c.l.b16 %v3843
      %v3860 = vunpack.c.l.b16 %v3844
      %v3861 = vpack.c.b16 %v3854, %v3853
      %v3862 = vpack.c.b16 %v3856, %v3855
      %v3863 = vpack.c.b16 %v3858, %v3857
      %v3864 = vpack.c.b16 %v3860, %v3859
      %v3870 = vsel %vm2745, %v3598, 0
      %3872 = vmatprep.subr.bf16.mxu0 0
      %3873 = vmatpush1.bf16.msra.mxu0 %v3861
      %3874 = vmatprep.subr.bf16.mxu0 0
      %3875 = vmatpush1.bf16.msra.mxu0 %v3862
      %3876 = vmatprep.subr.bf16.mxu0 0
      %3877 = vmatpush1.bf16.msra.mxu0 %v3863
      %3878 = vmatprep.subr.bf16.mxu0 0
      %3879 = vmatpush1.bf16.msra.mxu0 %v3864
      %3880 = vmatprep.subr.bf16.mxu0 0
      %3881 = vmatpush1.bf16.msra.mxu0 0
      %3882 = vmatprep.subr.bf16.mxu0 0
      %3883 = vmatpush1.bf16.msra.mxu0 0
      %3884 = vmatprep.subr.bf16.mxu0 0
      %3885 = vmatpush1.bf16.msra.mxu0 0
      %3886 = vmatprep.subr.bf16.mxu0 0
      %3887 = vmatpush1.bf16.msra.mxu0 0
      %3888 = vmatprep.subr.bf16.mxu0 0
      %3889 = vmatpush1.bf16.msra.mxu0 0
      %3890 = vmatprep.subr.bf16.mxu0 0
      %3891 = vmatpush1.bf16.msra.mxu0 0
      %3892 = vmatprep.subr.bf16.mxu0 0
      %3893 = vmatpush1.bf16.msra.mxu0 0
      %3894 = vmatprep.subr.bf16.mxu0 0
      %3895 = vmatpush1.bf16.msra.mxu0 0
      %3896 = vmatprep.subr.bf16.mxu0 0
      %3897 = vmatpush1.bf16.msra.mxu0 0
      %3898 = vmatprep.subr.bf16.mxu0 0
      %3899 = vmatpush1.bf16.msra.mxu0 0
      %3900 = vmatprep.subr.bf16.mxu0 0
      %3901 = vmatpush1.bf16.msra.mxu0 0
      %3902 = vmatprep.subr.bf16.mxu0 0
      %3903 = vmatpush1.bf16.msra.mxu0 0
      %3904 = vmatprep.mubr.bf16.mxu0 0
      %3905 = vmatmul.mubr.bf16.gmra.mrb[0].mxu0 %v3870
      %v3906 = vpop.f32.mrb[0].mxu0
      %v3907 = vadd.f32 0.0, %v3906
      %v3908 = vpop.f32.mrb[0].mxu0
      %v3909 = vpop.f32.mrb[0].mxu0
      %v3910 = vadd.f32 0.0, %v3909
      %v3911 = vpop.f32.mrb[0].mxu0
      %3912 = vdwg.mxu0
      %v3913 = vadd.f32 %v3834, %v3907
      %v3914 = vadd.f32 %v3835, %v3910
      %s3915 = scalar_lea.vmem %s12, 128
      %v3916 = vld [vmem:[%s3915] sm:$0xf]
      %v3917 = vld [vmem:[%s3915 + $0x4] sm:$0xf]
      %v3918 = vld [vmem:[%s3915 + $0x8] sm:$0xf]
      %v3919 = vld [vmem:[%s3915 + $0xc] sm:$0xf]
      %v3920 = vld [vmem:[%s3915 + $0x10] sm:$0xf]
      %v3921 = vld [vmem:[%s3915 + $0x14] sm:$0xf]
      %v3922 = vld [vmem:[%s3915 + $0x18] sm:$0xf]
      %v3923 = vld [vmem:[%s3915 + $0x1c] sm:$0xf]
      %v3932 = vunpack.c.l.b16 %v3916
      %v3933 = vunpack.c.l.b16 %v3917
      %v3934 = vunpack.c.l.b16 %v3918
      %v3935 = vunpack.c.l.b16 %v3919
      %v3936 = vunpack.c.l.b16 %v3920
      %v3937 = vunpack.c.l.b16 %v3921
      %v3938 = vunpack.c.l.b16 %v3922
      %v3939 = vunpack.c.l.b16 %v3923
      %v3940 = vpack.c.b16 %v3933, %v3932
      %v3941 = vpack.c.b16 %v3935, %v3934
      %v3942 = vpack.c.b16 %v3937, %v3936
      %v3943 = vpack.c.b16 %v3939, %v3938
      %v3949 = vsel %vm2745, %v3599, 0
      %3951 = vmatprep.subr.bf16.mxu0 0
      %3952 = vmatpush1.bf16.msra.mxu0 %v3940
      %3953 = vmatprep.subr.bf16.mxu0 0
      %3954 = vmatpush1.bf16.msra.mxu0 %v3941
      %3955 = vmatprep.subr.bf16.mxu0 0
      %3956 = vmatpush1.bf16.msra.mxu0 %v3942
      %3957 = vmatprep.subr.bf16.mxu0 0
      %3958 = vmatpush1.bf16.msra.mxu0 %v3943
      %3959 = vmatprep.subr.bf16.mxu0 0
      %3960 = vmatpush1.bf16.msra.mxu0 0
      %3961 = vmatprep.subr.bf16.mxu0 0
      %3962 = vmatpush1.bf16.msra.mxu0 0
      %3963 = vmatprep.subr.bf16.mxu0 0
      %3964 = vmatpush1.bf16.msra.mxu0 0
      %3965 = vmatprep.subr.bf16.mxu0 0
      %3966 = vmatpush1.bf16.msra.mxu0 0
      %3967 = vmatprep.subr.bf16.mxu0 0
      %3968 = vmatpush1.bf16.msra.mxu0 0
      %3969 = vmatprep.subr.bf16.mxu0 0
      %3970 = vmatpush1.bf16.msra.mxu0 0
      %3971 = vmatprep.subr.bf16.mxu0 0
      %3972 = vmatpush1.bf16.msra.mxu0 0
      %3973 = vmatprep.subr.bf16.mxu0 0
      %3974 = vmatpush1.bf16.msra.mxu0 0
      %3975 = vmatprep.subr.bf16.mxu0 0
      %3976 = vmatpush1.bf16.msra.mxu0 0
      %3977 = vmatprep.subr.bf16.mxu0 0
      %3978 = vmatpush1.bf16.msra.mxu0 0
      %3979 = vmatprep.subr.bf16.mxu0 0
      %3980 = vmatpush1.bf16.msra.mxu0 0
      %3981 = vmatprep.subr.bf16.mxu0 0
      %3982 = vmatpush1.bf16.msra.mxu0 0
      %3983 = vmatprep.mubr.bf16.mxu0 0
      %3984 = vmatmul.mubr.bf16.gmra.mrb[0].mxu0 %v3949
      %v3985 = vpop.f32.mrb[0].mxu0
      %v3986 = vadd.f32 0.0, %v3985
      %v3987 = vpop.f32.mrb[0].mxu0
      %v3988 = vpop.f32.mrb[0].mxu0
      %v3989 = vadd.f32 0.0, %v3988
      %v3990 = vpop.f32.mrb[0].mxu0
      %3991 = vdwg.mxu0
      %v3992 = vadd.f32 %v3913, %v3986
      %v3993 = vadd.f32 %v3914, %v3989
      %s3994 = scalar_lea.vmem %s12, 160
      %v3995 = vld [vmem:[%s3994] sm:$0xf]
      %v3996 = vld [vmem:[%s3994 + $0x4] sm:$0xf]
      %v3997 = vld [vmem:[%s3994 + $0x8] sm:$0xf]
      %v3998 = vld [vmem:[%s3994 + $0xc] sm:$0xf]
      %v3999 = vld [vmem:[%s3994 + $0x10] sm:$0xf]
      %v4000 = vld [vmem:[%s3994 + $0x14] sm:$0xf]
      %v4001 = vld [vmem:[%s3994 + $0x18] sm:$0xf]
      %v4002 = vld [vmem:[%s3994 + $0x1c] sm:$0xf]
      %v4011 = vunpack.c.l.b16 %v3995
      %v4012 = vunpack.c.l.b16 %v3996
      %v4013 = vunpack.c.l.b16 %v3997
      %v4014 = vunpack.c.l.b16 %v3998
      %v4015 = vunpack.c.l.b16 %v3999
      %v4016 = vunpack.c.l.b16 %v4000
      %v4017 = vunpack.c.l.b16 %v4001
      %v4018 = vunpack.c.l.b16 %v4002
      %v4019 = vpack.c.b16 %v4012, %v4011
      %v4020 = vpack.c.b16 %v4014, %v4013
      %v4021 = vpack.c.b16 %v4016, %v4015
      %v4022 = vpack.c.b16 %v4018, %v4017
      %v4028 = vsel %vm2745, %v3600, 0
      %4030 = vmatprep.subr.bf16.mxu0 0
      %4031 = vmatpush1.bf16.msra.mxu0 %v4019
      %4032 = vmatprep.subr.bf16.mxu0 0
      %4033 = vmatpush1.bf16.msra.mxu0 %v4020
      %4034 = vmatprep.subr.bf16.mxu0 0
      %4035 = vmatpush1.bf16.msra.mxu0 %v4021
      %4036 = vmatprep.subr.bf16.mxu0 0
      %4037 = vmatpush1.bf16.msra.mxu0 %v4022
      %4038 = vmatprep.subr.bf16.mxu0 0
      %4039 = vmatpush1.bf16.msra.mxu0 0
      %4040 = vmatprep.subr.bf16.mxu0 0
      %4041 = vmatpush1.bf16.msra.mxu0 0
      %4042 = vmatprep.subr.bf16.mxu0 0
      %4043 = vmatpush1.bf16.msra.mxu0 0
      %4044 = vmatprep.subr.bf16.mxu0 0
      %4045 = vmatpush1.bf16.msra.mxu0 0
      %4046 = vmatprep.subr.bf16.mxu0 0
      %4047 = vmatpush1.bf16.msra.mxu0 0
      %4048 = vmatprep.subr.bf16.mxu0 0
      %4049 = vmatpush1.bf16.msra.mxu0 0
      %4050 = vmatprep.subr.bf16.mxu0 0
      %4051 = vmatpush1.bf16.msra.mxu0 0
      %4052 = vmatprep.subr.bf16.mxu0 0
      %4053 = vmatpush1.bf16.msra.mxu0 0
      %4054 = vmatprep.subr.bf16.mxu0 0
      %4055 = vmatpush1.bf16.msra.mxu0 0
      %4056 = vmatprep.subr.bf16.mxu0 0
      %4057 = vmatpush1.bf16.msra.mxu0 0
      %4058 = vmatprep.subr.bf16.mxu0 0
      %4059 = vmatpush1.bf16.msra.mxu0 0
      %4060 = vmatprep.subr.bf16.mxu0 0
      %4061 = vmatpush1.bf16.msra.mxu0 0
      %4062 = vmatprep.mubr.bf16.mxu0 0
      %4063 = vmatmul.mubr.bf16.gmra.mrb[0].mxu0 %v4028
      %v4064 = vpop.f32.mrb[0].mxu0
      %v4065 = vadd.f32 0.0, %v4064
      %v4066 = vpop.f32.mrb[0].mxu0
      %v4067 = vpop.f32.mrb[0].mxu0
      %v4068 = vadd.f32 0.0, %v4067
      %v4069 = vpop.f32.mrb[0].mxu0
      %4070 = vdwg.mxu0
      %v4071 = vadd.f32 %v3992, %v4065
      %v4072 = vadd.f32 %v3993, %v4068
      %s4073 = scalar_lea.vmem %s12, 192
      %v4074 = vld [vmem:[%s4073] sm:$0xf]
      %v4075 = vld [vmem:[%s4073 + $0x4] sm:$0xf]
      %v4076 = vld [vmem:[%s4073 + $0x8] sm:$0xf]
      %v4077 = vld [vmem:[%s4073 + $0xc] sm:$0xf]
      %v4078 = vld [vmem:[%s4073 + $0x10] sm:$0xf]
      %v4079 = vld [vmem:[%s4073 + $0x14] sm:$0xf]
      %v4080 = vld [vmem:[%s4073 + $0x18] sm:$0xf]
      %v4081 = vld [vmem:[%s4073 + $0x1c] sm:$0xf]
      %v4090 = vunpack.c.l.b16 %v4074
      %v4091 = vunpack.c.l.b16 %v4075
      %v4092 = vunpack.c.l.b16 %v4076
      %v4093 = vunpack.c.l.b16 %v4077
      %v4094 = vunpack.c.l.b16 %v4078
      %v4095 = vunpack.c.l.b16 %v4079
      %v4096 = vunpack.c.l.b16 %v4080
      %v4097 = vunpack.c.l.b16 %v4081
      %v4098 = vpack.c.b16 %v4091, %v4090
      %v4099 = vpack.c.b16 %v4093, %v4092
      %v4100 = vpack.c.b16 %v4095, %v4094
      %v4101 = vpack.c.b16 %v4097, %v4096
      %v4107 = vsel %vm2745, %v3601, 0
      %4109 = vmatprep.subr.bf16.mxu0 0
      %4110 = vmatpush1.bf16.msra.mxu0 %v4098
      %4111 = vmatprep.subr.bf16.mxu0 0
      %4112 = vmatpush1.bf16.msra.mxu0 %v4099
      %4113 = vmatprep.subr.bf16.mxu0 0
      %4114 = vmatpush1.bf16.msra.mxu0 %v4100
      %4115 = vmatprep.subr.bf16.mxu0 0
      %4116 = vmatpush1.bf16.msra.mxu0 %v4101
      %4117 = vmatprep.subr.bf16.mxu0 0
      %4118 = vmatpush1.bf16.msra.mxu0 0
      %4119 = vmatprep.subr.bf16.mxu0 0
      %4120 = vmatpush1.bf16.msra.mxu0 0
      %4121 = vmatprep.subr.bf16.mxu0 0
      %4122 = vmatpush1.bf16.msra.mxu0 0
      %4123 = vmatprep.subr.bf16.mxu0 0
      %4124 = vmatpush1.bf16.msra.mxu0 0
      %4125 = vmatprep.subr.bf16.mxu0 0
      %4126 = vmatpush1.bf16.msra.mxu0 0
      %4127 = vmatprep.subr.bf16.mxu0 0
      %4128 = vmatpush1.bf16.msra.mxu0 0
      %4129 = vmatprep.subr.bf16.mxu0 0
      %4130 = vmatpush1.bf16.msra.mxu0 0
      %4131 = vmatprep.subr.bf16.mxu0 0
      %4132 = vmatpush1.bf16.msra.mxu0 0
      %4133 = vmatprep.subr.bf16.mxu0 0
      %4134 = vmatpush1.bf16.msra.mxu0 0
      %4135 = vmatprep.subr.bf16.mxu0 0
      %4136 = vmatpush1.bf16.msra.mxu0 0
      %4137 = vmatprep.subr.bf16.mxu0 0
      %4138 = vmatpush1.bf16.msra.mxu0 0
      %4139 = vmatprep.subr.bf16.mxu0 0
      %4140 = vmatpush1.bf16.msra.mxu0 0
      %4141 = vmatprep.mubr.bf16.mxu0 0
      %4142 = vmatmul.mubr.bf16.gmra.mrb[0].mxu0 %v4107
      %v4143 = vpop.f32.mrb[0].mxu0
      %v4144 = vadd.f32 0.0, %v4143
      %v4145 = vpop.f32.mrb[0].mxu0
      %v4146 = vpop.f32.mrb[0].mxu0
      %v4147 = vadd.f32 0.0, %v4146
      %v4148 = vpop.f32.mrb[0].mxu0
      %4149 = vdwg.mxu0
      %v4150 = vadd.f32 %v4071, %v4144
      %v4151 = vadd.f32 %v4072, %v4147
      %s4152 = scalar_lea.vmem %s12, 224
      %v4153 = vld [vmem:[%s4152] sm:$0xf]
      %v4154 = vld [vmem:[%s4152 + $0x4] sm:$0xf]
      %v4155 = vld [vmem:[%s4152 + $0x8] sm:$0xf]
      %v4156 = vld [vmem:[%s4152 + $0xc] sm:$0xf]
      %v4157 = vld [vmem:[%s4152 + $0x10] sm:$0xf]
      %v4158 = vld [vmem:[%s4152 + $0x14] sm:$0xf]
      %v4159 = vld [vmem:[%s4152 + $0x18] sm:$0xf]
      %v4160 = vld [vmem:[%s4152 + $0x1c] sm:$0xf]
      %v4169 = vunpack.c.l.b16 %v4153
      %v4170 = vunpack.c.l.b16 %v4154
      %v4171 = vunpack.c.l.b16 %v4155
      %v4172 = vunpack.c.l.b16 %v4156
      %v4173 = vunpack.c.l.b16 %v4157
      %v4174 = vunpack.c.l.b16 %v4158
      %v4175 = vunpack.c.l.b16 %v4159
      %v4176 = vunpack.c.l.b16 %v4160
      %v4177 = vpack.c.b16 %v4170, %v4169
      %v4178 = vpack.c.b16 %v4172, %v4171
      %v4179 = vpack.c.b16 %v4174, %v4173
      %v4180 = vpack.c.b16 %v4176, %v4175
      %v4186 = vsel %vm2745, %v3602, 0
      %4188 = vmatprep.subr.bf16.mxu0 0
      %4189 = vmatpush1.bf16.msra.mxu0 %v4177
      %4190 = vmatprep.subr.bf16.mxu0 0
      %4191 = vmatpush1.bf16.msra.mxu0 %v4178
      %4192 = vmatprep.subr.bf16.mxu0 0
      %4193 = vmatpush1.bf16.msra.mxu0 %v4179
      %4194 = vmatprep.subr.bf16.mxu0 0
      %4195 = vmatpush1.bf16.msra.mxu0 %v4180
      %4196 = vmatprep.subr.bf16.mxu0 0
      %4197 = vmatpush1.bf16.msra.mxu0 0
      %4198 = vmatprep.subr.bf16.mxu0 0
      %4199 = vmatpush1.bf16.msra.mxu0 0
      %4200 = vmatprep.subr.bf16.mxu0 0
      %4201 = vmatpush1.bf16.msra.mxu0 0
      %4202 = vmatprep.subr.bf16.mxu0 0
      %4203 = vmatpush1.bf16.msra.mxu0 0
      %4204 = vmatprep.subr.bf16.mxu0 0
      %4205 = vmatpush1.bf16.msra.mxu0 0
      %4206 = vmatprep.subr.bf16.mxu0 0
      %4207 = vmatpush1.bf16.msra.mxu0 0
      %4208 = vmatprep.subr.bf16.mxu0 0
      %4209 = vmatpush1.bf16.msra.mxu0 0
      %4210 = vmatprep.subr.bf16.mxu0 0
      %4211 = vmatpush1.bf16.msra.mxu0 0
      %4212 = vmatprep.subr.bf16.mxu0 0
      %4213 = vmatpush1.bf16.msra.mxu0 0
      %4214 = vmatprep.subr.bf16.mxu0 0
      %4215 = vmatpush1.bf16.msra.mxu0 0
      %4216 = vmatprep.subr.bf16.mxu0 0
      %4217 = vmatpush1.bf16.msra.mxu0 0
      %4218 = vmatprep.subr.bf16.mxu0 0
      %4219 = vmatpush1.bf16.msra.mxu0 0
      %4220 = vmatprep.mubr.bf16.mxu0 0
      %4221 = vmatmul.mubr.bf16.gmra.mrb[0].mxu0 %v4186
      %v4222 = vpop.f32.mrb[0].mxu0
      %v4223 = vadd.f32 0.0, %v4222
      %v4224 = vpop.f32.mrb[0].mxu0
      %v4225 = vpop.f32.mrb[0].mxu0
      %v4226 = vadd.f32 0.0, %v4225
      %v4227 = vpop.f32.mrb[0].mxu0
      %4228 = vdwg.mxu0
      %v4229 = vadd.f32 %v4150, %v4223
      %v4230 = vadd.f32 %v4151, %v4226
      %s4231 = scalar_lea.vmem %s12, 256
      %v4232 = vld [vmem:[%s4231] sm:$0xf]
      %v4233 = vld [vmem:[%s4231 + $0x4] sm:$0xf]
      %v4234 = vld [vmem:[%s4231 + $0x8] sm:$0xf]
      %v4235 = vld [vmem:[%s4231 + $0xc] sm:$0xf]
      %v4236 = vld [vmem:[%s4231 + $0x10] sm:$0xf]
      %v4237 = vld [vmem:[%s4231 + $0x14] sm:$0xf]
      %v4238 = vld [vmem:[%s4231 + $0x18] sm:$0xf]
      %v4239 = vld [vmem:[%s4231 + $0x1c] sm:$0xf]
      %v4248 = vunpack.c.l.b16 %v4232
      %v4249 = vunpack.c.l.b16 %v4233
      %v4250 = vunpack.c.l.b16 %v4234
      %v4251 = vunpack.c.l.b16 %v4235
      %v4252 = vunpack.c.l.b16 %v4236
      %v4253 = vunpack.c.l.b16 %v4237
      %v4254 = vunpack.c.l.b16 %v4238
      %v4255 = vunpack.c.l.b16 %v4239
      %v4256 = vpack.c.b16 %v4249, %v4248
      %v4257 = vpack.c.b16 %v4251, %v4250
      %v4258 = vpack.c.b16 %v4253, %v4252
      %v4259 = vpack.c.b16 %v4255, %v4254
      %v4265 = vsel %vm2745, %v3603, 0
      %4267 = vmatprep.subr.bf16.mxu0 0
      %4268 = vmatpush1.bf16.msra.mxu0 %v4256
      %4269 = vmatprep.subr.bf16.mxu0 0
      %4270 = vmatpush1.bf16.msra.mxu0 %v4257
      %4271 = vmatprep.subr.bf16.mxu0 0
      %4272 = vmatpush1.bf16.msra.mxu0 %v4258
      %4273 = vmatprep.subr.bf16.mxu0 0
      %4274 = vmatpush1.bf16.msra.mxu0 %v4259
      %4275 = vmatprep.subr.bf16.mxu0 0
      %4276 = vmatpush1.bf16.msra.mxu0 0
      %4277 = vmatprep.subr.bf16.mxu0 0
      %4278 = vmatpush1.bf16.msra.mxu0 0
      %4279 = vmatprep.subr.bf16.mxu0 0
      %4280 = vmatpush1.bf16.msra.mxu0 0
      %4281 = vmatprep.subr.bf16.mxu0 0
      %4282 = vmatpush1.bf16.msra.mxu0 0
      %4283 = vmatprep.subr.bf16.mxu0 0
      %4284 = vmatpush1.bf16.msra.mxu0 0
      %4285 = vmatprep.subr.bf16.mxu0 0
      %4286 = vmatpush1.bf16.msra.mxu0 0
      %4287 = vmatprep.subr.bf16.mxu0 0
      %4288 = vmatpush1.bf16.msra.mxu0 0
      %4289 = vmatprep.subr.bf16.mxu0 0
      %4290 = vmatpush1.bf16.msra.mxu0 0
      %4291 = vmatprep.subr.bf16.mxu0 0
      %4292 = vmatpush1.bf16.msra.mxu0 0
      %4293 = vmatprep.subr.bf16.mxu0 0
      %4294 = vmatpush1.bf16.msra.mxu0 0
      %4295 = vmatprep.subr.bf16.mxu0 0
      %4296 = vmatpush1.bf16.msra.mxu0 0
      %4297 = vmatprep.subr.bf16.mxu0 0
      %4298 = vmatpush1.bf16.msra.mxu0 0
      %4299 = vmatprep.mubr.bf16.mxu0 0
      %4300 = vmatmul.mubr.bf16.gmra.mrb[0].mxu0 %v4265
      %v4301 = vpop.f32.mrb[0].mxu0
      %v4302 = vadd.f32 0.0, %v4301
      %v4303 = vpop.f32.mrb[0].mxu0
      %v4304 = vpop.f32.mrb[0].mxu0
      %v4305 = vadd.f32 0.0, %v4304
      %v4306 = vpop.f32.mrb[0].mxu0
      %4307 = vdwg.mxu0
      %v4308 = vadd.f32 %v4229, %v4302
      %v4309 = vadd.f32 %v4230, %v4305
      %v4310 = vld [vmem:[%s13] sm:$0x1]
      %v4312 = vlaneseq
      %v4313 = vshrl.u32 %v4312, 7
      %v4314 = vsub.s32 0, %v4313
      %v4315 = vrot.slane %v4310, %v4314
      %v4317 = vadd.f32 %v4308, %v4315
      %v4318 = vadd.f32 %v4309, %v4315
      %v4319 = vld [vmem:[%s637] sm:$0xf]
      %v4320 = vld [vmem:[%s637 + $0x4] sm:$0xf]
      %v4321 = vpack.c.bf16 %v3457, %v3456
      %v4322 = vld [vmem:[%s14] sm:$0xf]
      %v4323 = vld [vmem:[%s14 + $0x4] sm:$0xf]
      %v4324 = vld [vmem:[%s14 + $0x8] sm:$0xf]
      %v4325 = vld [vmem:[%s14 + $0xc] sm:$0xf]
      %v4326 = vpack.c.bf16 %v4318, %v4317
      %v4327 = vld [vmem:[%s14 + $0x10] sm:$0xf]
      %v4328 = vld [vmem:[%s14 + $0x14] sm:$0xf]
      %v4329 = vld [vmem:[%s14 + $0x18] sm:$0xf]
      %v4330 = vld [vmem:[%s14 + $0x1c] sm:$0xf]
      %v4331 = vld [vmem:[%s14 + $0x20] sm:$0xf]
      %v4332 = vld [vmem:[%s14 + $0x24] sm:$0xf]
      %v4333 = vld [vmem:[%s14 + $0x28] sm:$0xf]
      %v4334 = vld [vmem:[%s14 + $0x2c] sm:$0xf]
      %v4343 = vunpack.c.l.b16 %v4327
      %v4344 = vunpack.c.l.b16 %v4328
      %v4345 = vunpack.c.l.b16 %v4329
      %v4346 = vunpack.c.l.b16 %v4330
      %v4347 = vunpack.c.l.b16 %v4331
      %v4348 = vunpack.c.l.b16 %v4332
      %v4349 = vunpack.c.l.b16 %v4333
      %v4350 = vunpack.c.l.b16 %v4334
      %v4351 = vpack.c.b16 %v4344, %v4343
      %v4352 = vpack.c.b16 %v4346, %v4345
      %v4353 = vpack.c.b16 %v4348, %v4347
      %v4354 = vpack.c.b16 %v4350, %v4349
      %v4360 = vsel %vm2745, %v4326, 0
      %4362 = vmatprep.subr.bf16.mxu0 0
      %4363 = vmatpush1.bf16.msra.mxu0 %v4351
      %4364 = vmatprep.subr.bf16.mxu0 0
      %4365 = vmatpush1.bf16.msra.mxu0 %v4352
      %4366 = vmatprep.subr.bf16.mxu0 0
      %4367 = vmatpush1.bf16.msra.mxu0 %v4353
      %4368 = vmatprep.subr.bf16.mxu0 0
      %4369 = vmatpush1.bf16.msra.mxu0 %v4354
      %4370 = vmatprep.subr.bf16.mxu0 0
      %4371 = vmatpush1.bf16.msra.mxu0 0
      %4372 = vmatprep.subr.bf16.mxu0 0
      %4373 = vmatpush1.bf16.msra.mxu0 0
      %4374 = vmatprep.subr.bf16.mxu0 0
      %4375 = vmatpush1.bf16.msra.mxu0 0
      %4376 = vmatprep.subr.bf16.mxu0 0
      %4377 = vmatpush1.bf16.msra.mxu0 0
      %4378 = vmatprep.subr.bf16.mxu0 0
      %4379 = vmatpush1.bf16.msra.mxu0 0
      %4380 = vmatprep.subr.bf16.mxu0 0
      %4381 = vmatpush1.bf16.msra.mxu0 0
      %4382 = vmatprep.subr.bf16.mxu0 0
      %4383 = vmatpush1.bf16.msra.mxu0 0
      %4384 = vmatprep.subr.bf16.mxu0 0
      %4385 = vmatpush1.bf16.msra.mxu0 0
      %4386 = vmatprep.subr.bf16.mxu0 0
      %4387 = vmatpush1.bf16.msra.mxu0 0
      %4388 = vmatprep.subr.bf16.mxu0 0
      %4389 = vmatpush1.bf16.msra.mxu0 0
      %4390 = vmatprep.subr.bf16.mxu0 0
      %4391 = vmatpush1.bf16.msra.mxu0 0
      %4392 = vmatprep.subr.bf16.mxu0 0
      %4393 = vmatpush1.bf16.msra.mxu0 0
      %4394 = vmatprep.mubr.bf16.mxu0 0
      %4395 = vmatmul.mubr.bf16.gmra.mrb[0].mxu0 %v4360
      %v4396 = vpop.f32.mrb[0].mxu0
      %v4397 = vadd.f32 0.0, %v4396
      %v4398 = vpop.f32.mrb[0].mxu0
      %v4399 = vpop.f32.mrb[0].mxu0
      %v4400 = vadd.f32 0.0, %v4399
      %v4401 = vpop.f32.mrb[0].mxu0
      %4402 = vdwg.mxu0
      %v4407 = vunpack.c.l.b16 %v4322
      %v4408 = vunpack.c.l.b16 %v4323
      %v4409 = vunpack.c.l.b16 %v4324
      %v4410 = vunpack.c.l.b16 %v4325
      %v4411 = vpack.c.b16 %v4408, %v4407
      %v4412 = vpack.c.b16 %v4410, %v4409
      %v4416 = vsel %vm1582, %v4321, 0
      %4418 = vmatprep.subr.bf16.mxu0 0
      %4419 = vmatpush1.bf16.msra.mxu0 %v4411
      %4420 = vmatprep.subr.bf16.mxu0 0
      %4421 = vmatpush1.bf16.msra.mxu0 %v4412
      %4422 = vmatprep.subr.bf16.mxu0 0
      %4423 = vmatpush1.bf16.msra.mxu0 0
      %4424 = vmatprep.subr.bf16.mxu0 0
      %4425 = vmatpush1.bf16.msra.mxu0 0
      %4426 = vmatprep.subr.bf16.mxu0 0
      %4427 = vmatpush1.bf16.msra.mxu0 0
      %4428 = vmatprep.subr.bf16.mxu0 0
      %4429 = vmatpush1.bf16.msra.mxu0 0
      %4430 = vmatprep.subr.bf16.mxu0 0
      %4431 = vmatpush1.bf16.msra.mxu0 0
      %4432 = vmatprep.subr.bf16.mxu0 0
      %4433 = vmatpush1.bf16.msra.mxu0 0
      %4434 = vmatprep.subr.bf16.mxu0 0
      %4435 = vmatpush1.bf16.msra.mxu0 0
      %4436 = vmatprep.subr.bf16.mxu0 0
      %4437 = vmatpush1.bf16.msra.mxu0 0
      %4438 = vmatprep.subr.bf16.mxu0 0
      %4439 = vmatpush1.bf16.msra.mxu0 0
      %4440 = vmatprep.subr.bf16.mxu0 0
      %4441 = vmatpush1.bf16.msra.mxu0 0
      %4442 = vmatprep.subr.bf16.mxu0 0
      %4443 = vmatpush1.bf16.msra.mxu0 0
      %4444 = vmatprep.subr.bf16.mxu0 0
      %4445 = vmatpush1.bf16.msra.mxu0 0
      %4446 = vmatprep.subr.bf16.mxu0 0
      %4447 = vmatpush1.bf16.msra.mxu0 0
      %4448 = vmatprep.subr.bf16.mxu0 0
      %4449 = vmatpush1.bf16.msra.mxu0 0
      %4450 = vmatprep.mubr.bf16.mxu0 0
      %4451 = vmatmul.mubr.bf16.gmra.mrb[0].mxu0 %v4416
      %v4452 = vpop.f32.mrb[0].mxu0
      %v4453 = vadd.f32 %v4397, %v4452
      %v4454 = vpop.f32.mrb[0].mxu0
      %v4455 = vpop.f32.mrb[0].mxu0
      %v4456 = vadd.f32 %v4400, %v4455
      %v4457 = vpop.f32.mrb[0].mxu0
      %4458 = vdwg.mxu0
      %v4459 = vld [vmem:[%s14 + $0x30] sm:$0xf]
      %v4460 = vld [vmem:[%s14 + $0x34] sm:$0xf]
      %v4461 = vld [vmem:[%s14 + $0x38] sm:$0xf]
      %v4462 = vld [vmem:[%s14 + $0x3c] sm:$0xf]
      %v4463 = vld [vmem:[%s14 + $0x40] sm:$0xf]
      %v4464 = vld [vmem:[%s14 + $0x44] sm:$0xf]
      %v4465 = vld [vmem:[%s14 + $0x48] sm:$0xf]
      %v4466 = vld [vmem:[%s14 + $0x4c] sm:$0xf]
      %v4467 = vld [vmem:[%s14 + $0x50] sm:$0xf]
      %v4468 = vld [vmem:[%s14 + $0x54] sm:$0xf]
      %v4469 = vld [vmem:[%s14 + $0x58] sm:$0xf]
      %v4470 = vld [vmem:[%s14 + $0x5c] sm:$0xf]
      %v4471 = vld [vmem:[%s14 + $0x60] sm:$0xf]
      %v4472 = vld [vmem:[%s14 + $0x64] sm:$0xf]
      %v4473 = vld [vmem:[%s14 + $0x68] sm:$0xf]
      %v4474 = vld [vmem:[%s14 + $0x6c] sm:$0xf]
      %v4477 = vunpack.c.l.b16 %v4319
      %v4478 = vunpack.c.l.b16 %v4320
      %v4479 = vpack.c.b16 %v4478, %v4477
      %v4497 = vunpack.c.l.b16 %v4459
      %v4498 = vunpack.c.l.b16 %v4460
      %v4499 = vunpack.c.l.b16 %v4461
      %v4500 = vunpack.c.l.b16 %v4462
      %v4501 = vunpack.c.l.b16 %v4463
      %v4502 = vunpack.c.l.b16 %v4464
      %v4503 = vunpack.c.l.b16 %v4465
      %v4504 = vunpack.c.l.b16 %v4466
      %v4505 = vunpack.c.l.b16 %v4467
      %v4506 = vunpack.c.l.b16 %v4468
      %v4507 = vunpack.c.l.b16 %v4469
      %v4508 = vunpack.c.l.b16 %v4470
      %v4509 = vunpack.c.l.b16 %v4471
      %v4510 = vunpack.c.l.b16 %v4472
      %v4511 = vunpack.c.l.b16 %v4473
      %v4512 = vunpack.c.l.b16 %v4474
      %v4513 = vpack.c.b16 %v4498, %v4497
      %v4514 = vpack.c.b16 %v4500, %v4499
      %v4515 = vpack.c.b16 %v4502, %v4501
      %v4516 = vpack.c.b16 %v4504, %v4503
      %v4517 = vpack.c.b16 %v4506, %v4505
      %v4518 = vpack.c.b16 %v4508, %v4507
      %v4519 = vpack.c.b16 %v4510, %v4509
      %v4520 = vpack.c.b16 %v4512, %v4511
      %4529 = vmatprep.subr.bf16.mxu0 0
      %4530 = vmatpush1.bf16.msra.mxu0 %v4513
      %4531 = vmatprep.subr.bf16.mxu0 0
      %4532 = vmatpush1.bf16.msra.mxu0 %v4514
      %4533 = vmatprep.subr.bf16.mxu0 0
      %4534 = vmatpush1.bf16.msra.mxu0 %v4515
      %4535 = vmatprep.subr.bf16.mxu0 0
      %4536 = vmatpush1.bf16.msra.mxu0 %v4516
      %4537 = vmatprep.subr.bf16.mxu0 0
      %4538 = vmatpush1.bf16.msra.mxu0 %v4517
      %4539 = vmatprep.subr.bf16.mxu0 0
      %4540 = vmatpush1.bf16.msra.mxu0 %v4518
      %4541 = vmatprep.subr.bf16.mxu0 0
      %4542 = vmatpush1.bf16.msra.mxu0 %v4519
      %4543 = vmatprep.subr.bf16.mxu0 0
      %4544 = vmatpush1.bf16.msra.mxu0 %v4520
      %4545 = vmatprep.subr.bf16.mxu0 0
      %4546 = vmatpush1.bf16.msra.mxu0 0
      %4547 = vmatprep.subr.bf16.mxu0 0
      %4548 = vmatpush1.bf16.msra.mxu0 0
      %4549 = vmatprep.subr.bf16.mxu0 0
      %4550 = vmatpush1.bf16.msra.mxu0 0
      %4551 = vmatprep.subr.bf16.mxu0 0
      %4552 = vmatpush1.bf16.msra.mxu0 0
      %4553 = vmatprep.subr.bf16.mxu0 0
      %4554 = vmatpush1.bf16.msra.mxu0 0
      %4555 = vmatprep.subr.bf16.mxu0 0
      %4556 = vmatpush1.bf16.msra.mxu0 0
      %4557 = vmatprep.subr.bf16.mxu0 0
      %4558 = vmatpush1.bf16.msra.mxu0 0
      %4559 = vmatprep.subr.bf16.mxu0 0
      %4560 = vmatpush1.bf16.msra.mxu0 0
      %4561 = vmatprep.mubr.bf16.mxu0 0
      %4562 = vmatmul.mubr.bf16.gmra.mrb[0].mxu0 %v4479
      %v4563 = vpop.f32.mrb[0].mxu0
      %v4564 = vadd.f32 0.0, %v4563
      %v4565 = vpop.f32.mrb[0].mxu0
      %v4566 = vpop.f32.mrb[0].mxu0
      %v4567 = vadd.f32 0.0, %v4566
      %v4568 = vpop.f32.mrb[0].mxu0
      %4569 = vdwg.mxu0
      %v4570 = vadd.f32 %v4453, %v4564
      %v4571 = vadd.f32 %v4456, %v4567
      %v4572 = vld [vmem:[%s15] sm:$0x1]
      %v4574 = vlaneseq
      %v4575 = vshrl.u32 %v4574, 7
      %v4576 = vsub.s32 0, %v4575
      %v4577 = vrot.slane %v4572, %v4576
      %v4579 = vadd.f32 %v4570, %v4577
      %v4580 = vadd.f32 %v4571, %v4577
      %v4581 = vadd.f32 %v4579, %v4580
      %v4582 = vrot.slane %v4581, 4
      %v4583 = vadd.f32 %v4581, %v4582
      %v4584 = vrot.slane %v4583, 2
      %v4585 = vadd.f32 %v4583, %v4584
      %v4586 = vrot.slane %v4585, 1
      %v4587 = vadd.f32 %v4585, %v4586
      %v4588 = vmul.f32 %v4579, %v4579
      %v4589 = vmul.f32 %v4580, %v4580
      %v4590 = vadd.f32 %v4588, %v4589
      %v4591 = vrot.slane %v4590, 4
      %v4592 = vadd.f32 %v4590, %v4591
      %v4593 = vrot.slane %v4592, 2
      %v4594 = vadd.f32 %v4592, %v4593
      %v4595 = vrot.slane %v4594, 1
      %v4596 = vadd.f32 %v4594, %v4595
      %v4597 = vsel %vm2528, %v4587, %v4596
      %v4598 = vld [vmem:[%s16] sm:$0xff]
      %v4599 = vld [vmem:[%s16 + $0x8] sm:$0xff]
      %v4600 = vld [vmem:[%s16 + $0x10] sm:$0xff]
      %v4601 = vld [vmem:[%s16 + $0x18] sm:$0xff]
      %v4602 = vld [vmem:[%s16 + $0x20] sm:$0xff]
      %v4603 = vld [vmem:[%s16 + $0x28] sm:$0xff]
      %v4604 = vld [vmem:[%s16 + $0x30] sm:$0xff]
      %v4605 = vld [vmem:[%s16 + $0x38] sm:$0xff]
      %v4606 = vld [vmem:[%s16 + $0x40] sm:$0xff]
      %v4607 = vld [vmem:[%s16 + $0x48] sm:$0xff]
      %v4608 = vld [vmem:[%s16 + $0x50] sm:$0xff]
      %v4609 = vld [vmem:[%s16 + $0x58] sm:$0xff]
      %v4610 = vld [vmem:[%s16 + $0x60] sm:$0xff]
      %v4611 = vld [vmem:[%s16 + $0x68] sm:$0xff]
      %v4612 = vld [vmem:[%s16 + $0x70] sm:$0xff]
      %v4613 = vld [vmem:[%s16 + $0x78] sm:$0xff]
      %4614 = vmatprep.subr.mxu0 0.0
      %4615 = vmatpush1.msra.mxu0 %v4598
      %4616 = vmatprep.subr.mxu0 0.0
      %4617 = vmatpush1.msra.mxu0 %v4599
      %4618 = vmatprep.subr.mxu0 0.0
      %4619 = vmatpush1.msra.mxu0 %v4600
      %4620 = vmatprep.subr.mxu0 0.0
      %4621 = vmatpush1.msra.mxu0 %v4601
      %4622 = vmatprep.subr.mxu0 0.0
      %4623 = vmatpush1.msra.mxu0 %v4602
      %4624 = vmatprep.subr.mxu0 0.0
      %4625 = vmatpush1.msra.mxu0 %v4603
      %4626 = vmatprep.subr.mxu0 0.0
      %4627 = vmatpush1.msra.mxu0 %v4604
      %4628 = vmatprep.subr.mxu0 0.0
      %4629 = vmatpush1.msra.mxu0 %v4605
      %4630 = vmatprep.subr.mxu0 0.0
      %4631 = vmatpush1.msra.mxu0 %v4606
      %4632 = vmatprep.subr.mxu0 0.0
      %4633 = vmatpush1.msra.mxu0 %v4607
      %4634 = vmatprep.subr.mxu0 0.0
      %4635 = vmatpush1.msra.mxu0 %v4608
      %4636 = vmatprep.subr.mxu0 0.0
      %4637 = vmatpush1.msra.mxu0 %v4609
      %4638 = vmatprep.subr.mxu0 0.0
      %4639 = vmatpush1.msra.mxu0 %v4610
      %4640 = vmatprep.subr.mxu0 0.0
      %4641 = vmatpush1.msra.mxu0 %v4611
      %4642 = vmatprep.subr.mxu0 0.0
      %4643 = vmatpush1.msra.mxu0 %v4612
      %4644 = vmatprep.subr.mxu0 0.0
      %4645 = vmatpush1.msra.mxu0 %v4613
      %4646 = vmatprep.subr.mxu0 0.0
      %4647 = vmatpush1.msra.mxu0 0.0
      %4648 = vmatprep.subr.mxu0 0.0
      %4649 = vmatpush1.msra.mxu0 0.0
      %4650 = vmatprep.subr.mxu0 0.0
      %4651 = vmatpush1.msra.mxu0 0.0
      %4652 = vmatprep.subr.mxu0 0.0
      %4653 = vmatpush1.msra.mxu0 0.0
      %4654 = vmatprep.subr.mxu0 0.0
      %4655 = vmatpush1.msra.mxu0 0.0
      %4656 = vmatprep.subr.mxu0 0.0
      %4657 = vmatpush1.msra.mxu0 0.0
      %4658 = vmatprep.subr.mxu0 0.0
      %4659 = vmatpush1.msra.mxu0 0.0
      %4660 = vmatprep.subr.mxu0 0.0
      %4661 = vmatpush1.msra.mxu0 0.0
      %4662 = vmatprep.subr.mxu0 0.0
      %4663 = vmatpush1.msra.mxu0 0.0
      %4664 = vmatprep.subr.mxu0 0.0
      %4665 = vmatpush1.msra.mxu0 0.0
      %4666 = vmatprep.subr.mxu0 0.0
      %4667 = vmatpush1.msra.mxu0 0.0
      %4668 = vmatprep.subr.mxu0 0.0
      %4669 = vmatpush1.msra.mxu0 0.0
      %4670 = vmatprep.subr.mxu0 0.0
      %4671 = vmatpush1.msra.mxu0 0.0
      %4672 = vmatprep.subr.mxu0 0.0
      %4673 = vmatpush1.msra.mxu0 0.0
      %4674 = vmatprep.subr.mxu0 0.0
      %4675 = vmatpush1.msra.mxu0 0.0
      %4676 = vmatprep.subr.mxu0 0.0
      %4677 = vmatpush1.msra.mxu0 0.0
      %4678 = vmatprep.mubr.f32.mxu0 0.0
      %4679 = vmatmul.mubr.f32.gmra.mrb[0].mxu0 %v4597
      %v4680 = vpop.f32.mrb[0].mxu0
      %v4681 = vadd.f32 0.0, %v4680
      %v4682 = vpop.f32.mrb[0].mxu0
      %4683 = vdwg.mxu0
      %v4684 = vmul.f32 %v4681, 0.010416667
      %v4685 = vmul.f32 %v4684, %v4684
      %v4687 = vrot.slane %v4685, 7
      %v4689 = vsub.f32 %v4684, %v4687
      %v4690 = vmax.f32 %v4689, 0.0
      %v4691 = vlaneseq
      %v4692 = vshrl.u32 %v4691, 7
      %v4693 = vsub.s32 0, %v4692
      %v4694 = vrot.slane %v4684, %v4693
      %v4695 = vsub.f32 %v4579, %v4694
      %v4696 = vsub.f32 %v4580, %v4694
      %v4697 = vadd.f32 %v4690, 1e-05
      %v4698 = vrsqrt.pop %v4697
      %v4699 = vlaneseq
      %v4700 = vshrl.u32 %v4699, 7
      %v4701 = vsub.s32 1, %v4700
      %v4702 = vrot.slane %v4698, %v4701
      %v4703 = vmul.f32 %v4695, %v4702
      %v4704 = vmul.f32 %v4696, %v4702
      %v4705 = vld [vmem:[%s17] sm:$0x1]
      %v4707 = vlaneseq
      %v4708 = vshrl.u32 %v4707, 7
      %v4709 = vsub.s32 0, %v4708
      %v4710 = vrot.slane %v4705, %v4709
      %v4712 = vmul.f32 %v4703, %v4710
      %v4713 = vmul.f32 %v4704, %v4710
      %v4714 = vld [vmem:[%s18] sm:$0x1]
      %v4716 = vlaneseq
      %v4717 = vshrl.u32 %v4716, 7
      %v4718 = vsub.s32 0, %v4717
      %v4719 = vrot.slane %v4714, %v4718
      %v4721 = vadd.f32 %v4712, %v4719
      %v4722 = vadd.f32 %v4713, %v4719
      %v4723 = vmax.f32 %v4721, 0.0
      %v4724 = vmax.f32 %v4722, 0.0
      %4725 = vst [vmem:[%s642] sm:$0xff] %v4723
      %4726 = vst [vmem:[%s642 + $0x8] sm:$0xff] %v4724
      %p4727 = scmp.lt.s32.totalorder %s30, 1
      %s4728 = scalar_select %p4727, %s30, 1
      %s4729 = smul.addr %s4728, 2
      %s4730 = smul.addr %s4729, 8
      %s4731 = scalar_lea.vmem %s19, %s4730
      // Predicated region
      $region97: #{ecodepth4_forward.3} parent=95 // pred_check
        %p4732 = pneg %p462
      $region98: #{ecodepth4_forward.3} parent=95 // pred_check_branch
        %4734 = sbr.rel (%p4732) target = $region100
      $region99: #{ecodepth4_forward.3} parent=95 // pred_region
        _
      $region100: #{ecodepth4_forward.3} parent=95 // pred_fallthru
        _
    $region96: #{ecodepth4_forward.3} parent=5 // pred_fallthru
      _
    %p4735 = scmp.le.s32.totalorder 2, %s25
    // Predicated region
    $region101: #{ecodepth4_forward.3} parent=5 // pred_check
      %p4736 = pneg %p4735
    $region102: #{ecodepth4_forward.3} parent=5 // pred_check_branch
      %4738 = sbr.rel (%p4736) target = $region104
    $region103: #{ecodepth4_forward.3} parent=5 // pred_region
      %s4739 = ssub.s32 %s25, 2
      // Predicated region
      $region105: #{ecodepth4_forward.3} parent=103 // pred_check
        %p4740 = pneg %p468
      $region106: #{ecodepth4_forward.3} parent=103 // pred_check_branch
        %4742 = sbr.rel (%p4740) target = $region108
      $region107: #{ecodepth4_forward.3} parent=103 // pred_region
        %p4743 = scmp.lt.s32.totalorder %s31, 1
        %s4744 = scalar_select %p4743, %s31, 1
        %s4745 = smul.addr %s4744, 2
        %s4746 = smul.addr %s4745, 8
        %s4747 = scalar_lea.vmem %s19, %s4746
      $region108: #{ecodepth4_forward.3} parent=103 // pred_fallthru
        _
    $region104: #{ecodepth4_forward.3} parent=5 // pred_fallthru
      _
  $region6: #{ecodepth4_forward.3} parent=0 // loop_footer
    %s29 = sadd.s32 1, %s25
  $region7: #{ecodepth4_forward.3} parent=0 // loop_footer_branch
    %24 = sbr.rel target = $region3
  $region8: #{ecodepth4_forward.3} parent=0 // loop_exit
    _

</llo_original>
